<compile_context>
chip_gen: v5e
topology: v5e:2x2
jax: 0.10.0
libtpu: 0.0.40
codegen_flags: <defaults>
</compile_context>

<pallas_src>
import functools
import math

import jax
import jax.numpy as jnp
from jax.experimental import pallas as pl
from jax.experimental.pallas import tpu as pltpu


# ----------------------------- kernel helpers -----------------------------

def _layernorm(h, gamma, beta, eps=1e-5):
    mean = jnp.mean(h, axis=-1, keepdims=True)
    var = jnp.mean(jnp.square(h - mean), axis=-1, keepdims=True)
    return (h - mean) * jax.lax.rsqrt(var + eps) * gamma + beta


_INV_SQRT2 = 0.7071067811865476  # hoisted constant for exact (erf) GELU


def _gelu_exact(x):
    # nn.GELU() default is the exact erf-based GELU.
    # TODO(synk): on v5e a tanh-approx GELU (EUP slot) would relieve the f32 VALU if the
    # 2e-2 tolerance is deemed acceptable; kept exact here to match module semantics.
    return 0.5 * x * (1.0 + jax.lax.erf(x * _INV_SQRT2))


# ------------------------------- the kernel --------------------------------

def encoder_kernel(x_ref,
                   ln1_g_ref, ln1_b_ref,
                   wqkv_ref, bqkv_ref,
                   wo_ref, bo_ref,
                   ln2_g_ref, ln2_b_ref,
                   w1_ref, b1_ref, w2_ref, b2_ref,
                   o_ref,
                   *, num_heads, matmul_dtype):
    TB, S, D = x_ref.shape
    dh = D // num_heads
    md = matmul_dtype
    R = TB * S

    # Flatten the batch chunk into rows: all row-wise ops become large lane-dense 2-D matmuls.
    x = x_ref[...].reshape(R, D)                            # (R, D) f32

    # ---- LayerNorm 1 (f32) ----
    h = _layernorm(x, ln1_g_ref[...], ln1_b_ref[...])

    # ---- fused QKV projection: one (R, D) @ (D, 3D) matmul ----
    qkv = jnp.dot(h.astype(md), wqkv_ref[...],
                  preferred_element_type=jnp.float32) + bqkv_ref[...]
    # q already carries the 1/sqrt(dh) attention scale (folded into wqkv/bqkv by the wrapper).
    # Cast to bf16 once; per-head slices below reuse these tensors (no per-head re-cast).
    q = qkv[:, :D].reshape(TB, S, D).astype(md)
    k = qkv[:, D:2 * D].reshape(TB, S, D).astype(md)
    v = qkv[:, 2 * D:].reshape(TB, S, D).astype(md)

    # ---- multi-head self-attention ----
    # Statically-unrolled head loop; per-head matmuls batched over the TB sequences via 3-D
    # einsums with a leading batch dim (the dot_general form Mosaic lowers reliably).  Each
    # head's context is folded straight through the matching wo row-slab into an f32
    # accumulator, so no dh-wide lane concat / relayout is ever materialized.
    # NOTE: with small S (<128) the (TB, S, S) score/softmax temporaries are lane-sparse; we
    # assume attention at such sizes is overhead-bound and optimize the projections instead.
    wo = wo_ref[...]                                        # (D, D) bf16, resident
    attn = jnp.zeros((R, D), jnp.float32) + bo_ref[...]     # start from the out-proj bias
    for hd in range(num_heads):                             # static loop over heads
        sl = slice(hd * dh, (hd + 1) * dh)
        s = jnp.einsum('bqd,bkd->bqk', q[:, :, sl], k[:, :, sl],
                       preferred_element_type=jnp.float32)  # (TB, S, S) f32
        s = s - jnp.max(s, axis=-1, keepdims=True)
        p = jnp.exp(s)
        # approx reciprocal (EUP): softmax rows sum to 1 +- ~1e-3 -- intentional.
        p = p * pl.reciprocal(jnp.sum(p, axis=-1, keepdims=True), approx=True)
        ctx = jnp.einsum('bqk,bkd->bqd', p.astype(md), v[:, :, sl],
                         preferred_element_type=jnp.float32)      # (TB, S, dh) f32
        attn = attn + jnp.dot(ctx.reshape(R, dh).astype(md), wo[sl, :],
                              preferred_element_type=jnp.float32)

    y = x + attn                                            # residual 1 (f32)

    # ---- MLP ----
    h2 = _layernorm(y, ln2_g_ref[...], ln2_b_ref[...])
    h2 = jnp.dot(h2.astype(md), w1_ref[...],
                 preferred_element_type=jnp.float32) + b1_ref[...]
    h2 = _gelu_exact(h2)                                    # exact erf GELU, f32
    h2 = jnp.dot(h2.astype(md), w2_ref[...],
                 preferred_element_type=jnp.float32) + b2_ref[...]

    o_ref[...] = (y + h2).reshape(TB, S, D)                 # residual 2


# ------------------------------- the wrapper --------------------------------

def _vmem_capacity_bytes():
    """Physical VMEM per core; conservative 64 MiB (v7x) fallback if the query fails."""
    try:
        return int(pltpu.get_tpu_info().vmem_capacity_bytes)
    except Exception:
        return 64 * 1024 * 1024


def _pick_batch_tile(B, S, D, mlp_dim, weight_bytes, vmem_bytes,
                     target_tile_bytes=12 * 1024 * 1024):
    """Pick the batch tile TB (a divisor of B) and return (TB, per-batch-elem bytes).

    Budgets the f32 working set the kernel actually keeps live per step (I/O tiles incl.
    double buffering, LayerNorm/residual copies, fused qkv + bf16 casts, MLP hidden,
    per-head score/softmax temporaries) against VMEM minus the resident weights, aims for
    a ~8-16 MiB activation tile so R = TB*S feeds the MXU and amortizes the ~0.35us/step
    pipeline overhead, and caps TB so the grid has >= 2 steps (v7x megacore + pipelining).
    """
    per_b = int(4 * S * (8 * D            # x, ln outs, residuals, attn acc, 2x-buffered I/O
                         + 4.5 * D        # fused qkv (f32) + q/k/v bf16 copies
                         + 1.5 * mlp_dim  # MLP hidden f32 + its bf16 cast
                         + 2 * S))        # per-head (S, S) score / softmax temporaries
    # Keep (possibly double-buffered) weights + headroom out of the activation budget.
    budget = max(vmem_bytes - 2 * weight_bytes - (4 << 20), per_b)
    budget = min(budget, target_tile_bytes)
    tb = max(1, min(B, budget // max(per_b, 1)))
    if B >= 2:
        tb = min(tb, B // 2)              # guarantee >= 2 grid steps
    while B % tb != 0:
        tb -= 1
    return tb, per_b


def encoder_forward(x, params, *, num_heads, matmul_dtype=jnp.bfloat16):
    B, S, D = x.shape
    M = params["w1"].shape[1]
    dh = D // num_heads

    # Shape assumptions: fail loudly instead of triggering relayout copies / lowering errors.
    assert D % num_heads == 0, "hidden_dim must be divisible by num_heads"
    assert D % 128 == 0, "hidden_dim must be a multiple of 128 (lane dim)"
    assert M % 128 == 0, "mlp_dim must be a multiple of 128 (lane dim)"
    assert dh % 8 == 0, "head_dim must be a multiple of 8 (sublane tile)"
    assert S % 8 == 0, "seq_len must be a multiple of 8 (sublane tile)"

    scale = 1.0 / math.sqrt(dh)

    # Pack q/k/v into one (D, 3D) projection; fold the 1/sqrt(dh) attention scale into the q
    # columns / bias so the kernel never scales the (S, S) scores.  Folding before the bf16
    # cast rounds slightly differently than scaling f32 scores -- benign, within tolerance.
    wqkv = jnp.concatenate(
        [params["wq"] * scale, params["wk"], params["wv"]], axis=1).astype(matmul_dtype)
    bqkv = jnp.concatenate(
        [params["bq"] * scale, params["bk"], params["bv"]], axis=1).astype(jnp.float32)

    # TODO(synk): on v7x, fp8 weight storage (scales folded into the f32 bias epilogue) would
    # halve the resident-weight VMEM; left out pending an accuracy check vs. the 2e-2 tol.
    args = [
        params["ln1_g"], params["ln1_b"],
        wqkv, bqkv,
        params["wo"].astype(matmul_dtype), params["bo"],
        params["ln2_g"], params["ln2_b"],
        params["w1"].astype(matmul_dtype), params["b1"],
        params["w2"].astype(matmul_dtype), params["b2"],
    ]
    weight_bytes = sum(int(a.size) * a.dtype.itemsize for a in args)

    vmem_bytes = _vmem_capacity_bytes()
    TB, per_b = _pick_batch_tile(B, S, D, M, weight_bytes, vmem_bytes)

    # Explicit scoped-VMEM limit (defaults are 16/32/32 MiB on v5e/v6e/v7x, far below physical).
    vmem_limit = int(min(max(2 * weight_bytes + 2 * TB * per_b + (8 << 20), 32 << 20),
                         int(0.9 * vmem_bytes)))

    kernel = functools.partial(encoder_kernel, num_heads=num_heads,
                               matmul_dtype=matmul_dtype)

    def build_and_run(single_buffer_weights):
        if single_buffer_weights:
            # Constant index_map across the grid -> fetched once; single-buffering halves the
            # resident-weight footprint (matters inside v7x's 64 MiB VMEM).
            param_specs = [
                pl.BlockSpec(a.shape, lambda b, nd=a.ndim: (0,) * nd,
                             pipeline_mode=pl.Buffered(1))
                for a in args
            ]
        else:
            param_specs = [
                pl.BlockSpec(a.shape, lambda b, nd=a.ndim: (0,) * nd) for a in args
            ]
        out = pl.pallas_call(
            kernel,
            out_shape=jax.ShapeDtypeStruct((B, S, D), jnp.float32),
            grid_spec=pltpu.PrefetchScalarGridSpec(
                num_scalar_prefetch=0,
                grid=(B // TB,),
                in_specs=[pl.BlockSpec((TB, S, D), lambda b: (b, 0, 0))] + param_specs,
                out_specs=pl.BlockSpec((TB, S, D), lambda b: (b, 0, 0)),
            ),
            compiler_params=pltpu.CompilerParams(
                dimension_semantics=("parallel",),
                vmem_limit_bytes=vmem_limit),
        )(x, *args)
        return jax.block_until_ready(out)

    try:
        return build_and_run(True)
    except Exception:
        # pl.Buffered(1) not accepted by this Mosaic build -> fall back to default buffering.
        return build_and_run(False)


# --------------------------- pure-JAX reference -----------------------------

def encoder_ref(x, params, *, num_heads):
    def ln(h, g, b, eps=1e-5):
        m = jnp.mean(h, axis=-1, keepdims=True)
        v = jnp.mean(jnp.square(h - m), axis=-1, keepdims=True)
        return (h - m) / jnp.sqrt(v + eps) * g + b

    B, S, D = x.shape
    dh = D // num_heads
    h = ln(x, params["ln1_g"][0], params["ln1_b"][0])
    q = h @ params["wq"] + params["bq"][0]
    k = h @ params["wk"] + params["bk"][0]
    v = h @ params["wv"] + params["bv"][0]
    qh = q.reshape(B, S, num_heads, dh).transpose(0, 2, 1, 3)
    kh = k.reshape(B, S, num_heads, dh).transpose(0, 2, 1, 3)
    vh = v.reshape(B, S, num_heads, dh).transpose(0, 2, 1, 3)
    s = jnp.einsum("bhqd,bhkd->bhqk", qh, kh) / jnp.sqrt(dh)
    p = jax.nn.softmax(s, axis=-1)
    o = jnp.einsum("bhqk,bhkd->bhqd", p, vh).transpose(0, 2, 1, 3).reshape(B, S, D)
    o = o @ params["wo"] + params["bo"][0]
    y = x + o
    h2 = ln(y, params["ln2_g"][0], params["ln2_b"][0])
    h2 = h2 @ params["w1"] + params["b1"][0]
    h2 = jax.nn.gelu(h2, approximate=False)
    h2 = h2 @ params["w2"] + params["b2"][0]
    return y + h2


# ---------------------------------- main -------------------------------------

def make_params(key, hidden_dim, mlp_dim):
    ks = jax.random.split(key, 12)
    n = lambda k, shape, s=0.05: (s * jax.random.normal(k, shape)).astype(jnp.float32)
    D, M = hidden_dim, mlp_dim
    return {
        # LayerNorm affine params (kept 2-D (1, D) for lane-friendly layout)
        "ln1_g": jnp.ones((1, D), jnp.float32),
        "ln1_b": jnp.zeros((1, D), jnp.float32),
        "ln2_g": jnp.ones((1, D), jnp.float32),
        "ln2_b": jnp.zeros((1, D), jnp.float32),
        # Attention in-projection (already transposed to (in, out))
        "wq": n(ks[0], (D, D)), "wk": n(ks[1], (D, D)), "wv": n(ks[2], (D, D)),
        "bq": n(ks[3], (1, D)), "bk": n(ks[4], (1, D)), "bv": n(ks[5], (1, D)),
        # Attention out-projection
        "wo": n(ks[6], (D, D)), "bo": n(ks[7], (1, D)),
        # MLP
        "w1": n(ks[8], (D, M)), "b1": n(ks[9], (1, M)),
        "w2": n(ks[10], (M, D)), "b2": n(ks[11], (1, D)),
    }


if __name__ == "__main__":
    # batch, seq, hidden_dim, num_heads, mlp_dim -- hidden/MLP dims are 128-multiples so every
    # activation / store is lane-dense; B chosen so the grid has >= 2 steps (megacore split).
    B, S, D, H, M = 4, 16, 128, 4, 256

    key = jax.random.PRNGKey(0)
    kx, kp = jax.random.split(key)
    x = jax.random.normal(kx, (B, S, D), dtype=jnp.float32)
    params = make_params(kp, D, M)

    out = encoder_forward(x, params, num_heads=H)   # bf16 matmul operands, f32 accumulation
    out = jax.block_until_ready(out)

    ref = encoder_ref(x, params, num_heads=H)       # pure f32 reference
    assert out.shape == (B, S, D)
    # Tolerance covers bf16 matmul operands, the approx softmax reciprocal, and the scale fold.
    assert bool(jnp.allclose(out, ref, rtol=2e-2, atol=2e-2)), "mismatch vs reference"

    print("KERNEL_OK")
</pallas_src>

<mosaic_0001>
module attributes {stable_mosaic.version = 11 : i64} {
  func.func @encoder_kernel(%arg0: i32, %arg1: memref<2x16x128xf32, #tpu.memory_space<vmem>>, %arg2: memref<1x128xf32, #tpu.memory_space<vmem>>, %arg3: memref<1x128xf32, #tpu.memory_space<vmem>>, %arg4: memref<128x384xbf16, #tpu.memory_space<vmem>>, %arg5: memref<1x384xf32, #tpu.memory_space<vmem>>, %arg6: memref<128x128xbf16, #tpu.memory_space<vmem>>, %arg7: memref<1x128xf32, #tpu.memory_space<vmem>>, %arg8: memref<1x128xf32, #tpu.memory_space<vmem>>, %arg9: memref<1x128xf32, #tpu.memory_space<vmem>>, %arg10: memref<128x256xbf16, #tpu.memory_space<vmem>>, %arg11: memref<1x256xf32, #tpu.memory_space<vmem>>, %arg12: memref<256x128xbf16, #tpu.memory_space<vmem>>, %arg13: memref<1x128xf32, #tpu.memory_space<vmem>>, %arg14: memref<2x16x128xf32, #tpu.memory_space<vmem>>) attributes {dimension_semantics = [#tpu.dimension_semantics<parallel>], iteration_bounds = array<i64: 2>, scalar_prefetch = 0 : i64, scratch_operands = 0 : i64, tpu.core_type = #tpu.core_type<tc>, window_params = [{transform_indices = @transform_0, window_bounds = array<i64: 2, 16, 128>}, {pipeline_mode = #tpu.pipeline_mode<synchronous>, transform_indices = @transform_1, window_bounds = array<i64: 1, 128>}, {pipeline_mode = #tpu.pipeline_mode<synchronous>, transform_indices = @transform_2, window_bounds = array<i64: 1, 128>}, {pipeline_mode = #tpu.pipeline_mode<synchronous>, transform_indices = @transform_3, window_bounds = array<i64: 128, 384>}, {pipeline_mode = #tpu.pipeline_mode<synchronous>, transform_indices = @transform_4, window_bounds = array<i64: 1, 384>}, {pipeline_mode = #tpu.pipeline_mode<synchronous>, transform_indices = @transform_5, window_bounds = array<i64: 128, 128>}, {pipeline_mode = #tpu.pipeline_mode<synchronous>, transform_indices = @transform_6, window_bounds = array<i64: 1, 128>}, {pipeline_mode = #tpu.pipeline_mode<synchronous>, transform_indices = @transform_7, window_bounds = array<i64: 1, 128>}, {pipeline_mode = #tpu.pipeline_mode<synchronous>, transform_indices = @transform_8, window_bounds = array<i64: 1, 128>}, {pipeline_mode = #tpu.pipeline_mode<synchronous>, transform_indices = @transform_9, window_bounds = array<i64: 128, 256>}, {pipeline_mode = #tpu.pipeline_mode<synchronous>, transform_indices = @transform_10, window_bounds = array<i64: 1, 256>}, {pipeline_mode = #tpu.pipeline_mode<synchronous>, transform_indices = @transform_11, window_bounds = array<i64: 256, 128>}, {pipeline_mode = #tpu.pipeline_mode<synchronous>, transform_indices = @transform_12, window_bounds = array<i64: 1, 128>}, {transform_indices = @transform_13, window_bounds = array<i64: 2, 16, 128>}]} {
    %c0 = arith.constant 0 : index
    %c0_0 = arith.constant 0 : index
    %c0_1 = arith.constant 0 : index
    %0 = vector.load %arg1[%c0, %c0_0, %c0_1] : memref<2x16x128xf32, #tpu.memory_space<vmem>>, vector<2x16x128xf32>
    %1 = vector.shape_cast %0 : vector<2x16x128xf32> to vector<32x128xf32>
    %c0_2 = arith.constant 0 : index
    %c0_3 = arith.constant 0 : index
    %2 = vector.load %arg2[%c0_2, %c0_3] : memref<1x128xf32, #tpu.memory_space<vmem>>, vector<1x128xf32>
    %c0_4 = arith.constant 0 : index
    %c0_5 = arith.constant 0 : index
    %3 = vector.load %arg3[%c0_4, %c0_5] : memref<1x128xf32, #tpu.memory_space<vmem>>, vector<1x128xf32>
    %cst = arith.constant dense<0.000000e+00> : vector<32xf32>
    %4 = vector.multi_reduction <add>, %1, %cst [1] : vector<32x128xf32> to vector<32xf32>
    %5 = vector.shape_cast %4 : vector<32xf32> to vector<32x1xf32>
    %cst_6 = arith.constant 1.280000e+02 : f32
    %6 = vector.broadcast %cst_6 : f32 to vector<32x1xf32>
    %7 = arith.divf %5, %6 : vector<32x1xf32>
    %8 = vector.broadcast %7 : vector<32x1xf32> to vector<32x128xf32>
    %9 = arith.subf %1, %8 : vector<32x128xf32>
    %10 = arith.mulf %9, %9 : vector<32x128xf32>
    %cst_7 = arith.constant dense<0.000000e+00> : vector<32xf32>
    %11 = vector.multi_reduction <add>, %10, %cst_7 [1] : vector<32x128xf32> to vector<32xf32>
    %12 = vector.shape_cast %11 : vector<32xf32> to vector<32x1xf32>
    %cst_8 = arith.constant 1.280000e+02 : f32
    %13 = vector.broadcast %cst_8 : f32 to vector<32x1xf32>
    %14 = arith.divf %12, %13 : vector<32x1xf32>
    %15 = vector.broadcast %7 : vector<32x1xf32> to vector<32x128xf32>
    %16 = arith.subf %1, %15 : vector<32x128xf32>
    %cst_9 = arith.constant 9.99999974E-6 : f32
    %17 = vector.broadcast %cst_9 : f32 to vector<32x1xf32>
    %18 = arith.addf %14, %17 : vector<32x1xf32>
    %19 = math.rsqrt %18 : vector<32x1xf32>
    %20 = vector.broadcast %19 : vector<32x1xf32> to vector<32x128xf32>
    %21 = arith.mulf %16, %20 : vector<32x128xf32>
    %22 = vector.broadcast %2 : vector<1x128xf32> to vector<32x128xf32>
    %23 = arith.mulf %21, %22 : vector<32x128xf32>
    %24 = vector.broadcast %3 : vector<1x128xf32> to vector<32x128xf32>
    %25 = arith.addf %23, %24 : vector<32x128xf32>
    %26 = arith.truncf %25 : vector<32x128xf32> to vector<32x128xbf16>
    %c0_10 = arith.constant 0 : index
    %c0_11 = arith.constant 0 : index
    %27 = vector.load %arg4[%c0_10, %c0_11] : memref<128x384xbf16, #tpu.memory_space<vmem>>, vector<128x384xbf16>
    %cst_12 = arith.constant dense<0.000000e+00> : vector<32x384xf32>
    %28 = tpu.matmul %26, %27, %cst_12 {dimension_numbers = #tpu.dot_dimension_numbers<[1], [0], [0], [1], [0, 0, 1, 1], [], []>} : vector<32x128xbf16>, vector<128x384xbf16>, vector<32x384xf32> -> vector<32x384xf32>
    %c0_13 = arith.constant 0 : index
    %c0_14 = arith.constant 0 : index
    %29 = vector.load %arg5[%c0_13, %c0_14] : memref<1x384xf32, #tpu.memory_space<vmem>>, vector<1x384xf32>
    %30 = vector.broadcast %29 : vector<1x384xf32> to vector<32x384xf32>
    %31 = arith.addf %28, %30 : vector<32x384xf32>
    %32 = vector.extract_strided_slice %31 {offsets = [0, 0], sizes = [32, 128], strides = [1, 1]} : vector<32x384xf32> to vector<32x128xf32>
    %33 = vector.shape_cast %32 : vector<32x128xf32> to vector<2x16x128xf32>
    %34 = arith.truncf %33 : vector<2x16x128xf32> to vector<2x16x128xbf16>
    %35 = vector.extract_strided_slice %31 {offsets = [0, 128], sizes = [32, 128], strides = [1, 1]} : vector<32x384xf32> to vector<32x128xf32>
    %36 = vector.shape_cast %35 : vector<32x128xf32> to vector<2x16x128xf32>
    %37 = arith.truncf %36 : vector<2x16x128xf32> to vector<2x16x128xbf16>
    %38 = vector.extract_strided_slice %31 {offsets = [0, 256], sizes = [32, 128], strides = [1, 1]} : vector<32x384xf32> to vector<32x128xf32>
    %39 = vector.shape_cast %38 : vector<32x128xf32> to vector<2x16x128xf32>
    %40 = arith.truncf %39 : vector<2x16x128xf32> to vector<2x16x128xbf16>
    %c0_15 = arith.constant 0 : index
    %c0_16 = arith.constant 0 : index
    %41 = vector.load %arg6[%c0_15, %c0_16] : memref<128x128xbf16, #tpu.memory_space<vmem>>, vector<128x128xbf16>
    %cst_17 = arith.constant 0.000000e+00 : f32
    %42 = vector.broadcast %cst_17 : f32 to vector<32x128xf32>
    %c0_18 = arith.constant 0 : index
    %c0_19 = arith.constant 0 : index
    %43 = vector.load %arg7[%c0_18, %c0_19] : memref<1x128xf32, #tpu.memory_space<vmem>>, vector<1x128xf32>
    %44 = vector.broadcast %43 : vector<1x128xf32> to vector<32x128xf32>
    %45 = arith.addf %42, %44 : vector<32x128xf32>
    %46 = vector.extract_strided_slice %34 {offsets = [0, 0, 0], sizes = [2, 16, 32], strides = [1, 1, 1]} : vector<2x16x128xbf16> to vector<2x16x32xbf16>
    %47 = vector.extract_strided_slice %37 {offsets = [0, 0, 0], sizes = [2, 16, 32], strides = [1, 1, 1]} : vector<2x16x128xbf16> to vector<2x16x32xbf16>
    "tpu.trace_start"() <{level = 10 : i32, message = "bqd,bkd->bqk"}> : () -> ()
    %cst_20 = arith.constant dense<0.000000e+00> : vector<2x16x16xf32>
    %48 = tpu.matmul %46, %47, %cst_20 {dimension_numbers = #tpu.dot_dimension_numbers<[2], [2], [1], [1], [0, 0, 0, 1, 1, 1], [0], [0]>} : vector<2x16x32xbf16>, vector<2x16x32xbf16>, vector<2x16x16xf32> -> vector<2x16x16xf32>
    "tpu.trace_stop"() : () -> ()
    %cst_21 = arith.constant dense<0xFF800000> : vector<2x16xf32>
    %49 = vector.multi_reduction <maximumf>, %48, %cst_21 [2] : vector<2x16x16xf32> to vector<2x16xf32>
    %50 = vector.shape_cast %49 : vector<2x16xf32> to vector<2x16x1xf32>
    %51 = vector.broadcast %50 : vector<2x16x1xf32> to vector<2x16x16xf32>
    %52 = arith.subf %48, %51 : vector<2x16x16xf32>
    %53 = math.exp %52 : vector<2x16x16xf32>
    %cst_22 = arith.constant dense<0.000000e+00> : vector<2x16xf32>
    %54 = vector.multi_reduction <add>, %53, %cst_22 [2] : vector<2x16x16xf32> to vector<2x16xf32>
    %55 = vector.shape_cast %54 : vector<2x16xf32> to vector<2x16x1xf32>
    %56 = tpu.reciprocal %55 {approx = true} : vector<2x16x1xf32> -> vector<2x16x1xf32>
    %57 = vector.broadcast %56 : vector<2x16x1xf32> to vector<2x16x16xf32>
    %58 = arith.mulf %53, %57 : vector<2x16x16xf32>
    %59 = arith.truncf %58 : vector<2x16x16xf32> to vector<2x16x16xbf16>
    %60 = vector.extract_strided_slice %40 {offsets = [0, 0, 0], sizes = [2, 16, 32], strides = [1, 1, 1]} : vector<2x16x128xbf16> to vector<2x16x32xbf16>
    "tpu.trace_start"() <{level = 10 : i32, message = "bqk,bkd->bqd"}> : () -> ()
    %cst_23 = arith.constant dense<0.000000e+00> : vector<2x16x32xf32>
    %61 = tpu.matmul %59, %60, %cst_23 {dimension_numbers = #tpu.dot_dimension_numbers<[2], [1], [1], [2], [0, 0, 0, 1, 1, 2], [0], [0]>} : vector<2x16x16xbf16>, vector<2x16x32xbf16>, vector<2x16x32xf32> -> vector<2x16x32xf32>
    "tpu.trace_stop"() : () -> ()
    %62 = vector.shape_cast %61 : vector<2x16x32xf32> to vector<32x32xf32>
    %63 = arith.truncf %62 : vector<32x32xf32> to vector<32x32xbf16>
    %64 = vector.extract_strided_slice %41 {offsets = [0, 0], sizes = [32, 128], strides = [1, 1]} : vector<128x128xbf16> to vector<32x128xbf16>
    %cst_24 = arith.constant dense<0.000000e+00> : vector<32x128xf32>
    %65 = tpu.matmul %63, %64, %cst_24 {dimension_numbers = #tpu.dot_dimension_numbers<[1], [0], [0], [1], [0, 0, 1, 1], [], []>} : vector<32x32xbf16>, vector<32x128xbf16>, vector<32x128xf32> -> vector<32x128xf32>
    %66 = arith.addf %45, %65 : vector<32x128xf32>
    %67 = vector.extract_strided_slice %34 {offsets = [0, 0, 32], sizes = [2, 16, 32], strides = [1, 1, 1]} : vector<2x16x128xbf16> to vector<2x16x32xbf16>
    %68 = vector.extract_strided_slice %37 {offsets = [0, 0, 32], sizes = [2, 16, 32], strides = [1, 1, 1]} : vector<2x16x128xbf16> to vector<2x16x32xbf16>
    "tpu.trace_start"() <{level = 10 : i32, message = "bqd,bkd->bqk"}> : () -> ()
    %cst_25 = arith.constant dense<0.000000e+00> : vector<2x16x16xf32>
    %69 = tpu.matmul %67, %68, %cst_25 {dimension_numbers = #tpu.dot_dimension_numbers<[2], [2], [1], [1], [0, 0, 0, 1, 1, 1], [0], [0]>} : vector<2x16x32xbf16>, vector<2x16x32xbf16>, vector<2x16x16xf32> -> vector<2x16x16xf32>
    "tpu.trace_stop"() : () -> ()
    %cst_26 = arith.constant dense<0xFF800000> : vector<2x16xf32>
    %70 = vector.multi_reduction <maximumf>, %69, %cst_26 [2] : vector<2x16x16xf32> to vector<2x16xf32>
    %71 = vector.shape_cast %70 : vector<2x16xf32> to vector<2x16x1xf32>
    %72 = vector.broadcast %71 : vector<2x16x1xf32> to vector<2x16x16xf32>
    %73 = arith.subf %69, %72 : vector<2x16x16xf32>
    %74 = math.exp %73 : vector<2x16x16xf32>
    %cst_27 = arith.constant dense<0.000000e+00> : vector<2x16xf32>
    %75 = vector.multi_reduction <add>, %74, %cst_27 [2] : vector<2x16x16xf32> to vector<2x16xf32>
    %76 = vector.shape_cast %75 : vector<2x16xf32> to vector<2x16x1xf32>
    %77 = tpu.reciprocal %76 {approx = true} : vector<2x16x1xf32> -> vector<2x16x1xf32>
    %78 = vector.broadcast %77 : vector<2x16x1xf32> to vector<2x16x16xf32>
    %79 = arith.mulf %74, %78 : vector<2x16x16xf32>
    %80 = arith.truncf %79 : vector<2x16x16xf32> to vector<2x16x16xbf16>
    %81 = vector.extract_strided_slice %40 {offsets = [0, 0, 32], sizes = [2, 16, 32], strides = [1, 1, 1]} : vector<2x16x128xbf16> to vector<2x16x32xbf16>
    "tpu.trace_start"() <{level = 10 : i32, message = "bqk,bkd->bqd"}> : () -> ()
    %cst_28 = arith.constant dense<0.000000e+00> : vector<2x16x32xf32>
    %82 = tpu.matmul %80, %81, %cst_28 {dimension_numbers = #tpu.dot_dimension_numbers<[2], [1], [1], [2], [0, 0, 0, 1, 1, 2], [0], [0]>} : vector<2x16x16xbf16>, vector<2x16x32xbf16>, vector<2x16x32xf32> -> vector<2x16x32xf32>
    "tpu.trace_stop"() : () -> ()
    %83 = vector.shape_cast %82 : vector<2x16x32xf32> to vector<32x32xf32>
    %84 = arith.truncf %83 : vector<32x32xf32> to vector<32x32xbf16>
    %85 = vector.extract_strided_slice %41 {offsets = [32, 0], sizes = [32, 128], strides = [1, 1]} : vector<128x128xbf16> to vector<32x128xbf16>
    %cst_29 = arith.constant dense<0.000000e+00> : vector<32x128xf32>
    %86 = tpu.matmul %84, %85, %cst_29 {dimension_numbers = #tpu.dot_dimension_numbers<[1], [0], [0], [1], [0, 0, 1, 1], [], []>} : vector<32x32xbf16>, vector<32x128xbf16>, vector<32x128xf32> -> vector<32x128xf32>
    %87 = arith.addf %66, %86 : vector<32x128xf32>
    %88 = vector.extract_strided_slice %34 {offsets = [0, 0, 64], sizes = [2, 16, 32], strides = [1, 1, 1]} : vector<2x16x128xbf16> to vector<2x16x32xbf16>
    %89 = vector.extract_strided_slice %37 {offsets = [0, 0, 64], sizes = [2, 16, 32], strides = [1, 1, 1]} : vector<2x16x128xbf16> to vector<2x16x32xbf16>
    "tpu.trace_start"() <{level = 10 : i32, message = "bqd,bkd->bqk"}> : () -> ()
    %cst_30 = arith.constant dense<0.000000e+00> : vector<2x16x16xf32>
    %90 = tpu.matmul %88, %89, %cst_30 {dimension_numbers = #tpu.dot_dimension_numbers<[2], [2], [1], [1], [0, 0, 0, 1, 1, 1], [0], [0]>} : vector<2x16x32xbf16>, vector<2x16x32xbf16>, vector<2x16x16xf32> -> vector<2x16x16xf32>
    "tpu.trace_stop"() : () -> ()
    %cst_31 = arith.constant dense<0xFF800000> : vector<2x16xf32>
    %91 = vector.multi_reduction <maximumf>, %90, %cst_31 [2] : vector<2x16x16xf32> to vector<2x16xf32>
    %92 = vector.shape_cast %91 : vector<2x16xf32> to vector<2x16x1xf32>
    %93 = vector.broadcast %92 : vector<2x16x1xf32> to vector<2x16x16xf32>
    %94 = arith.subf %90, %93 : vector<2x16x16xf32>
    %95 = math.exp %94 : vector<2x16x16xf32>
    %cst_32 = arith.constant dense<0.000000e+00> : vector<2x16xf32>
    %96 = vector.multi_reduction <add>, %95, %cst_32 [2] : vector<2x16x16xf32> to vector<2x16xf32>
    %97 = vector.shape_cast %96 : vector<2x16xf32> to vector<2x16x1xf32>
    %98 = tpu.reciprocal %97 {approx = true} : vector<2x16x1xf32> -> vector<2x16x1xf32>
    %99 = vector.broadcast %98 : vector<2x16x1xf32> to vector<2x16x16xf32>
    %100 = arith.mulf %95, %99 : vector<2x16x16xf32>
    %101 = arith.truncf %100 : vector<2x16x16xf32> to vector<2x16x16xbf16>
    %102 = vector.extract_strided_slice %40 {offsets = [0, 0, 64], sizes = [2, 16, 32], strides = [1, 1, 1]} : vector<2x16x128xbf16> to vector<2x16x32xbf16>
    "tpu.trace_start"() <{level = 10 : i32, message = "bqk,bkd->bqd"}> : () -> ()
    %cst_33 = arith.constant dense<0.000000e+00> : vector<2x16x32xf32>
    %103 = tpu.matmul %101, %102, %cst_33 {dimension_numbers = #tpu.dot_dimension_numbers<[2], [1], [1], [2], [0, 0, 0, 1, 1, 2], [0], [0]>} : vector<2x16x16xbf16>, vector<2x16x32xbf16>, vector<2x16x32xf32> -> vector<2x16x32xf32>
    "tpu.trace_stop"() : () -> ()
    %104 = vector.shape_cast %103 : vector<2x16x32xf32> to vector<32x32xf32>
    %105 = arith.truncf %104 : vector<32x32xf32> to vector<32x32xbf16>
    %106 = vector.extract_strided_slice %41 {offsets = [64, 0], sizes = [32, 128], strides = [1, 1]} : vector<128x128xbf16> to vector<32x128xbf16>
    %cst_34 = arith.constant dense<0.000000e+00> : vector<32x128xf32>
    %107 = tpu.matmul %105, %106, %cst_34 {dimension_numbers = #tpu.dot_dimension_numbers<[1], [0], [0], [1], [0, 0, 1, 1], [], []>} : vector<32x32xbf16>, vector<32x128xbf16>, vector<32x128xf32> -> vector<32x128xf32>
    %108 = arith.addf %87, %107 : vector<32x128xf32>
    %109 = vector.extract_strided_slice %34 {offsets = [0, 0, 96], sizes = [2, 16, 32], strides = [1, 1, 1]} : vector<2x16x128xbf16> to vector<2x16x32xbf16>
    %110 = vector.extract_strided_slice %37 {offsets = [0, 0, 96], sizes = [2, 16, 32], strides = [1, 1, 1]} : vector<2x16x128xbf16> to vector<2x16x32xbf16>
    "tpu.trace_start"() <{level = 10 : i32, message = "bqd,bkd->bqk"}> : () -> ()
    %cst_35 = arith.constant dense<0.000000e+00> : vector<2x16x16xf32>
    %111 = tpu.matmul %109, %110, %cst_35 {dimension_numbers = #tpu.dot_dimension_numbers<[2], [2], [1], [1], [0, 0, 0, 1, 1, 1], [0], [0]>} : vector<2x16x32xbf16>, vector<2x16x32xbf16>, vector<2x16x16xf32> -> vector<2x16x16xf32>
    "tpu.trace_stop"() : () -> ()
    %cst_36 = arith.constant dense<0xFF800000> : vector<2x16xf32>
    %112 = vector.multi_reduction <maximumf>, %111, %cst_36 [2] : vector<2x16x16xf32> to vector<2x16xf32>
    %113 = vector.shape_cast %112 : vector<2x16xf32> to vector<2x16x1xf32>
    %114 = vector.broadcast %113 : vector<2x16x1xf32> to vector<2x16x16xf32>
    %115 = arith.subf %111, %114 : vector<2x16x16xf32>
    %116 = math.exp %115 : vector<2x16x16xf32>
    %cst_37 = arith.constant dense<0.000000e+00> : vector<2x16xf32>
    %117 = vector.multi_reduction <add>, %116, %cst_37 [2] : vector<2x16x16xf32> to vector<2x16xf32>
    %118 = vector.shape_cast %117 : vector<2x16xf32> to vector<2x16x1xf32>
    %119 = tpu.reciprocal %118 {approx = true} : vector<2x16x1xf32> -> vector<2x16x1xf32>
    %120 = vector.broadcast %119 : vector<2x16x1xf32> to vector<2x16x16xf32>
    %121 = arith.mulf %116, %120 : vector<2x16x16xf32>
    %122 = arith.truncf %121 : vector<2x16x16xf32> to vector<2x16x16xbf16>
    %123 = vector.extract_strided_slice %40 {offsets = [0, 0, 96], sizes = [2, 16, 32], strides = [1, 1, 1]} : vector<2x16x128xbf16> to vector<2x16x32xbf16>
    "tpu.trace_start"() <{level = 10 : i32, message = "bqk,bkd->bqd"}> : () -> ()
    %cst_38 = arith.constant dense<0.000000e+00> : vector<2x16x32xf32>
    %124 = tpu.matmul %122, %123, %cst_38 {dimension_numbers = #tpu.dot_dimension_numbers<[2], [1], [1], [2], [0, 0, 0, 1, 1, 2], [0], [0]>} : vector<2x16x16xbf16>, vector<2x16x32xbf16>, vector<2x16x32xf32> -> vector<2x16x32xf32>
    "tpu.trace_stop"() : () -> ()
    %125 = vector.shape_cast %124 : vector<2x16x32xf32> to vector<32x32xf32>
    %126 = arith.truncf %125 : vector<32x32xf32> to vector<32x32xbf16>
    %127 = vector.extract_strided_slice %41 {offsets = [96, 0], sizes = [32, 128], strides = [1, 1]} : vector<128x128xbf16> to vector<32x128xbf16>
    %cst_39 = arith.constant dense<0.000000e+00> : vector<32x128xf32>
    %128 = tpu.matmul %126, %127, %cst_39 {dimension_numbers = #tpu.dot_dimension_numbers<[1], [0], [0], [1], [0, 0, 1, 1], [], []>} : vector<32x32xbf16>, vector<32x128xbf16>, vector<32x128xf32> -> vector<32x128xf32>
    %129 = arith.addf %108, %128 : vector<32x128xf32>
    %130 = arith.addf %1, %129 : vector<32x128xf32>
    %c0_40 = arith.constant 0 : index
    %c0_41 = arith.constant 0 : index
    %131 = vector.load %arg8[%c0_40, %c0_41] : memref<1x128xf32, #tpu.memory_space<vmem>>, vector<1x128xf32>
    %c0_42 = arith.constant 0 : index
    %c0_43 = arith.constant 0 : index
    %132 = vector.load %arg9[%c0_42, %c0_43] : memref<1x128xf32, #tpu.memory_space<vmem>>, vector<1x128xf32>
    %cst_44 = arith.constant dense<0.000000e+00> : vector<32xf32>
    %133 = vector.multi_reduction <add>, %130, %cst_44 [1] : vector<32x128xf32> to vector<32xf32>
    %134 = vector.shape_cast %133 : vector<32xf32> to vector<32x1xf32>
    %cst_45 = arith.constant 1.280000e+02 : f32
    %135 = vector.broadcast %cst_45 : f32 to vector<32x1xf32>
    %136 = arith.divf %134, %135 : vector<32x1xf32>
    %137 = vector.broadcast %136 : vector<32x1xf32> to vector<32x128xf32>
    %138 = arith.subf %130, %137 : vector<32x128xf32>
    %139 = arith.mulf %138, %138 : vector<32x128xf32>
    %cst_46 = arith.constant dense<0.000000e+00> : vector<32xf32>
    %140 = vector.multi_reduction <add>, %139, %cst_46 [1] : vector<32x128xf32> to vector<32xf32>
    %141 = vector.shape_cast %140 : vector<32xf32> to vector<32x1xf32>
    %cst_47 = arith.constant 1.280000e+02 : f32
    %142 = vector.broadcast %cst_47 : f32 to vector<32x1xf32>
    %143 = arith.divf %141, %142 : vector<32x1xf32>
    %144 = vector.broadcast %136 : vector<32x1xf32> to vector<32x128xf32>
    %145 = arith.subf %130, %144 : vector<32x128xf32>
    %cst_48 = arith.constant 9.99999974E-6 : f32
    %146 = vector.broadcast %cst_48 : f32 to vector<32x1xf32>
    %147 = arith.addf %143, %146 : vector<32x1xf32>
    %148 = math.rsqrt %147 : vector<32x1xf32>
    %149 = vector.broadcast %148 : vector<32x1xf32> to vector<32x128xf32>
    %150 = arith.mulf %145, %149 : vector<32x128xf32>
    %151 = vector.broadcast %131 : vector<1x128xf32> to vector<32x128xf32>
    %152 = arith.mulf %150, %151 : vector<32x128xf32>
    %153 = vector.broadcast %132 : vector<1x128xf32> to vector<32x128xf32>
    %154 = arith.addf %152, %153 : vector<32x128xf32>
    %155 = arith.truncf %154 : vector<32x128xf32> to vector<32x128xbf16>
    %c0_49 = arith.constant 0 : index
    %c0_50 = arith.constant 0 : index
    %156 = vector.load %arg10[%c0_49, %c0_50] : memref<128x256xbf16, #tpu.memory_space<vmem>>, vector<128x256xbf16>
    %cst_51 = arith.constant dense<0.000000e+00> : vector<32x256xf32>
    %157 = tpu.matmul %155, %156, %cst_51 {dimension_numbers = #tpu.dot_dimension_numbers<[1], [0], [0], [1], [0, 0, 1, 1], [], []>} : vector<32x128xbf16>, vector<128x256xbf16>, vector<32x256xf32> -> vector<32x256xf32>
    %c0_52 = arith.constant 0 : index
    %c0_53 = arith.constant 0 : index
    %158 = vector.load %arg11[%c0_52, %c0_53] : memref<1x256xf32, #tpu.memory_space<vmem>>, vector<1x256xf32>
    %159 = vector.broadcast %158 : vector<1x256xf32> to vector<32x256xf32>
    %160 = arith.addf %157, %159 : vector<32x256xf32>
    %cst_54 = arith.constant 5.000000e-01 : f32
    %161 = vector.broadcast %cst_54 : f32 to vector<32x256xf32>
    %162 = arith.mulf %161, %160 : vector<32x256xf32>
    %cst_55 = arith.constant 0.707106769 : f32
    %163 = vector.broadcast %cst_55 : f32 to vector<32x256xf32>
    %164 = arith.mulf %160, %163 : vector<32x256xf32>
    %165 = math.erf %164 : vector<32x256xf32>
    %cst_56 = arith.constant 1.000000e+00 : f32
    %166 = vector.broadcast %cst_56 : f32 to vector<32x256xf32>
    %167 = arith.addf %166, %165 : vector<32x256xf32>
    %168 = arith.mulf %162, %167 : vector<32x256xf32>
    %169 = arith.truncf %168 : vector<32x256xf32> to vector<32x256xbf16>
    %c0_57 = arith.constant 0 : index
    %c0_58 = arith.constant 0 : index
    %170 = vector.load %arg12[%c0_57, %c0_58] : memref<256x128xbf16, #tpu.memory_space<vmem>>, vector<256x128xbf16>
    %cst_59 = arith.constant dense<0.000000e+00> : vector<32x128xf32>
    %171 = tpu.matmul %169, %170, %cst_59 {dimension_numbers = #tpu.dot_dimension_numbers<[1], [0], [0], [1], [0, 0, 1, 1], [], []>} : vector<32x256xbf16>, vector<256x128xbf16>, vector<32x128xf32> -> vector<32x128xf32>
    %c0_60 = arith.constant 0 : index
    %c0_61 = arith.constant 0 : index
    %172 = vector.load %arg13[%c0_60, %c0_61] : memref<1x128xf32, #tpu.memory_space<vmem>>, vector<1x128xf32>
    %173 = vector.broadcast %172 : vector<1x128xf32> to vector<32x128xf32>
    %174 = arith.addf %171, %173 : vector<32x128xf32>
    %175 = arith.addf %130, %174 : vector<32x128xf32>
    %176 = vector.shape_cast %175 : vector<32x128xf32> to vector<2x16x128xf32>
    %c0_62 = arith.constant 0 : index
    %c0_63 = arith.constant 0 : index
    %c0_64 = arith.constant 0 : index
    %177 = vector.load %arg14[%c0_62, %c0_63, %c0_64] : memref<2x16x128xf32, #tpu.memory_space<vmem>>, vector<2x16x128xf32>
    tpu.vector_store %arg14[%c0_62, %c0_63, %c0_64], %176 {strides = array<i32>} : memref<2x16x128xf32, #tpu.memory_space<vmem>>, vector<2x16x128xf32>,
    return
  }
  func.func @transform_0(%arg0: i32) -> (i32, i32, i32) {
    %c0_i32 = arith.constant 0 : i32
    %c0_i32_0 = arith.constant 0 : i32
    %c0_i32_1 = arith.constant 0 : i32
    return %arg0, %c0_i32, %c0_i32_0 : i32, i32, i32
  }
  func.func @transform_1(%arg0: i32) -> (i32, i32) {
    %c0_i32 = arith.constant 0 : i32
    %c0_i32_0 = arith.constant 0 : i32
    %c0_i32_1 = arith.constant 0 : i32
    return %c0_i32, %c0_i32_0 : i32, i32
  }
  func.func @transform_2(%arg0: i32) -> (i32, i32) {
    %c0_i32 = arith.constant 0 : i32
    %c0_i32_0 = arith.constant 0 : i32
    %c0_i32_1 = arith.constant 0 : i32
    return %c0_i32, %c0_i32_0 : i32, i32
  }
  func.func @transform_3(%arg0: i32) -> (i32, i32) {
    %c0_i32 = arith.constant 0 : i32
    %c0_i32_0 = arith.constant 0 : i32
    %c0_i32_1 = arith.constant 0 : i32
    return %c0_i32, %c0_i32_0 : i32, i32
  }
  func.func @transform_4(%arg0: i32) -> (i32, i32) {
    %c0_i32 = arith.constant 0 : i32
    %c0_i32_0 = arith.constant 0 : i32
    %c0_i32_1 = arith.constant 0 : i32
    return %c0_i32, %c0_i32_0 : i32, i32
  }
  func.func @transform_5(%arg0: i32) -> (i32, i32) {
    %c0_i32 = arith.constant 0 : i32
    %c0_i32_0 = arith.constant 0 : i32
    %c0_i32_1 = arith.constant 0 : i32
    return %c0_i32, %c0_i32_0 : i32, i32
  }
  func.func @transform_6(%arg0: i32) -> (i32, i32) {
    %c0_i32 = arith.constant 0 : i32
    %c0_i32_0 = arith.constant 0 : i32
    %c0_i32_1 = arith.constant 0 : i32
    return %c0_i32, %c0_i32_0 : i32, i32
  }
  func.func @transform_7(%arg0: i32) -> (i32, i32) {
    %c0_i32 = arith.constant 0 : i32
    %c0_i32_0 = arith.constant 0 : i32
    %c0_i32_1 = arith.constant 0 : i32
    return %c0_i32, %c0_i32_0 : i32, i32
  }
  func.func @transform_8(%arg0: i32) -> (i32, i32) {
    %c0_i32 = arith.constant 0 : i32
    %c0_i32_0 = arith.constant 0 : i32
    %c0_i32_1 = arith.constant 0 : i32
    return %c0_i32, %c0_i32_0 : i32, i32
  }
  func.func @transform_9(%arg0: i32) -> (i32, i32) {
    %c0_i32 = arith.constant 0 : i32
    %c0_i32_0 = arith.constant 0 : i32
    %c0_i32_1 = arith.constant 0 : i32
    return %c0_i32, %c0_i32_0 : i32, i32
  }
  func.func @transform_10(%arg0: i32) -> (i32, i32) {
    %c0_i32 = arith.constant 0 : i32
    %c0_i32_0 = arith.constant 0 : i32
    %c0_i32_1 = arith.constant 0 : i32
    return %c0_i32, %c0_i32_0 : i32, i32
  }
  func.func @transform_11(%arg0: i32) -> (i32, i32) {
    %c0_i32 = arith.constant 0 : i32
    %c0_i32_0 = arith.constant 0 : i32
    %c0_i32_1 = arith.constant 0 : i32
    return %c0_i32, %c0_i32_0 : i32, i32
  }
  func.func @transform_12(%arg0: i32) -> (i32, i32) {
    %c0_i32 = arith.constant 0 : i32
    %c0_i32_0 = arith.constant 0 : i32
    %c0_i32_1 = arith.constant 0 : i32
    return %c0_i32, %c0_i32_0 : i32, i32
  }
  func.func @transform_13(%arg0: i32) -> (i32, i32, i32) {
    %c0_i32 = arith.constant 0 : i32
    %c0_i32_0 = arith.constant 0 : i32
    %c0_i32_1 = arith.constant 0 : i32
    return %arg0, %c0_i32, %c0_i32_0 : i32, i32, i32
  }
}

module attributes {stable_mosaic.version = 11 : i64} {
  func.func @encoder_kernel(%arg0: i32, %arg1: memref<2x16x128xf32, #tpu.memory_space<vmem>>, %arg2: memref<1x128xf32, #tpu.memory_space<vmem>>, %arg3: memref<1x128xf32, #tpu.memory_space<vmem>>, %arg4: memref<128x384xbf16, #tpu.memory_space<vmem>>, %arg5: memref<1x384xf32, #tpu.memory_space<vmem>>, %arg6: memref<128x128xbf16, #tpu.memory_space<vmem>>, %arg7: memref<1x128xf32, #tpu.memory_space<vmem>>, %arg8: memref<1x128xf32, #tpu.memory_space<vmem>>, %arg9: memref<1x128xf32, #tpu.memory_space<vmem>>, %arg10: memref<128x256xbf16, #tpu.memory_space<vmem>>, %arg11: memref<1x256xf32, #tpu.memory_space<vmem>>, %arg12: memref<256x128xbf16, #tpu.memory_space<vmem>>, %arg13: memref<1x128xf32, #tpu.memory_space<vmem>>, %arg14: memref<2x16x128xf32, #tpu.memory_space<vmem>>) attributes {dimension_semantics = [#tpu.dimension_semantics<parallel>], iteration_bounds = array<i64: 2>, scalar_prefetch = 0 : i64, scratch_operands = 0 : i64, tpu.core_type = #tpu.core_type<tc>, window_params = [{transform_indices = @transform_0, window_bounds = array<i64: 2, 16, 128>}, {pipeline_mode = #tpu.pipeline_mode<synchronous>, transform_indices = @transform_1, window_bounds = array<i64: 1, 128>}, {pipeline_mode = #tpu.pipeline_mode<synchronous>, transform_indices = @transform_2, window_bounds = array<i64: 1, 128>}, {pipeline_mode = #tpu.pipeline_mode<synchronous>, transform_indices = @transform_3, window_bounds = array<i64: 128, 384>}, {pipeline_mode = #tpu.pipeline_mode<synchronous>, transform_indices = @transform_4, window_bounds = array<i64: 1, 384>}, {pipeline_mode = #tpu.pipeline_mode<synchronous>, transform_indices = @transform_5, window_bounds = array<i64: 128, 128>}, {pipeline_mode = #tpu.pipeline_mode<synchronous>, transform_indices = @transform_6, window_bounds = array<i64: 1, 128>}, {pipeline_mode = #tpu.pipeline_mode<synchronous>, transform_indices = @transform_7, window_bounds = array<i64: 1, 128>}, {pipeline_mode = #tpu.pipeline_mode<synchronous>, transform_indices = @transform_8, window_bounds = array<i64: 1, 128>}, {pipeline_mode = #tpu.pipeline_mode<synchronous>, transform_indices = @transform_9, window_bounds = array<i64: 128, 256>}, {pipeline_mode = #tpu.pipeline_mode<synchronous>, transform_indices = @transform_10, window_bounds = array<i64: 1, 256>}, {pipeline_mode = #tpu.pipeline_mode<synchronous>, transform_indices = @transform_11, window_bounds = array<i64: 256, 128>}, {pipeline_mode = #tpu.pipeline_mode<synchronous>, transform_indices = @transform_12, window_bounds = array<i64: 1, 128>}, {transform_indices = @transform_13, window_bounds = array<i64: 2, 16, 128>}]} {
    %c0 = arith.constant 0 : index
    %c0_0 = arith.constant 0 : index
    %c0_1 = arith.constant 0 : index
    %0 = vector.load %arg1[%c0, %c0_0, %c0_1] : memref<2x16x128xf32, #tpu.memory_space<vmem>>, vector<2x16x128xf32>
    %1 = vector.shape_cast %0 : vector<2x16x128xf32> to vector<32x128xf32>
    %c0_2 = arith.constant 0 : index
    %c0_3 = arith.constant 0 : index
    %2 = vector.load %arg2[%c0_2, %c0_3] : memref<1x128xf32, #tpu.memory_space<vmem>>, vector<1x128xf32>
    %c0_4 = arith.constant 0 : index
    %c0_5 = arith.constant 0 : index
    %3 = vector.load %arg3[%c0_4, %c0_5] : memref<1x128xf32, #tpu.memory_space<vmem>>, vector<1x128xf32>
    %cst = arith.constant dense<0.000000e+00> : vector<32xf32>
    %4 = vector.multi_reduction <add>, %1, %cst [1] : vector<32x128xf32> to vector<32xf32>
    %5 = vector.shape_cast %4 : vector<32xf32> to vector<32x1xf32>
    %cst_6 = arith.constant 1.280000e+02 : f32
    %6 = vector.broadcast %cst_6 : f32 to vector<32x1xf32>
    %7 = arith.divf %5, %6 : vector<32x1xf32>
    %8 = vector.broadcast %7 : vector<32x1xf32> to vector<32x128xf32>
    %9 = arith.subf %1, %8 : vector<32x128xf32>
    %10 = arith.mulf %9, %9 : vector<32x128xf32>
    %cst_7 = arith.constant dense<0.000000e+00> : vector<32xf32>
    %11 = vector.multi_reduction <add>, %10, %cst_7 [1] : vector<32x128xf32> to vector<32xf32>
    %12 = vector.shape_cast %11 : vector<32xf32> to vector<32x1xf32>
    %cst_8 = arith.constant 1.280000e+02 : f32
    %13 = vector.broadcast %cst_8 : f32 to vector<32x1xf32>
    %14 = arith.divf %12, %13 : vector<32x1xf32>
    %15 = vector.broadcast %7 : vector<32x1xf32> to vector<32x128xf32>
    %16 = arith.subf %1, %15 : vector<32x128xf32>
    %cst_9 = arith.constant 9.99999974E-6 : f32
    %17 = vector.broadcast %cst_9 : f32 to vector<32x1xf32>
    %18 = arith.addf %14, %17 : vector<32x1xf32>
    %19 = math.rsqrt %18 : vector<32x1xf32>
    %20 = vector.broadcast %19 : vector<32x1xf32> to vector<32x128xf32>
    %21 = arith.mulf %16, %20 : vector<32x128xf32>
    %22 = vector.broadcast %2 : vector<1x128xf32> to vector<32x128xf32>
    %23 = arith.mulf %21, %22 : vector<32x128xf32>
    %24 = vector.broadcast %3 : vector<1x128xf32> to vector<32x128xf32>
    %25 = arith.addf %23, %24 : vector<32x128xf32>
    %26 = arith.truncf %25 : vector<32x128xf32> to vector<32x128xbf16>
    %c0_10 = arith.constant 0 : index
    %c0_11 = arith.constant 0 : index
    %27 = vector.load %arg4[%c0_10, %c0_11] : memref<128x384xbf16, #tpu.memory_space<vmem>>, vector<128x384xbf16>
    %cst_12 = arith.constant dense<0.000000e+00> : vector<32x384xf32>
    %28 = tpu.matmul %26, %27, %cst_12 {dimension_numbers = #tpu.dot_dimension_numbers<[1], [0], [0], [1], [0, 0, 1, 1], [], []>} : vector<32x128xbf16>, vector<128x384xbf16>, vector<32x384xf32> -> vector<32x384xf32>
    %c0_13 = arith.constant 0 : index
    %c0_14 = arith.constant 0 : index
    %29 = vector.load %arg5[%c0_13, %c0_14] : memref<1x384xf32, #tpu.memory_space<vmem>>, vector<1x384xf32>
    %30 = vector.broadcast %29 : vector<1x384xf32> to vector<32x384xf32>
    %31 = arith.addf %28, %30 : vector<32x384xf32>
    %32 = vector.extract_strided_slice %31 {offsets = [0, 0], sizes = [32, 128], strides = [1, 1]} : vector<32x384xf32> to vector<32x128xf32>
    %33 = vector.shape_cast %32 : vector<32x128xf32> to vector<2x16x128xf32>
    %34 = arith.truncf %33 : vector<2x16x128xf32> to vector<2x16x128xbf16>
    %35 = vector.extract_strided_slice %31 {offsets = [0, 128], sizes = [32, 128], strides = [1, 1]} : vector<32x384xf32> to vector<32x128xf32>
    %36 = vector.shape_cast %35 : vector<32x128xf32> to vector<2x16x128xf32>
    %37 = arith.truncf %36 : vector<2x16x128xf32> to vector<2x16x128xbf16>
    %38 = vector.extract_strided_slice %31 {offsets = [0, 256], sizes = [32, 128], strides = [1, 1]} : vector<32x384xf32> to vector<32x128xf32>
    %39 = vector.shape_cast %38 : vector<32x128xf32> to vector<2x16x128xf32>
    %40 = arith.truncf %39 : vector<2x16x128xf32> to vector<2x16x128xbf16>
    %c0_15 = arith.constant 0 : index
    %c0_16 = arith.constant 0 : index
    %41 = vector.load %arg6[%c0_15, %c0_16] : memref<128x128xbf16, #tpu.memory_space<vmem>>, vector<128x128xbf16>
    %cst_17 = arith.constant 0.000000e+00 : f32
    %42 = vector.broadcast %cst_17 : f32 to vector<32x128xf32>
    %c0_18 = arith.constant 0 : index
    %c0_19 = arith.constant 0 : index
    %43 = vector.load %arg7[%c0_18, %c0_19] : memref<1x128xf32, #tpu.memory_space<vmem>>, vector<1x128xf32>
    %44 = vector.broadcast %43 : vector<1x128xf32> to vector<32x128xf32>
    %45 = arith.addf %42, %44 : vector<32x128xf32>
    %46 = vector.extract_strided_slice %34 {offsets = [0, 0, 0], sizes = [2, 16, 32], strides = [1, 1, 1]} : vector<2x16x128xbf16> to vector<2x16x32xbf16>
    %47 = vector.extract_strided_slice %37 {offsets = [0, 0, 0], sizes = [2, 16, 32], strides = [1, 1, 1]} : vector<2x16x128xbf16> to vector<2x16x32xbf16>
    "tpu.trace_start"() <{level = 10 : i32, message = "bqd,bkd->bqk"}> : () -> ()
    %cst_20 = arith.constant dense<0.000000e+00> : vector<2x16x16xf32>
    %48 = tpu.matmul %46, %47, %cst_20 {dimension_numbers = #tpu.dot_dimension_numbers<[2], [2], [1], [1], [0, 0, 0, 1, 1, 1], [0], [0]>} : vector<2x16x32xbf16>, vector<2x16x32xbf16>, vector<2x16x16xf32> -> vector<2x16x16xf32>
    "tpu.trace_stop"() : () -> ()
    %cst_21 = arith.constant dense<0xFF800000> : vector<2x16xf32>
    %49 = vector.multi_reduction <maximumf>, %48, %cst_21 [2] : vector<2x16x16xf32> to vector<2x16xf32>
    %50 = vector.shape_cast %49 : vector<2x16xf32> to vector<2x16x1xf32>
    %51 = vector.broadcast %50 : vector<2x16x1xf32> to vector<2x16x16xf32>
    %52 = arith.subf %48, %51 : vector<2x16x16xf32>
    %53 = math.exp %52 : vector<2x16x16xf32>
    %cst_22 = arith.constant dense<0.000000e+00> : vector<2x16xf32>
    %54 = vector.multi_reduction <add>, %53, %cst_22 [2] : vector<2x16x16xf32> to vector<2x16xf32>
    %55 = vector.shape_cast %54 : vector<2x16xf32> to vector<2x16x1xf32>
    %56 = tpu.reciprocal %55 {approx = true} : vector<2x16x1xf32> -> vector<2x16x1xf32>
    %57 = vector.broadcast %56 : vector<2x16x1xf32> to vector<2x16x16xf32>
    %58 = arith.mulf %53, %57 : vector<2x16x16xf32>
    %59 = arith.truncf %58 : vector<2x16x16xf32> to vector<2x16x16xbf16>
    %60 = vector.extract_strided_slice %40 {offsets = [0, 0, 0], sizes = [2, 16, 32], strides = [1, 1, 1]} : vector<2x16x128xbf16> to vector<2x16x32xbf16>
    "tpu.trace_start"() <{level = 10 : i32, message = "bqk,bkd->bqd"}> : () -> ()
    %cst_23 = arith.constant dense<0.000000e+00> : vector<2x16x32xf32>
    %61 = tpu.matmul %59, %60, %cst_23 {dimension_numbers = #tpu.dot_dimension_numbers<[2], [1], [1], [2], [0, 0, 0, 1, 1, 2], [0], [0]>} : vector<2x16x16xbf16>, vector<2x16x32xbf16>, vector<2x16x32xf32> -> vector<2x16x32xf32>
    "tpu.trace_stop"() : () -> ()
    %62 = vector.shape_cast %61 : vector<2x16x32xf32> to vector<32x32xf32>
    %63 = arith.truncf %62 : vector<32x32xf32> to vector<32x32xbf16>
    %64 = vector.extract_strided_slice %41 {offsets = [0, 0], sizes = [32, 128], strides = [1, 1]} : vector<128x128xbf16> to vector<32x128xbf16>
    %cst_24 = arith.constant dense<0.000000e+00> : vector<32x128xf32>
    %65 = tpu.matmul %63, %64, %cst_24 {dimension_numbers = #tpu.dot_dimension_numbers<[1], [0], [0], [1], [0, 0, 1, 1], [], []>} : vector<32x32xbf16>, vector<32x128xbf16>, vector<32x128xf32> -> vector<32x128xf32>
    %66 = arith.addf %45, %65 : vector<32x128xf32>
    %67 = vector.extract_strided_slice %34 {offsets = [0, 0, 32], sizes = [2, 16, 32], strides = [1, 1, 1]} : vector<2x16x128xbf16> to vector<2x16x32xbf16>
    %68 = vector.extract_strided_slice %37 {offsets = [0, 0, 32], sizes = [2, 16, 32], strides = [1, 1, 1]} : vector<2x16x128xbf16> to vector<2x16x32xbf16>
    "tpu.trace_start"() <{level = 10 : i32, message = "bqd,bkd->bqk"}> : () -> ()
    %cst_25 = arith.constant dense<0.000000e+00> : vector<2x16x16xf32>
    %69 = tpu.matmul %67, %68, %cst_25 {dimension_numbers = #tpu.dot_dimension_numbers<[2], [2], [1], [1], [0, 0, 0, 1, 1, 1], [0], [0]>} : vector<2x16x32xbf16>, vector<2x16x32xbf16>, vector<2x16x16xf32> -> vector<2x16x16xf32>
    "tpu.trace_stop"() : () -> ()
    %cst_26 = arith.constant dense<0xFF800000> : vector<2x16xf32>
    %70 = vector.multi_reduction <maximumf>, %69, %cst_26 [2] : vector<2x16x16xf32> to vector<2x16xf32>
    %71 = vector.shape_cast %70 : vector<2x16xf32> to vector<2x16x1xf32>
    %72 = vector.broadcast %71 : vector<2x16x1xf32> to vector<2x16x16xf32>
    %73 = arith.subf %69, %72 : vector<2x16x16xf32>
    %74 = math.exp %73 : vector<2x16x16xf32>
    %cst_27 = arith.constant dense<0.000000e+00> : vector<2x16xf32>
    %75 = vector.multi_reduction <add>, %74, %cst_27 [2] : vector<2x16x16xf32> to vector<2x16xf32>
    %76 = vector.shape_cast %75 : vector<2x16xf32> to vector<2x16x1xf32>
    %77 = tpu.reciprocal %76 {approx = true} : vector<2x16x1xf32> -> vector<2x16x1xf32>
    %78 = vector.broadcast %77 : vector<2x16x1xf32> to vector<2x16x16xf32>
    %79 = arith.mulf %74, %78 : vector<2x16x16xf32>
    %80 = arith.truncf %79 : vector<2x16x16xf32> to vector<2x16x16xbf16>
    %81 = vector.extract_strided_slice %40 {offsets = [0, 0, 32], sizes = [2, 16, 32], strides = [1, 1, 1]} : vector<2x16x128xbf16> to vector<2x16x32xbf16>
    "tpu.trace_start"() <{level = 10 : i32, message = "bqk,bkd->bqd"}> : () -> ()
    %cst_28 = arith.constant dense<0.000000e+00> : vector<2x16x32xf32>
    %82 = tpu.matmul %80, %81, %cst_28 {dimension_numbers = #tpu.dot_dimension_numbers<[2], [1], [1], [2], [0, 0, 0, 1, 1, 2], [0], [0]>} : vector<2x16x16xbf16>, vector<2x16x32xbf16>, vector<2x16x32xf32> -> vector<2x16x32xf32>
    "tpu.trace_stop"() : () -> ()
    %83 = vector.shape_cast %82 : vector<2x16x32xf32> to vector<32x32xf32>
    %84 = arith.truncf %83 : vector<32x32xf32> to vector<32x32xbf16>
    %85 = vector.extract_strided_slice %41 {offsets = [32, 0], sizes = [32, 128], strides = [1, 1]} : vector<128x128xbf16> to vector<32x128xbf16>
    %cst_29 = arith.constant dense<0.000000e+00> : vector<32x128xf32>
    %86 = tpu.matmul %84, %85, %cst_29 {dimension_numbers = #tpu.dot_dimension_numbers<[1], [0], [0], [1], [0, 0, 1, 1], [], []>} : vector<32x32xbf16>, vector<32x128xbf16>, vector<32x128xf32> -> vector<32x128xf32>
    %87 = arith.addf %66, %86 : vector<32x128xf32>
    %88 = vector.extract_strided_slice %34 {offsets = [0, 0, 64], sizes = [2, 16, 32], strides = [1, 1, 1]} : vector<2x16x128xbf16> to vector<2x16x32xbf16>
    %89 = vector.extract_strided_slice %37 {offsets = [0, 0, 64], sizes = [2, 16, 32], strides = [1, 1, 1]} : vector<2x16x128xbf16> to vector<2x16x32xbf16>
    "tpu.trace_start"() <{level = 10 : i32, message = "bqd,bkd->bqk"}> : () -> ()
    %cst_30 = arith.constant dense<0.000000e+00> : vector<2x16x16xf32>
    %90 = tpu.matmul %88, %89, %cst_30 {dimension_numbers = #tpu.dot_dimension_numbers<[2], [2], [1], [1], [0, 0, 0, 1, 1, 1], [0], [0]>} : vector<2x16x32xbf16>, vector<2x16x32xbf16>, vector<2x16x16xf32> -> vector<2x16x16xf32>
    "tpu.trace_stop"() : () -> ()
    %cst_31 = arith.constant dense<0xFF800000> : vector<2x16xf32>
    %91 = vector.multi_reduction <maximumf>, %90, %cst_31 [2] : vector<2x16x16xf32> to vector<2x16xf32>
    %92 = vector.shape_cast %91 : vector<2x16xf32> to vector<2x16x1xf32>
    %93 = vector.broadcast %92 : vector<2x16x1xf32> to vector<2x16x16xf32>
    %94 = arith.subf %90, %93 : vector<2x16x16xf32>
    %95 = math.exp %94 : vector<2x16x16xf32>
    %cst_32 = arith.constant dense<0.000000e+00> : vector<2x16xf32>
    %96 = vector.multi_reduction <add>, %95, %cst_32 [2] : vector<2x16x16xf32> to vector<2x16xf32>
    %97 = vector.shape_cast %96 : vector<2x16xf32> to vector<2x16x1xf32>
    %98 = tpu.reciprocal %97 {approx = true} : vector<2x16x1xf32> -> vector<2x16x1xf32>
    %99 = vector.broadcast %98 : vector<2x16x1xf32> to vector<2x16x16xf32>
    %100 = arith.mulf %95, %99 : vector<2x16x16xf32>
    %101 = arith.truncf %100 : vector<2x16x16xf32> to vector<2x16x16xbf16>
    %102 = vector.extract_strided_slice %40 {offsets = [0, 0, 64], sizes = [2, 16, 32], strides = [1, 1, 1]} : vector<2x16x128xbf16> to vector<2x16x32xbf16>
    "tpu.trace_start"() <{level = 10 : i32, message = "bqk,bkd->bqd"}> : () -> ()
    %cst_33 = arith.constant dense<0.000000e+00> : vector<2x16x32xf32>
    %103 = tpu.matmul %101, %102, %cst_33 {dimension_numbers = #tpu.dot_dimension_numbers<[2], [1], [1], [2], [0, 0, 0, 1, 1, 2], [0], [0]>} : vector<2x16x16xbf16>, vector<2x16x32xbf16>, vector<2x16x32xf32> -> vector<2x16x32xf32>
    "tpu.trace_stop"() : () -> ()
    %104 = vector.shape_cast %103 : vector<2x16x32xf32> to vector<32x32xf32>
    %105 = arith.truncf %104 : vector<32x32xf32> to vector<32x32xbf16>
    %106 = vector.extract_strided_slice %41 {offsets = [64, 0], sizes = [32, 128], strides = [1, 1]} : vector<128x128xbf16> to vector<32x128xbf16>
    %cst_34 = arith.constant dense<0.000000e+00> : vector<32x128xf32>
    %107 = tpu.matmul %105, %106, %cst_34 {dimension_numbers = #tpu.dot_dimension_numbers<[1], [0], [0], [1], [0, 0, 1, 1], [], []>} : vector<32x32xbf16>, vector<32x128xbf16>, vector<32x128xf32> -> vector<32x128xf32>
    %108 = arith.addf %87, %107 : vector<32x128xf32>
    %109 = vector.extract_strided_slice %34 {offsets = [0, 0, 96], sizes = [2, 16, 32], strides = [1, 1, 1]} : vector<2x16x128xbf16> to vector<2x16x32xbf16>
    %110 = vector.extract_strided_slice %37 {offsets = [0, 0, 96], sizes = [2, 16, 32], strides = [1, 1, 1]} : vector<2x16x128xbf16> to vector<2x16x32xbf16>
    "tpu.trace_start"() <{level = 10 : i32, message = "bqd,bkd->bqk"}> : () -> ()
    %cst_35 = arith.constant dense<0.000000e+00> : vector<2x16x16xf32>
    %111 = tpu.matmul %109, %110, %cst_35 {dimension_numbers = #tpu.dot_dimension_numbers<[2], [2], [1], [1], [0, 0, 0, 1, 1, 1], [0], [0]>} : vector<2x16x32xbf16>, vector<2x16x32xbf16>, vector<2x16x16xf32> -> vector<2x16x16xf32>
    "tpu.trace_stop"() : () -> ()
    %cst_36 = arith.constant dense<0xFF800000> : vector<2x16xf32>
    %112 = vector.multi_reduction <maximumf>, %111, %cst_36 [2] : vector<2x16x16xf32> to vector<2x16xf32>
    %113 = vector.shape_cast %112 : vector<2x16xf32> to vector<2x16x1xf32>
    %114 = vector.broadcast %113 : vector<2x16x1xf32> to vector<2x16x16xf32>
    %115 = arith.subf %111, %114 : vector<2x16x16xf32>
    %116 = math.exp %115 : vector<2x16x16xf32>
    %cst_37 = arith.constant dense<0.000000e+00> : vector<2x16xf32>
    %117 = vector.multi_reduction <add>, %116, %cst_37 [2] : vector<2x16x16xf32> to vector<2x16xf32>
    %118 = vector.shape_cast %117 : vector<2x16xf32> to vector<2x16x1xf32>
    %119 = tpu.reciprocal %118 {approx = true} : vector<2x16x1xf32> -> vector<2x16x1xf32>
    %120 = vector.broadcast %119 : vector<2x16x1xf32> to vector<2x16x16xf32>
    %121 = arith.mulf %116, %120 : vector<2x16x16xf32>
    %122 = arith.truncf %121 : vector<2x16x16xf32> to vector<2x16x16xbf16>
    %123 = vector.extract_strided_slice %40 {offsets = [0, 0, 96], sizes = [2, 16, 32], strides = [1, 1, 1]} : vector<2x16x128xbf16> to vector<2x16x32xbf16>
    "tpu.trace_start"() <{level = 10 : i32, message = "bqk,bkd->bqd"}> : () -> ()
    %cst_38 = arith.constant dense<0.000000e+00> : vector<2x16x32xf32>
    %124 = tpu.matmul %122, %123, %cst_38 {dimension_numbers = #tpu.dot_dimension_numbers<[2], [1], [1], [2], [0, 0, 0, 1, 1, 2], [0], [0]>} : vector<2x16x16xbf16>, vector<2x16x32xbf16>, vector<2x16x32xf32> -> vector<2x16x32xf32>
    "tpu.trace_stop"() : () -> ()
    %125 = vector.shape_cast %124 : vector<2x16x32xf32> to vector<32x32xf32>
    %126 = arith.truncf %125 : vector<32x32xf32> to vector<32x32xbf16>
    %127 = vector.extract_strided_slice %41 {offsets = [96, 0], sizes = [32, 128], strides = [1, 1]} : vector<128x128xbf16> to vector<32x128xbf16>
    %cst_39 = arith.constant dense<0.000000e+00> : vector<32x128xf32>
    %128 = tpu.matmul %126, %127, %cst_39 {dimension_numbers = #tpu.dot_dimension_numbers<[1], [0], [0], [1], [0, 0, 1, 1], [], []>} : vector<32x32xbf16>, vector<32x128xbf16>, vector<32x128xf32> -> vector<32x128xf32>
    %129 = arith.addf %108, %128 : vector<32x128xf32>
    %130 = arith.addf %1, %129 : vector<32x128xf32>
    %c0_40 = arith.constant 0 : index
    %c0_41 = arith.constant 0 : index
    %131 = vector.load %arg8[%c0_40, %c0_41] : memref<1x128xf32, #tpu.memory_space<vmem>>, vector<1x128xf32>
    %c0_42 = arith.constant 0 : index
    %c0_43 = arith.constant 0 : index
    %132 = vector.load %arg9[%c0_42, %c0_43] : memref<1x128xf32, #tpu.memory_space<vmem>>, vector<1x128xf32>
    %cst_44 = arith.constant dense<0.000000e+00> : vector<32xf32>
    %133 = vector.multi_reduction <add>, %130, %cst_44 [1] : vector<32x128xf32> to vector<32xf32>
    %134 = vector.shape_cast %133 : vector<32xf32> to vector<32x1xf32>
    %cst_45 = arith.constant 1.280000e+02 : f32
    %135 = vector.broadcast %cst_45 : f32 to vector<32x1xf32>
    %136 = arith.divf %134, %135 : vector<32x1xf32>
    %137 = vector.broadcast %136 : vector<32x1xf32> to vector<32x128xf32>
    %138 = arith.subf %130, %137 : vector<32x128xf32>
    %139 = arith.mulf %138, %138 : vector<32x128xf32>
    %cst_46 = arith.constant dense<0.000000e+00> : vector<32xf32>
    %140 = vector.multi_reduction <add>, %139, %cst_46 [1] : vector<32x128xf32> to vector<32xf32>
    %141 = vector.shape_cast %140 : vector<32xf32> to vector<32x1xf32>
    %cst_47 = arith.constant 1.280000e+02 : f32
    %142 = vector.broadcast %cst_47 : f32 to vector<32x1xf32>
    %143 = arith.divf %141, %142 : vector<32x1xf32>
    %144 = vector.broadcast %136 : vector<32x1xf32> to vector<32x128xf32>
    %145 = arith.subf %130, %144 : vector<32x128xf32>
    %cst_48 = arith.constant 9.99999974E-6 : f32
    %146 = vector.broadcast %cst_48 : f32 to vector<32x1xf32>
    %147 = arith.addf %143, %146 : vector<32x1xf32>
    %148 = math.rsqrt %147 : vector<32x1xf32>
    %149 = vector.broadcast %148 : vector<32x1xf32> to vector<32x128xf32>
    %150 = arith.mulf %145, %149 : vector<32x128xf32>
    %151 = vector.broadcast %131 : vector<1x128xf32> to vector<32x128xf32>
    %152 = arith.mulf %150, %151 : vector<32x128xf32>
    %153 = vector.broadcast %132 : vector<1x128xf32> to vector<32x128xf32>
    %154 = arith.addf %152, %153 : vector<32x128xf32>
    %155 = arith.truncf %154 : vector<32x128xf32> to vector<32x128xbf16>
    %c0_49 = arith.constant 0 : index
    %c0_50 = arith.constant 0 : index
    %156 = vector.load %arg10[%c0_49, %c0_50] : memref<128x256xbf16, #tpu.memory_space<vmem>>, vector<128x256xbf16>
    %cst_51 = arith.constant dense<0.000000e+00> : vector<32x256xf32>
    %157 = tpu.matmul %155, %156, %cst_51 {dimension_numbers = #tpu.dot_dimension_numbers<[1], [0], [0], [1], [0, 0, 1, 1], [], []>} : vector<32x128xbf16>, vector<128x256xbf16>, vector<32x256xf32> -> vector<32x256xf32>
    %c0_52 = arith.constant 0 : index
    %c0_53 = arith.constant 0 : index
    %158 = vector.load %arg11[%c0_52, %c0_53] : memref<1x256xf32, #tpu.memory_space<vmem>>, vector<1x256xf32>
    %159 = vector.broadcast %158 : vector<1x256xf32> to vector<32x256xf32>
    %160 = arith.addf %157, %159 : vector<32x256xf32>
    %cst_54 = arith.constant 5.000000e-01 : f32
    %161 = vector.broadcast %cst_54 : f32 to vector<32x256xf32>
    %162 = arith.mulf %161, %160 : vector<32x256xf32>
    %cst_55 = arith.constant 0.707106769 : f32
    %163 = vector.broadcast %cst_55 : f32 to vector<32x256xf32>
    %164 = arith.mulf %160, %163 : vector<32x256xf32>
    %165 = math.erf %164 : vector<32x256xf32>
    %cst_56 = arith.constant 1.000000e+00 : f32
    %166 = vector.broadcast %cst_56 : f32 to vector<32x256xf32>
    %167 = arith.addf %166, %165 : vector<32x256xf32>
    %168 = arith.mulf %162, %167 : vector<32x256xf32>
    %169 = arith.truncf %168 : vector<32x256xf32> to vector<32x256xbf16>
    %c0_57 = arith.constant 0 : index
    %c0_58 = arith.constant 0 : index
    %170 = vector.load %arg12[%c0_57, %c0_58] : memref<256x128xbf16, #tpu.memory_space<vmem>>, vector<256x128xbf16>
    %cst_59 = arith.constant dense<0.000000e+00> : vector<32x128xf32>
    %171 = tpu.matmul %169, %170, %cst_59 {dimension_numbers = #tpu.dot_dimension_numbers<[1], [0], [0], [1], [0, 0, 1, 1], [], []>} : vector<32x256xbf16>, vector<256x128xbf16>, vector<32x128xf32> -> vector<32x128xf32>
    %c0_60 = arith.constant 0 : index
    %c0_61 = arith.constant 0 : index
    %172 = vector.load %arg13[%c0_60, %c0_61] : memref<1x128xf32, #tpu.memory_space<vmem>>, vector<1x128xf32>
    %173 = vector.broadcast %172 : vector<1x128xf32> to vector<32x128xf32>
    %174 = arith.addf %171, %173 : vector<32x128xf32>
    %175 = arith.addf %130, %174 : vector<32x128xf32>
    %176 = vector.shape_cast %175 : vector<32x128xf32> to vector<2x16x128xf32>
    %c0_62 = arith.constant 0 : index
    %c0_63 = arith.constant 0 : index
    %c0_64 = arith.constant 0 : index
    %177 = vector.load %arg14[%c0_62, %c0_63, %c0_64] : memref<2x16x128xf32, #tpu.memory_space<vmem>>, vector<2x16x128xf32>
    tpu.vector_store %arg14[%c0_62, %c0_63, %c0_64], %176 {strides = array<i32>} : memref<2x16x128xf32, #tpu.memory_space<vmem>>, vector<2x16x128xf32>,
    return
  }
  func.func @transform_0(%arg0: i32) -> (i32, i32, i32) {
    %c0_i32 = arith.constant 0 : i32
    %c0_i32_0 = arith.constant 0 : i32
    %c0_i32_1 = arith.constant 0 : i32
    return %arg0, %c0_i32, %c0_i32_0 : i32, i32, i32
  }
  func.func @transform_1(%arg0: i32) -> (i32, i32) {
    %c0_i32 = arith.constant 0 : i32
    %c0_i32_0 = arith.constant 0 : i32
    %c0_i32_1 = arith.constant 0 : i32
    return %c0_i32, %c0_i32_0 : i32, i32
  }
  func.func @transform_2(%arg0: i32) -> (i32, i32) {
    %c0_i32 = arith.constant 0 : i32
    %c0_i32_0 = arith.constant 0 : i32
    %c0_i32_1 = arith.constant 0 : i32
    return %c0_i32, %c0_i32_0 : i32, i32
  }
  func.func @transform_3(%arg0: i32) -> (i32, i32) {
    %c0_i32 = arith.constant 0 : i32
    %c0_i32_0 = arith.constant 0 : i32
    %c0_i32_1 = arith.constant 0 : i32
    return %c0_i32, %c0_i32_0 : i32, i32
  }
  func.func @transform_4(%arg0: i32) -> (i32, i32) {
    %c0_i32 = arith.constant 0 : i32
    %c0_i32_0 = arith.constant 0 : i32
    %c0_i32_1 = arith.constant 0 : i32
    return %c0_i32, %c0_i32_0 : i32, i32
  }
  func.func @transform_5(%arg0: i32) -> (i32, i32) {
    %c0_i32 = arith.constant 0 : i32
    %c0_i32_0 = arith.constant 0 : i32
    %c0_i32_1 = arith.constant 0 : i32
    return %c0_i32, %c0_i32_0 : i32, i32
  }
  func.func @transform_6(%arg0: i32) -> (i32, i32) {
    %c0_i32 = arith.constant 0 : i32
    %c0_i32_0 = arith.constant 0 : i32
    %c0_i32_1 = arith.constant 0 : i32
    return %c0_i32, %c0_i32_0 : i32, i32
  }
  func.func @transform_7(%arg0: i32) -> (i32, i32) {
    %c0_i32 = arith.constant 0 : i32
    %c0_i32_0 = arith.constant 0 : i32
    %c0_i32_1 = arith.constant 0 : i32
    return %c0_i32, %c0_i32_0 : i32, i32
  }
  func.func @transform_8(%arg0: i32) -> (i32, i32) {
    %c0_i32 = arith.constant 0 : i32
    %c0_i32_0 = arith.constant 0 : i32
    %c0_i32_1 = arith.constant 0 : i32
    return %c0_i32, %c0_i32_0 : i32, i32
  }
  func.func @transform_9(%arg0: i32) -> (i32, i32) {
    %c0_i32 = arith.constant 0 : i32
    %c0_i32_0 = arith.constant 0 : i32
    %c0_i32_1 = arith.constant 0 : i32
    return %c0_i32, %c0_i32_0 : i32, i32
  }
  func.func @transform_10(%arg0: i32) -> (i32, i32) {
    %c0_i32 = arith.constant 0 : i32
    %c0_i32_0 = arith.constant 0 : i32
    %c0_i32_1 = arith.constant 0 : i32
    return %c0_i32, %c0_i32_0 : i32, i32
  }
  func.func @transform_11(%arg0: i32) -> (i32, i32) {
    %c0_i32 = arith.constant 0 : i32
    %c0_i32_0 = arith.constant 0 : i32
    %c0_i32_1 = arith.constant 0 : i32
    return %c0_i32, %c0_i32_0 : i32, i32
  }
  func.func @transform_12(%arg0: i32) -> (i32, i32) {
    %c0_i32 = arith.constant 0 : i32
    %c0_i32_0 = arith.constant 0 : i32
    %c0_i32_1 = arith.constant 0 : i32
    return %c0_i32, %c0_i32_0 : i32, i32
  }
  func.func @transform_13(%arg0: i32) -> (i32, i32, i32) {
    %c0_i32 = arith.constant 0 : i32
    %c0_i32_0 = arith.constant 0 : i32
    %c0_i32_1 = arith.constant 0 : i32
    return %arg0, %c0_i32, %c0_i32_0 : i32, i32, i32
  }
}

</mosaic_0001>

<llo_original>
// kernel: tpu_custom_call.1
$region0: #{tpu_custom_call.1}
  #allocation0 [shape = 'u32[]', space=smem, size = 0x4, offset = 0x4, fixed_abs, tag = 'smem constant byte address 0x4 - core index']
  #allocation1 [shape = 'u32[72,128]{1,0:T(1,128)}', space=vmem, size = 0x9000, scoped, tag = 'internal scratch']
  %s0 = inlined_call_operand.hbm [shape: f32[4,16,128], index: 0, kind: input, shape index: {}]
  %s1 = inlined_call_operand.hbm [shape: f32[1,128], index: 1, kind: input, shape index: {}]
  %s2 = inlined_call_operand.hbm [shape: f32[1,128], index: 2, kind: input, shape index: {}]
  %s3 = inlined_call_operand.hbm [shape: bf16[128,384], index: 3, kind: input, shape index: {}]
  %s4 = inlined_call_operand.vmem [shape: f32[1,384], index: 4, kind: input, shape index: {}]
  %s5 = inlined_call_operand.hbm [shape: bf16[128,128], index: 5, kind: input, shape index: {}]
  %s6 = inlined_call_operand.hbm [shape: f32[1,128], index: 6, kind: input, shape index: {}]
  %s7 = inlined_call_operand.vmem [shape: f32[1,128], index: 7, kind: input, shape index: {}]
  %s8 = inlined_call_operand.vmem [shape: f32[1,128], index: 8, kind: input, shape index: {}]
  %s9 = inlined_call_operand.hbm [shape: bf16[128,256], index: 9, kind: input, shape index: {}]
  %s10 = inlined_call_operand.vmem [shape: f32[1,256], index: 10, kind: input, shape index: {}]
  %s11 = inlined_call_operand.hbm [shape: bf16[256,128], index: 11, kind: input, shape index: {}]
  %s12 = inlined_call_operand.vmem [shape: f32[1,128], index: 12, kind: input, shape index: {}]
  %s13 = inlined_call_operand.hbm [shape: f32[4,16,128], index: 13, kind: output, shape index: {}]
  %s14 = sld [smem:[#allocation0]]
  $region117: #{tpu_custom_call.1} parent=0
    _
  %s16 = ssub.s32 1, %s14
  %s17 = scalar_select 0, %s16, %s14
  $region1: #{tpu_custom_call.1} parent=0
    #allocation2 [shape = 'u8[32768]{0}', space=vmem, size = 0x8000, scoped, tag = 'input window, operand 0']
    #allocation3 [shape = 's32[2]{0}', space=sflag, size = 0x8, scoped, tag = 'scoped memory for tpu_custom_call.1']
    #allocation4 [shape = 's32[2]{0}', space=sflag, size = 0x8, scoped, tag = 'scoped memory for tpu_custom_call.1']
    #allocation5 [shape = 'u8[512]{0}', space=vmem, size = 0x400, scoped, tag = 'input window, operand 1, single buffered']
    #allocation6 [shape = 's32[1]{0}', space=sflag, size = 0x4, scoped, tag = 'scoped memory for tpu_custom_call.1']
    #allocation7 [shape = 'u8[512]{0}', space=vmem, size = 0x400, scoped, tag = 'input window, operand 2, single buffered']
    #allocation8 [shape = 'u8[98304]{0}', space=vmem, size = 0x18000, scoped, tag = 'input window, operand 3, single buffered']
    #allocation9 [shape = 's32[1]{0}', space=sflag, size = 0x4, scoped, tag = 'scoped memory for tpu_custom_call.1']
    #allocation10 [shape = 'u8[32768]{0}', space=vmem, size = 0x8000, scoped, tag = 'input window, operand 5, single buffered']
    #allocation11 [shape = 'u8[512]{0}', space=vmem, size = 0x400, scoped, tag = 'input window, operand 6, single buffered']
    #allocation12 [shape = 's32[1]{0}', space=sflag, size = 0x4, scoped, tag = 'scoped memory for tpu_custom_call.1']
    #allocation13 [shape = 'u8[65536]{0}', space=vmem, size = 0x10000, scoped, tag = 'input window, operand 9, single buffered']
    #allocation14 [shape = 'u8[65536]{0}', space=vmem, size = 0x10000, scoped, tag = 'input window, operand 11, single buffered']
    #allocation15 [shape = 's32[1]{0}', space=sflag, size = 0x4, scoped, tag = 'scoped memory for tpu_custom_call.1']
    #allocation16 [shape = 'u8[32768]{0}', space=vmem, size = 0x8000, scoped, tag = 'output window, operand 0']
    %18 = vsyncpa [#allocation3], 0
    %s19 = scalar_lea.sflag [#allocation3], 1
    %20 = vsyncpa %s19, 0
    %21 = vsyncpa [#allocation6], 0
    %22 = vsyncpa [#allocation9], 0
    %23 = vsyncpa [#allocation12], 0
    %24 = vsyncpa [#allocation15], 0
    %25 = vsyncpa [#allocation4], 0
    %s26 = scalar_lea.sflag [#allocation4], 1
    %27 = vsyncpa %s26, 0
    loop: start=0, step=1, limit=4
    $region2: #{tpu_custom_call.1} parent=1 // loop_pre_header
      _
    $region3: #{tpu_custom_call.1} parent=1 // loop_header
      %s29 = sphi 0, %s33
      %p30 = scmp.ge.s32.totalorder %s29, 4
      %s39 = sphi 0, %s41
      %s42 = sphi 0, %s39
      %s43 = sphi 0, %s42
      %s59 = sphi 0, %s43
      %s63 = sphi 0, %s63
      %s65 = sphi 0, %s63
      %s66 = sphi 0, %s65
      %s80 = sphi 0, %s66
      %s84 = sphi 0, %s84
      %s86 = sphi 0, %s84
      %s87 = sphi 0, %s86
      %s101 = sphi 0, %s87
      %s105 = sphi 0, %s105
      %s107 = sphi 0, %s105
      %s108 = sphi 0, %s107
      %s122 = sphi 0, %s108
      %s126 = sphi 0, %s126
      %s128 = sphi 0, %s126
      %s129 = sphi 0, %s128
      %s143 = sphi 0, %s129
      %s147 = sphi 0, %s147
      %s149 = sphi 0, %s147
      %s150 = sphi 0, %s149
      %s164 = sphi 0, %s150
      %s168 = sphi 0, %s168
      %s170 = sphi 0, %s168
      %s171 = sphi 0, %s170
      %s185 = sphi 0, %s171
      %s189 = sphi 0, %s189
      %s191 = sphi 0, %s189
      %s192 = sphi 0, %s191
      %s206 = sphi 0, %s192
      %s210 = sphi 0, %s210
      %s212 = sphi 0, %s210
      %s213 = sphi 0, %s212
      %s227 = sphi 0, %s213
      %s231 = sphi 0, %s231
      %s233 = sphi 0, %s231
      %s234 = sphi 0, %s233
      %s248 = sphi 0, %s234
      %s252 = sphi 0, %s252
      %s254 = sphi 0, %s252
      %s255 = sphi 0, %s254
      %s269 = sphi 0, %s255
      %s273 = sphi 0, %s273
      %s275 = sphi 0, %s273
      %s276 = sphi 0, %s275
      %s290 = sphi 0, %s276
      %s294 = sphi 0, %s294
      %s296 = sphi 0, %s294
      %s297 = sphi 0, %s296
      %s311 = sphi 0, %s297
      %s317 = sphi 0, %s319
      %s320 = sphi 0, %s317
      %s321 = sphi 0, %s320
      %s337 = sphi 0, %s321
    $region4: #{tpu_custom_call.1} parent=1 // loop_header_branch
      %32 = sbr.rel (%p30) target = $region8
    $region5: #{tpu_custom_call.1} parent=1 // loop_body
      %s34 = ssub.s32 %s29, 1
      %s35 = ssub.s32 %s29, 2
      %s36 = sadd.s32 %s29, 1
      %s37 = ssub.s32 %s29, %s36
      %p38 = scmp.eq.s32.totalorder %s37, 0
      %s40 = sadd.s32 %s39, 1
      %s41 = scalar_select %p38, %s39, %s40
      %p44 = pneg %p38
      %p45 = scmp.eq.s32.totalorder %s29, 1
      %p46 = por %p44, %p45
      %p47 = scmp.ne.s32.totalorder %s39, %s42
      %p48 = scmp.eq.s32.totalorder %s29, 0
      %p49 = por %p47, %p48
      %p50 = scmp.ne.s32.totalorder %s39, %s42
      %p51 = scmp.eq.s32.totalorder %s34, 1
      %p52 = por %p50, %p51
      %p53 = scmp.ne.s32.totalorder %s42, %s43
      %p54 = scmp.eq.s32.totalorder %s34, 0
      %p55 = por %p53, %p54
      %p56 = scmp.ne.s32.totalorder %s42, %s43
      %p57 = scmp.eq.s32.totalorder %s35, 1
      %p58 = por %p56, %p57
      %p60 = scmp.ne.s32.totalorder %s43, %s59
      %p61 = scmp.eq.s32.totalorder %s35, 0
      %p62 = por %p60, %p61
      %s64 = sadd.s32 %s63, 1
      %p67 = scmp.eq.s32.totalorder %s29, 1
      %p68 = scmp.ne.s32.totalorder %s63, %s65
      %p69 = scmp.eq.s32.totalorder %s29, 0
      %p70 = por %p68, %p69
      %p71 = scmp.ne.s32.totalorder %s63, %s65
      %p72 = scmp.eq.s32.totalorder %s34, 1
      %p73 = por %p71, %p72
      %p74 = scmp.ne.s32.totalorder %s65, %s66
      %p75 = scmp.eq.s32.totalorder %s34, 0
      %p76 = por %p74, %p75
      %p77 = scmp.ne.s32.totalorder %s65, %s66
      %p78 = scmp.eq.s32.totalorder %s35, 1
      %p79 = por %p77, %p78
      %p81 = scmp.ne.s32.totalorder %s66, %s80
      %p82 = scmp.eq.s32.totalorder %s35, 0
      %p83 = por %p81, %p82
      %s85 = sadd.s32 %s84, 1
      %p88 = scmp.eq.s32.totalorder %s29, 1
      %p89 = scmp.ne.s32.totalorder %s84, %s86
      %p90 = scmp.eq.s32.totalorder %s29, 0
      %p91 = por %p89, %p90
      %p92 = scmp.ne.s32.totalorder %s84, %s86
      %p93 = scmp.eq.s32.totalorder %s34, 1
      %p94 = por %p92, %p93
      %p95 = scmp.ne.s32.totalorder %s86, %s87
      %p96 = scmp.eq.s32.totalorder %s34, 0
      %p97 = por %p95, %p96
      %p98 = scmp.ne.s32.totalorder %s86, %s87
      %p99 = scmp.eq.s32.totalorder %s35, 1
      %p100 = por %p98, %p99
      %p102 = scmp.ne.s32.totalorder %s87, %s101
      %p103 = scmp.eq.s32.totalorder %s35, 0
      %p104 = por %p102, %p103
      %s106 = sadd.s32 %s105, 1
      %p109 = scmp.eq.s32.totalorder %s29, 1
      %p110 = scmp.ne.s32.totalorder %s105, %s107
      %p111 = scmp.eq.s32.totalorder %s29, 0
      %p112 = por %p110, %p111
      %p113 = scmp.ne.s32.totalorder %s105, %s107
      %p114 = scmp.eq.s32.totalorder %s34, 1
      %p115 = por %p113, %p114
      %p116 = scmp.ne.s32.totalorder %s107, %s108
      %p117 = scmp.eq.s32.totalorder %s34, 0
      %p118 = por %p116, %p117
      %p119 = scmp.ne.s32.totalorder %s107, %s108
      %p120 = scmp.eq.s32.totalorder %s35, 1
      %p121 = por %p119, %p120
      %p123 = scmp.ne.s32.totalorder %s108, %s122
      %p124 = scmp.eq.s32.totalorder %s35, 0
      %p125 = por %p123, %p124
      %s127 = sadd.s32 %s126, 1
      %p130 = scmp.eq.s32.totalorder %s29, 1
      %p131 = scmp.ne.s32.totalorder %s126, %s128
      %p132 = scmp.eq.s32.totalorder %s29, 0
      %p133 = por %p131, %p132
      %p134 = scmp.ne.s32.totalorder %s126, %s128
      %p135 = scmp.eq.s32.totalorder %s34, 1
      %p136 = por %p134, %p135
      %p137 = scmp.ne.s32.totalorder %s128, %s129
      %p138 = scmp.eq.s32.totalorder %s34, 0
      %p139 = por %p137, %p138
      %p140 = scmp.ne.s32.totalorder %s128, %s129
      %p141 = scmp.eq.s32.totalorder %s35, 1
      %p142 = por %p140, %p141
      %p144 = scmp.ne.s32.totalorder %s129, %s143
      %p145 = scmp.eq.s32.totalorder %s35, 0
      %p146 = por %p144, %p145
      %s148 = sadd.s32 %s147, 1
      %p151 = scmp.eq.s32.totalorder %s29, 1
      %p152 = scmp.ne.s32.totalorder %s147, %s149
      %p153 = scmp.eq.s32.totalorder %s29, 0
      %p154 = por %p152, %p153
      %p155 = scmp.ne.s32.totalorder %s147, %s149
      %p156 = scmp.eq.s32.totalorder %s34, 1
      %p157 = por %p155, %p156
      %p158 = scmp.ne.s32.totalorder %s149, %s150
      %p159 = scmp.eq.s32.totalorder %s34, 0
      %p160 = por %p158, %p159
      %p161 = scmp.ne.s32.totalorder %s149, %s150
      %p162 = scmp.eq.s32.totalorder %s35, 1
      %p163 = por %p161, %p162
      %p165 = scmp.ne.s32.totalorder %s150, %s164
      %p166 = scmp.eq.s32.totalorder %s35, 0
      %p167 = por %p165, %p166
      %s169 = sadd.s32 %s168, 1
      %p172 = scmp.eq.s32.totalorder %s29, 1
      %p173 = scmp.ne.s32.totalorder %s168, %s170
      %p174 = scmp.eq.s32.totalorder %s29, 0
      %p175 = por %p173, %p174
      %p176 = scmp.ne.s32.totalorder %s168, %s170
      %p177 = scmp.eq.s32.totalorder %s34, 1
      %p178 = por %p176, %p177
      %p179 = scmp.ne.s32.totalorder %s170, %s171
      %p180 = scmp.eq.s32.totalorder %s34, 0
      %p181 = por %p179, %p180
      %p182 = scmp.ne.s32.totalorder %s170, %s171
      %p183 = scmp.eq.s32.totalorder %s35, 1
      %p184 = por %p182, %p183
      %p186 = scmp.ne.s32.totalorder %s171, %s185
      %p187 = scmp.eq.s32.totalorder %s35, 0
      %p188 = por %p186, %p187
      %s190 = sadd.s32 %s189, 1
      %p193 = scmp.eq.s32.totalorder %s29, 1
      %p194 = scmp.ne.s32.totalorder %s189, %s191
      %p195 = scmp.eq.s32.totalorder %s29, 0
      %p196 = por %p194, %p195
      %p197 = scmp.ne.s32.totalorder %s189, %s191
      %p198 = scmp.eq.s32.totalorder %s34, 1
      %p199 = por %p197, %p198
      %p200 = scmp.ne.s32.totalorder %s191, %s192
      %p201 = scmp.eq.s32.totalorder %s34, 0
      %p202 = por %p200, %p201
      %p203 = scmp.ne.s32.totalorder %s191, %s192
      %p204 = scmp.eq.s32.totalorder %s35, 1
      %p205 = por %p203, %p204
      %p207 = scmp.ne.s32.totalorder %s192, %s206
      %p208 = scmp.eq.s32.totalorder %s35, 0
      %p209 = por %p207, %p208
      %s211 = sadd.s32 %s210, 1
      %p214 = scmp.eq.s32.totalorder %s29, 1
      %p215 = scmp.ne.s32.totalorder %s210, %s212
      %p216 = scmp.eq.s32.totalorder %s29, 0
      %p217 = por %p215, %p216
      %p218 = scmp.ne.s32.totalorder %s210, %s212
      %p219 = scmp.eq.s32.totalorder %s34, 1
      %p220 = por %p218, %p219
      %p221 = scmp.ne.s32.totalorder %s212, %s213
      %p222 = scmp.eq.s32.totalorder %s34, 0
      %p223 = por %p221, %p222
      %p224 = scmp.ne.s32.totalorder %s212, %s213
      %p225 = scmp.eq.s32.totalorder %s35, 1
      %p226 = por %p224, %p225
      %p228 = scmp.ne.s32.totalorder %s213, %s227
      %p229 = scmp.eq.s32.totalorder %s35, 0
      %p230 = por %p228, %p229
      %s232 = sadd.s32 %s231, 1
      %p235 = scmp.eq.s32.totalorder %s29, 1
      %p236 = scmp.ne.s32.totalorder %s231, %s233
      %p237 = scmp.eq.s32.totalorder %s29, 0
      %p238 = por %p236, %p237
      %p239 = scmp.ne.s32.totalorder %s231, %s233
      %p240 = scmp.eq.s32.totalorder %s34, 1
      %p241 = por %p239, %p240
      %p242 = scmp.ne.s32.totalorder %s233, %s234
      %p243 = scmp.eq.s32.totalorder %s34, 0
      %p244 = por %p242, %p243
      %p245 = scmp.ne.s32.totalorder %s233, %s234
      %p246 = scmp.eq.s32.totalorder %s35, 1
      %p247 = por %p245, %p246
      %p249 = scmp.ne.s32.totalorder %s234, %s248
      %p250 = scmp.eq.s32.totalorder %s35, 0
      %p251 = por %p249, %p250
      %s253 = sadd.s32 %s252, 1
      %p256 = scmp.eq.s32.totalorder %s29, 1
      %p257 = scmp.ne.s32.totalorder %s252, %s254
      %p258 = scmp.eq.s32.totalorder %s29, 0
      %p259 = por %p257, %p258
      %p260 = scmp.ne.s32.totalorder %s252, %s254
      %p261 = scmp.eq.s32.totalorder %s34, 1
      %p262 = por %p260, %p261
      %p263 = scmp.ne.s32.totalorder %s254, %s255
      %p264 = scmp.eq.s32.totalorder %s34, 0
      %p265 = por %p263, %p264
      %p266 = scmp.ne.s32.totalorder %s254, %s255
      %p267 = scmp.eq.s32.totalorder %s35, 1
      %p268 = por %p266, %p267
      %p270 = scmp.ne.s32.totalorder %s255, %s269
      %p271 = scmp.eq.s32.totalorder %s35, 0
      %p272 = por %p270, %p271
      %s274 = sadd.s32 %s273, 1
      %p277 = scmp.eq.s32.totalorder %s29, 1
      %p278 = scmp.ne.s32.totalorder %s273, %s275
      %p279 = scmp.eq.s32.totalorder %s29, 0
      %p280 = por %p278, %p279
      %p281 = scmp.ne.s32.totalorder %s273, %s275
      %p282 = scmp.eq.s32.totalorder %s34, 1
      %p283 = por %p281, %p282
      %p284 = scmp.ne.s32.totalorder %s275, %s276
      %p285 = scmp.eq.s32.totalorder %s34, 0
      %p286 = por %p284, %p285
      %p287 = scmp.ne.s32.totalorder %s275, %s276
      %p288 = scmp.eq.s32.totalorder %s35, 1
      %p289 = por %p287, %p288
      %p291 = scmp.ne.s32.totalorder %s276, %s290
      %p292 = scmp.eq.s32.totalorder %s35, 0
      %p293 = por %p291, %p292
      %s295 = sadd.s32 %s294, 1
      %p298 = scmp.eq.s32.totalorder %s29, 1
      %p299 = scmp.ne.s32.totalorder %s294, %s296
      %p300 = scmp.eq.s32.totalorder %s29, 0
      %p301 = por %p299, %p300
      %p302 = scmp.ne.s32.totalorder %s294, %s296
      %p303 = scmp.eq.s32.totalorder %s34, 1
      %p304 = por %p302, %p303
      %p305 = scmp.ne.s32.totalorder %s296, %s297
      %p306 = scmp.eq.s32.totalorder %s34, 0
      %p307 = por %p305, %p306
      %p308 = scmp.ne.s32.totalorder %s296, %s297
      %p309 = scmp.eq.s32.totalorder %s35, 1
      %p310 = por %p308, %p309
      %p312 = scmp.ne.s32.totalorder %s297, %s311
      %p313 = scmp.eq.s32.totalorder %s35, 0
      %p314 = por %p312, %p313
      %s315 = ssub.s32 %s29, %s36
      %p316 = scmp.eq.s32.totalorder %s315, 0
      %s318 = sadd.s32 %s317, 1
      %s319 = scalar_select %p316, %s317, %s318
      %p322 = pneg %p316
      %p323 = scmp.eq.s32.totalorder %s29, 1
      %p324 = por %p322, %p323
      %p325 = scmp.ne.s32.totalorder %s317, %s320
      %p326 = scmp.eq.s32.totalorder %s29, 0
      %p327 = por %p325, %p326
      %p328 = scmp.ne.s32.totalorder %s317, %s320
      %p329 = scmp.eq.s32.totalorder %s34, 1
      %p330 = por %p328, %p329
      %p331 = scmp.ne.s32.totalorder %s320, %s321
      %p332 = scmp.eq.s32.totalorder %s34, 0
      %p333 = por %p331, %p332
      %p334 = scmp.ne.s32.totalorder %s320, %s321
      %p335 = scmp.eq.s32.totalorder %s35, 1
      %p336 = por %p334, %p335
      %p338 = scmp.ne.s32.totalorder %s321, %s337
      %p339 = scmp.eq.s32.totalorder %s35, 0
      %p340 = por %p338, %p339
      %p341 = scmp.le.s32.totalorder 1, %s29
      %p342 = scmp.lt.s32.totalorder %s29, 3
      %p343 = pnand %p341, %p342
      %p344 = pneg %p343
      // Predicated region
      $region9: #{tpu_custom_call.1} parent=5 // pred_check
        _
      $region10: #{tpu_custom_call.1} parent=5 // pred_check_branch
        %346 = sbr.rel (%p343) target = $region12
      $region11: #{tpu_custom_call.1} parent=5 // pred_region
        %s347 = ssub.s32 %s29, 1
        // Predicated region
        $region13: #{tpu_custom_call.1} parent=11 // pred_check
          %p348 = pneg %p76
        $region14: #{tpu_custom_call.1} parent=11 // pred_check_branch
          %350 = sbr.rel (%p348) target = $region16
        $region15: #{tpu_custom_call.1} parent=11 // pred_region
          %352 = vsyncadd [#allocation6], 0
          %s354 = sshll.u32 %s1, 4
          %s355 = int_to_ptr.hbm [resolvable:$true] %s354
          %s356 = sshll.u32 [#allocation5], 4
          %s357 = int_to_ptr.vmem [resolvable:$true] %s356
          %359 = dma.hbm_to_vmem [thread:$0]  %s355, 16, %s357, [#allocation6]
        $region16: #{tpu_custom_call.1} parent=11 // pred_fallthru
          _
        // Predicated region
        $region17: #{tpu_custom_call.1} parent=11 // pred_check
          %p360 = pneg %p97
        $region18: #{tpu_custom_call.1} parent=11 // pred_check_branch
          %362 = sbr.rel (%p360) target = $region20
        $region19: #{tpu_custom_call.1} parent=11 // pred_region
          %364 = vsyncadd [#allocation6], 0
          %s366 = sshll.u32 %s2, 4
          %s367 = int_to_ptr.hbm [resolvable:$true] %s366
          %s368 = sshll.u32 [#allocation7], 4
          %s369 = int_to_ptr.vmem [resolvable:$true] %s368
          %371 = dma.hbm_to_vmem [thread:$0]  %s367, 16, %s369, [#allocation6]
        $region20: #{tpu_custom_call.1} parent=11 // pred_fallthru
          _
        // Predicated region
        $region21: #{tpu_custom_call.1} parent=11 // pred_check
          %p372 = pneg %p118
        $region22: #{tpu_custom_call.1} parent=11 // pred_check_branch
          %374 = sbr.rel (%p372) target = $region24
        $region23: #{tpu_custom_call.1} parent=11 // pred_region
          %376 = vsyncadd [#allocation9], 0
          %s377 = sshll.u32 %s3, 4
          %s378 = int_to_ptr.hbm [resolvable:$true] %s377
          %s379 = sshll.u32 [#allocation8], 4
          %s380 = int_to_ptr.vmem [resolvable:$true] %s379
          %385 = dma.hbm_to_vmem [thread:$0]  %s378, 3072, %s380, [#allocation9], 192, 192, 12
        $region24: #{tpu_custom_call.1} parent=11 // pred_fallthru
          _
        // Predicated region
        $region25: #{tpu_custom_call.1} parent=11 // pred_check
          %p386 = pneg %p139
        $region26: #{tpu_custom_call.1} parent=11 // pred_check_branch
          %388 = sbr.rel (%p386) target = $region28
        $region27: #{tpu_custom_call.1} parent=11 // pred_region
          _
        $region28: #{tpu_custom_call.1} parent=11 // pred_fallthru
          _
        // Predicated region
        $region29: #{tpu_custom_call.1} parent=11 // pred_check
          %p389 = pneg %p160
        $region30: #{tpu_custom_call.1} parent=11 // pred_check_branch
          %391 = sbr.rel (%p389) target = $region32
        $region31: #{tpu_custom_call.1} parent=11 // pred_region
          %393 = vsyncadd [#allocation9], 0
          %s394 = sshll.u32 %s5, 4
          %s395 = int_to_ptr.hbm [resolvable:$true] %s394
          %s396 = sshll.u32 [#allocation10], 4
          %s397 = int_to_ptr.vmem [resolvable:$true] %s396
          %402 = dma.hbm_to_vmem [thread:$0]  %s395, 1024, %s397, [#allocation9], 64, 64, 4
        $region32: #{tpu_custom_call.1} parent=11 // pred_fallthru
          _
        // Predicated region
        $region33: #{tpu_custom_call.1} parent=11 // pred_check
          %p403 = pneg %p181
        $region34: #{tpu_custom_call.1} parent=11 // pred_check_branch
          %405 = sbr.rel (%p403) target = $region36
        $region35: #{tpu_custom_call.1} parent=11 // pred_region
          %407 = vsyncadd [#allocation12], 0
          %s409 = sshll.u32 %s6, 4
          %s410 = int_to_ptr.hbm [resolvable:$true] %s409
          %s411 = sshll.u32 [#allocation11], 4
          %s412 = int_to_ptr.vmem [resolvable:$true] %s411
          %414 = dma.hbm_to_vmem [thread:$0]  %s410, 16, %s412, [#allocation12]
        $region36: #{tpu_custom_call.1} parent=11 // pred_fallthru
          _
        // Predicated region
        $region37: #{tpu_custom_call.1} parent=11 // pred_check
          %p415 = pneg %p202
        $region38: #{tpu_custom_call.1} parent=11 // pred_check_branch
          %417 = sbr.rel (%p415) target = $region40
        $region39: #{tpu_custom_call.1} parent=11 // pred_region
          _
        $region40: #{tpu_custom_call.1} parent=11 // pred_fallthru
          _
        // Predicated region
        $region41: #{tpu_custom_call.1} parent=11 // pred_check
          %p418 = pneg %p223
        $region42: #{tpu_custom_call.1} parent=11 // pred_check_branch
          %420 = sbr.rel (%p418) target = $region44
        $region43: #{tpu_custom_call.1} parent=11 // pred_region
          _
        $region44: #{tpu_custom_call.1} parent=11 // pred_fallthru
          _
        // Predicated region
        $region45: #{tpu_custom_call.1} parent=11 // pred_check
          %p421 = pneg %p244
        $region46: #{tpu_custom_call.1} parent=11 // pred_check_branch
          %423 = sbr.rel (%p421) target = $region48
        $region47: #{tpu_custom_call.1} parent=11 // pred_region
          %425 = vsyncadd [#allocation12], 0
          %s426 = sshll.u32 %s9, 4
          %s427 = int_to_ptr.hbm [resolvable:$true] %s426
          %s428 = sshll.u32 [#allocation13], 4
          %s429 = int_to_ptr.vmem [resolvable:$true] %s428
          %434 = dma.hbm_to_vmem [thread:$0]  %s427, 2048, %s429, [#allocation12], 128, 128, 8
        $region48: #{tpu_custom_call.1} parent=11 // pred_fallthru
          _
        // Predicated region
        $region49: #{tpu_custom_call.1} parent=11 // pred_check
          %p435 = pneg %p265
        $region50: #{tpu_custom_call.1} parent=11 // pred_check_branch
          %437 = sbr.rel (%p435) target = $region52
        $region51: #{tpu_custom_call.1} parent=11 // pred_region
          _
        $region52: #{tpu_custom_call.1} parent=11 // pred_fallthru
          _
        // Predicated region
        $region53: #{tpu_custom_call.1} parent=11 // pred_check
          %p438 = pneg %p286
        $region54: #{tpu_custom_call.1} parent=11 // pred_check_branch
          %440 = sbr.rel (%p438) target = $region56
        $region55: #{tpu_custom_call.1} parent=11 // pred_region
          %442 = vsyncadd [#allocation15], 0
          %s443 = sshll.u32 %s11, 4
          %s444 = int_to_ptr.hbm [resolvable:$true] %s443
          %s445 = sshll.u32 [#allocation14], 4
          %s446 = int_to_ptr.vmem [resolvable:$true] %s445
          %451 = dma.hbm_to_vmem [thread:$0]  %s444, 2048, %s446, [#allocation15], 64, 64, 4
        $region56: #{tpu_custom_call.1} parent=11 // pred_fallthru
          _
        // Predicated region
        $region57: #{tpu_custom_call.1} parent=11 // pred_check
          %p452 = pneg %p307
        $region58: #{tpu_custom_call.1} parent=11 // pred_check_branch
          %454 = sbr.rel (%p452) target = $region60
        $region59: #{tpu_custom_call.1} parent=11 // pred_region
          _
        $region60: #{tpu_custom_call.1} parent=11 // pred_fallthru
          _
      $region12: #{tpu_custom_call.1} parent=5 // pred_fallthru
        _
      %p455 = scmp.lt.s32.totalorder %s29, 2
      // Predicated region
      $region61: #{tpu_custom_call.1} parent=5 // pred_check
        %p456 = pneg %p455
      $region62: #{tpu_custom_call.1} parent=5 // pred_check_branch
        %458 = sbr.rel (%p456) target = $region64
      $region63: #{tpu_custom_call.1} parent=5 // pred_region
        // Predicated region
        $region65: #{tpu_custom_call.1} parent=63 // pred_check
          %p459 = pneg %p49
        $region66: #{tpu_custom_call.1} parent=63 // pred_check_branch
          %461 = sbr.rel (%p459) target = $region68
        $region67: #{tpu_custom_call.1} parent=63 // pred_region
          %s462 = sand.u32 %s39, 1
          %s463 = scalar_lea.sflag [#allocation3], %s462
          %s464 = sand.u32 %s39, 1
          %s465 = smul.addr %s464, 32
          %s466 = scalar_lea.vmem [#allocation2], %s465
          %s467 = smul.u32 2, %s29
          %469 = vsyncadd %s463, 0
          %s470 = smul.addr %s467, 2
          %s471 = smul.addr %s470, 8
          %s472 = scalar_lea.hbm %s0, %s471
          %s473 = sshll.u32 %s472, 4
          %s474 = int_to_ptr.hbm [resolvable:$true] %s473
          %s475 = sshll.u32 %s466, 4
          %s476 = int_to_ptr.vmem [resolvable:$true] %s475
          %481 = dma.hbm_to_vmem [thread:$0]  %s474, 512, %s476, %s463, 128, 128, 8
        $region68: #{tpu_custom_call.1} parent=63 // pred_fallthru
          _
      $region64: #{tpu_custom_call.1} parent=5 // pred_fallthru
        _
      %p482 = scmp.le.s32.totalorder 1, %s29
      %p483 = scmp.lt.s32.totalorder %s29, 3
      %p484 = pnand %p482, %p483
      %p485 = pneg %p484
      // Predicated region
      $region69: #{tpu_custom_call.1} parent=5 // pred_check
        _
      $region70: #{tpu_custom_call.1} parent=5 // pred_check_branch
        %487 = sbr.rel (%p484) target = $region72
      $region71: #{tpu_custom_call.1} parent=5 // pred_region
        %s488 = ssub.s32 %s29, 1
        %s489 = sand.u32 %s42, 1
        %s490 = scalar_lea.sflag [#allocation3], %s489
        %s491 = sand.u32 %s42, 1
        %s492 = smul.addr %s491, 32
        %s493 = scalar_lea.vmem [#allocation2], %s492
        // Predicated region
        $region73: #{tpu_custom_call.1} parent=71 // pred_check
          %p494 = pneg %p55
        $region74: #{tpu_custom_call.1} parent=71 // pred_check_branch
          %496 = sbr.rel (%p494) target = $region76
        $region75: #{tpu_custom_call.1} parent=71 // pred_region
          %498 = dma.done %s490, 512
        $region76: #{tpu_custom_call.1} parent=71 // pred_fallthru
          _
        // Predicated region
        $region77: #{tpu_custom_call.1} parent=71 // pred_check
          %p499 = pneg %p76
        $region78: #{tpu_custom_call.1} parent=71 // pred_check_branch
          %501 = sbr.rel (%p499) target = $region80
        $region79: #{tpu_custom_call.1} parent=71 // pred_region
          %503 = dma.done [#allocation6], 16
        $region80: #{tpu_custom_call.1} parent=71 // pred_fallthru
          _
        // Predicated region
        $region81: #{tpu_custom_call.1} parent=71 // pred_check
          %p504 = pneg %p97
        $region82: #{tpu_custom_call.1} parent=71 // pred_check_branch
          %506 = sbr.rel (%p504) target = $region84
        $region83: #{tpu_custom_call.1} parent=71 // pred_region
          %508 = dma.done [#allocation6], 16
        $region84: #{tpu_custom_call.1} parent=71 // pred_fallthru
          _
        // Predicated region
        $region85: #{tpu_custom_call.1} parent=71 // pred_check
          %p509 = pneg %p118
        $region86: #{tpu_custom_call.1} parent=71 // pred_check_branch
          %511 = sbr.rel (%p509) target = $region88
        $region87: #{tpu_custom_call.1} parent=71 // pred_region
          %513 = dma.done [#allocation9], 3072
        $region88: #{tpu_custom_call.1} parent=71 // pred_fallthru
          _
        // Predicated region
        $region89: #{tpu_custom_call.1} parent=71 // pred_check
          %p514 = pneg %p160
        $region90: #{tpu_custom_call.1} parent=71 // pred_check_branch
          %516 = sbr.rel (%p514) target = $region92
        $region91: #{tpu_custom_call.1} parent=71 // pred_region
          %518 = dma.done [#allocation9], 1024
        $region92: #{tpu_custom_call.1} parent=71 // pred_fallthru
          _
        // Predicated region
        $region93: #{tpu_custom_call.1} parent=71 // pred_check
          %p519 = pneg %p181
        $region94: #{tpu_custom_call.1} parent=71 // pred_check_branch
          %521 = sbr.rel (%p519) target = $region96
        $region95: #{tpu_custom_call.1} parent=71 // pred_region
          %523 = dma.done [#allocation12], 16
        $region96: #{tpu_custom_call.1} parent=71 // pred_fallthru
          _
        // Predicated region
        $region97: #{tpu_custom_call.1} parent=71 // pred_check
          %p524 = pneg %p244
        $region98: #{tpu_custom_call.1} parent=71 // pred_check_branch
          %526 = sbr.rel (%p524) target = $region100
        $region99: #{tpu_custom_call.1} parent=71 // pred_region
          %528 = dma.done [#allocation12], 2048
        $region100: #{tpu_custom_call.1} parent=71 // pred_fallthru
          _
        // Predicated region
        $region101: #{tpu_custom_call.1} parent=71 // pred_check
          %p529 = pneg %p286
        $region102: #{tpu_custom_call.1} parent=71 // pred_check_branch
          %531 = sbr.rel (%p529) target = $region104
        $region103: #{tpu_custom_call.1} parent=71 // pred_region
          %533 = dma.done [#allocation15], 2048
        $region104: #{tpu_custom_call.1} parent=71 // pred_fallthru
          _
        %s534 = sand.u32 %s42, 1
        %s535 = scalar_lea.sflag [#allocation3], %s534
        %s536 = sand.u32 %s42, 1
        %s537 = smul.addr %s536, 32
        %s538 = scalar_lea.vmem [#allocation2], %s537
        %p539 = pneg %p55
        %p540 = pneg %p52
        %p541 = pneg %p76
        %p542 = pneg %p73
        %p543 = pneg %p97
        %p544 = pneg %p94
        %p545 = pneg %p118
        %p546 = pneg %p115
        %p547 = pneg %p139
        %p548 = pneg %p136
        %p549 = pneg %p160
        %p550 = pneg %p157
        %p551 = pneg %p181
        %p552 = pneg %p178
        %p553 = pneg %p202
        %p554 = pneg %p199
        %p555 = pneg %p223
        %p556 = pneg %p220
        %p557 = pneg %p244
        %p558 = pneg %p241
        %p559 = pneg %p265
        %p560 = pneg %p262
        %p561 = pneg %p286
        %p562 = pneg %p283
        %p563 = pneg %p307
        %p564 = pneg %p304
        %p565 = pneg %p333
        %p566 = pneg %p330
        %s567 = sand.u32 %s320, 1
        %s568 = scalar_lea.sflag [#allocation4], %s567
        %s569 = sand.u32 %s320, 1
        %s570 = smul.addr %s569, 32
        %s571 = scalar_lea.vmem [#allocation16], %s570
        %s572 = smul.u32 2, %s34
        %s573 = smul.u32 2, %s34
        %v575 = vld [vmem:[%s493] sm:$0xff]
        %v576 = vld [vmem:[%s493 + $0x8] sm:$0xff]
        %v577 = vld [vmem:[%s493 + $0x10] sm:$0xff]
        %v578 = vld [vmem:[%s493 + $0x18] sm:$0xff]
        %v579 = vld [vmem:[#allocation5] sm:$0x1]
        %v580 = vld [vmem:[#allocation7] sm:$0x1]
        %581 = vadd.xlane.f32.xlu0 %v575
        %v582 = vpop.xlane.xlu0 %581
        %583 = vadd.xlane.f32.xlu0 %v576
        %v584 = vpop.xlane.xlu0 %583
        %585 = vadd.xlane.f32.xlu0 %v577
        %v586 = vpop.xlane.xlu0 %585
        %587 = vadd.xlane.f32.xlu0 %v578
        %v588 = vpop.xlane.xlu0 %587
        %v589 = vrcp.pop 128.0
        %v590 = vmul.f32 128.0, %v589
        %v591 = vsub.f32 1.0, %v590
        %v592 = vmul.f32 %v589, %v591
        %v593 = vadd.f32 %v589, %v592
        %vm594 = vweird.f32 %v589
        %v595 = vsel %vm594, %v589, %v593
        %v596 = vmul.f32 %v582, %v595
        %v597 = vmul.f32 %v584, %v595
        %v598 = vmul.f32 %v586, %v595
        %v599 = vmul.f32 %v588, %v595
        %v600 = vsub.f32 %v575, %v596
        %v601 = vsub.f32 %v576, %v597
        %v602 = vsub.f32 %v577, %v598
        %v603 = vsub.f32 %v578, %v599
        %v604 = vmul.f32 %v600, %v600
        %v605 = vmul.f32 %v601, %v601
        %v606 = vmul.f32 %v602, %v602
        %v607 = vmul.f32 %v603, %v603
        %608 = vadd.xlane.f32.xlu0 %v604
        %v609 = vpop.xlane.xlu0 %608
        %610 = vadd.xlane.f32.xlu0 %v605
        %v611 = vpop.xlane.xlu0 %610
        %612 = vadd.xlane.f32.xlu0 %v606
        %v613 = vpop.xlane.xlu0 %612
        %614 = vadd.xlane.f32.xlu0 %v607
        %v615 = vpop.xlane.xlu0 %614
        %v616 = vmul.f32 %v609, %v595
        %v617 = vmul.f32 %v611, %v595
        %v618 = vmul.f32 %v613, %v595
        %v619 = vmul.f32 %v615, %v595
        %v620 = vadd.f32 %v616, 1e-05
        %v621 = vadd.f32 %v617, 1e-05
        %v622 = vadd.f32 %v618, 1e-05
        %v623 = vadd.f32 %v619, 1e-05
        %v624 = vrsqrt.pop %v620
        %v625 = vmul.f32 %v624, %v620
        %v626 = vmul.f32 %v625, %v624
        %v627 = vmul.f32 0.5, %v626
        %v628 = vsub.f32 1.5, %v627
        %v629 = vmul.f32 %v624, %v628
        %vm630 = vweird.f32 %v620
        %vm631 = vweird.f32 %v624
        %vm632 = vmor %vm630, %vm631
        %v633 = vsel %vm632, %v624, %v629
        %v634 = vrsqrt.pop %v621
        %v635 = vmul.f32 %v634, %v621
        %v636 = vmul.f32 %v635, %v634
        %v637 = vmul.f32 0.5, %v636
        %v638 = vsub.f32 1.5, %v637
        %v639 = vmul.f32 %v634, %v638
        %vm640 = vweird.f32 %v621
        %vm641 = vweird.f32 %v634
        %vm642 = vmor %vm640, %vm641
        %v643 = vsel %vm642, %v634, %v639
        %v644 = vrsqrt.pop %v622
        %v645 = vmul.f32 %v644, %v622
        %v646 = vmul.f32 %v645, %v644
        %v647 = vmul.f32 0.5, %v646
        %v648 = vsub.f32 1.5, %v647
        %v649 = vmul.f32 %v644, %v648
        %vm650 = vweird.f32 %v622
        %vm651 = vweird.f32 %v644
        %vm652 = vmor %vm650, %vm651
        %v653 = vsel %vm652, %v644, %v649
        %v654 = vrsqrt.pop %v623
        %v655 = vmul.f32 %v654, %v623
        %v656 = vmul.f32 %v655, %v654
        %v657 = vmul.f32 0.5, %v656
        %v658 = vsub.f32 1.5, %v657
        %v659 = vmul.f32 %v654, %v658
        %vm660 = vweird.f32 %v623
        %vm661 = vweird.f32 %v654
        %vm662 = vmor %vm660, %vm661
        %v663 = vsel %vm662, %v654, %v659
        %v664 = vmul.f32 %v600, %v633
        %v665 = vmul.f32 %v601, %v643
        %v666 = vmul.f32 %v602, %v653
        %v667 = vmul.f32 %v603, %v663
        %v669 = vperm.slane %v579, 0
        %v671 = vmul.f32 %v664, %v669
        %v672 = vmul.f32 %v665, %v669
        %v673 = vmul.f32 %v666, %v669
        %v674 = vmul.f32 %v667, %v669
        %v676 = vperm.slane %v580, 0
        %v678 = vadd.f32 %v671, %v676
        %v679 = vadd.f32 %v672, %v676
        %v680 = vadd.f32 %v673, %v676
        %v681 = vadd.f32 %v674, %v676
        %v682 = vpack.c.bf16 %v679, %v678
        %v683 = vpack.c.bf16 %v681, %v680
        %v684 = vld [vmem:[#allocation8] sm:$0xff]
        %v685 = vld [vmem:[#allocation8 + $0x8] sm:$0xf]
        %v686 = vld [vmem:[#allocation8 + $0xc] sm:$0xff]
        %v687 = vld [vmem:[#allocation8 + $0x14] sm:$0xf]
        %v688 = vld [vmem:[#allocation8 + $0x18] sm:$0xff]
        %v689 = vld [vmem:[#allocation8 + $0x20] sm:$0xf]
        %v690 = vld [vmem:[#allocation8 + $0x24] sm:$0xff]
        %v691 = vld [vmem:[#allocation8 + $0x2c] sm:$0xf]
        %v692 = vld [vmem:[#allocation8 + $0x30] sm:$0xff]
        %v693 = vld [vmem:[#allocation8 + $0x38] sm:$0xf]
        %v694 = vld [vmem:[#allocation8 + $0x3c] sm:$0xff]
        %v695 = vld [vmem:[#allocation8 + $0x44] sm:$0xf]
        %v696 = vld [vmem:[#allocation8 + $0x48] sm:$0xff]
        %v697 = vld [vmem:[#allocation8 + $0x50] sm:$0xf]
        %v698 = vld [vmem:[#allocation8 + $0x54] sm:$0xff]
        %v699 = vld [vmem:[#allocation8 + $0x5c] sm:$0xf]
        %v700 = vld [vmem:[#allocation8 + $0x60] sm:$0xff]
        %v701 = vld [vmem:[#allocation8 + $0x68] sm:$0xf]
        %v702 = vld [vmem:[#allocation8 + $0x6c] sm:$0xff]
        %v703 = vld [vmem:[#allocation8 + $0x74] sm:$0xf]
        %v704 = vld [vmem:[#allocation8 + $0x78] sm:$0xff]
        %v705 = vld [vmem:[#allocation8 + $0x80] sm:$0xf]
        %v706 = vld [vmem:[#allocation8 + $0x84] sm:$0xff]
        %v707 = vld [vmem:[#allocation8 + $0x8c] sm:$0xf]
        %v708 = vld [vmem:[#allocation8 + $0x90] sm:$0xff]
        %v709 = vld [vmem:[#allocation8 + $0x98] sm:$0xf]
        %v710 = vld [vmem:[#allocation8 + $0x9c] sm:$0xff]
        %v711 = vld [vmem:[#allocation8 + $0xa4] sm:$0xf]
        %v712 = vld [vmem:[#allocation8 + $0xa8] sm:$0xff]
        %v713 = vld [vmem:[#allocation8 + $0xb0] sm:$0xf]
        %v714 = vld [vmem:[#allocation8 + $0xb4] sm:$0xff]
        %v715 = vld [vmem:[#allocation8 + $0xbc] sm:$0xf]
        %v716 = vld [vmem:[%s4] sm:$0x7]
        %v718 = vperm.slane %v716, 0
        %v719 = vperm.slane %v716, 1
        %v720 = vperm.slane %v716, 2
        %v756 = vunpack.c.l.b16 %v684
        %v757 = vunpack.c.h.b16 %v684
        %v758 = vunpack.c.l.b16 %v685
        %v759 = vunpack.c.l.b16 %v686
        %v760 = vunpack.c.h.b16 %v686
        %v761 = vunpack.c.l.b16 %v687
        %v762 = vunpack.c.l.b16 %v688
        %v763 = vunpack.c.h.b16 %v688
        %v764 = vunpack.c.l.b16 %v689
        %v765 = vunpack.c.l.b16 %v690
        %v766 = vunpack.c.h.b16 %v690
        %v767 = vunpack.c.l.b16 %v691
        %v768 = vunpack.c.l.b16 %v692
        %v769 = vunpack.c.h.b16 %v692
        %v770 = vunpack.c.l.b16 %v693
        %v771 = vunpack.c.l.b16 %v694
        %v772 = vunpack.c.h.b16 %v694
        %v773 = vunpack.c.l.b16 %v695
        %v774 = vunpack.c.l.b16 %v696
        %v775 = vunpack.c.h.b16 %v696
        %v776 = vunpack.c.l.b16 %v697
        %v777 = vunpack.c.l.b16 %v698
        %v778 = vunpack.c.h.b16 %v698
        %v779 = vunpack.c.l.b16 %v699
        %v780 = vunpack.c.l.b16 %v700
        %v781 = vunpack.c.h.b16 %v700
        %v782 = vunpack.c.l.b16 %v701
        %v783 = vunpack.c.l.b16 %v702
        %v784 = vunpack.c.h.b16 %v702
        %v785 = vunpack.c.l.b16 %v703
        %v786 = vunpack.c.l.b16 %v704
        %v787 = vunpack.c.h.b16 %v704
        %v788 = vunpack.c.l.b16 %v705
        %v789 = vunpack.c.l.b16 %v706
        %v790 = vunpack.c.h.b16 %v706
        %v791 = vunpack.c.l.b16 %v707
        %v792 = vunpack.c.l.b16 %v708
        %v793 = vunpack.c.h.b16 %v708
        %v794 = vunpack.c.l.b16 %v709
        %v795 = vunpack.c.l.b16 %v710
        %v796 = vunpack.c.h.b16 %v710
        %v797 = vunpack.c.l.b16 %v711
        %v798 = vunpack.c.l.b16 %v712
        %v799 = vunpack.c.h.b16 %v712
        %v800 = vunpack.c.l.b16 %v713
        %v801 = vunpack.c.l.b16 %v714
        %v802 = vunpack.c.h.b16 %v714
        %v803 = vunpack.c.l.b16 %v715
        %v804 = vpack.c.b16 %v759, %v756
        %v805 = vpack.c.b16 %v760, %v757
        %v806 = vpack.c.b16 %v761, %v758
        %v807 = vpack.c.b16 %v765, %v762
        %v808 = vpack.c.b16 %v766, %v763
        %v809 = vpack.c.b16 %v767, %v764
        %v810 = vpack.c.b16 %v771, %v768
        %v811 = vpack.c.b16 %v772, %v769
        %v812 = vpack.c.b16 %v773, %v770
        %v813 = vpack.c.b16 %v777, %v774
        %v814 = vpack.c.b16 %v778, %v775
        %v815 = vpack.c.b16 %v779, %v776
        %v816 = vpack.c.b16 %v783, %v780
        %v817 = vpack.c.b16 %v784, %v781
        %v818 = vpack.c.b16 %v785, %v782
        %v819 = vpack.c.b16 %v789, %v786
        %v820 = vpack.c.b16 %v790, %v787
        %v821 = vpack.c.b16 %v791, %v788
        %v822 = vpack.c.b16 %v795, %v792
        %v823 = vpack.c.b16 %v796, %v793
        %v824 = vpack.c.b16 %v797, %v794
        %v825 = vpack.c.b16 %v801, %v798
        %v826 = vpack.c.b16 %v802, %v799
        %v827 = vpack.c.b16 %v803, %v800
        %852 = vmatpush.bf16.msra.mxu0 %v825
        %853 = vmatpush.bf16.msra.mxu0 %v822
        %854 = vmatpush.bf16.msra.mxu0 %v819
        %855 = vmatpush.bf16.msra.mxu0 %v816
        %856 = vmatpush.bf16.msra.mxu0 %v813
        %857 = vmatpush.bf16.msra.mxu0 %v810
        %858 = vmatpush.bf16.msra.mxu0 %v807
        %859 = vmatpush.bf16.msra.mxu0 %v804
        %860 = vmatmul.bf16.gmra.mxu0 %v682
        %v861 = vpop.f32.mrf.mxu0
        %v862 = vadd.f32 %v718, %v861
        %v863 = vpop.f32.mrf.mxu0
        %v864 = vadd.f32 %v718, %v863
        %865 = vmatmul.bf16.gmra.mxu0 %v683
        %v866 = vpop.f32.mrf.mxu0
        %v867 = vadd.f32 %v718, %v866
        %v868 = vpop.f32.mrf.mxu0
        %v869 = vadd.f32 %v718, %v868
        %870 = vdwg.mxu0
        %871 = vmatpush.bf16.msra.mxu0 %v826
        %872 = vmatpush.bf16.msra.mxu0 %v823
        %873 = vmatpush.bf16.msra.mxu0 %v820
        %874 = vmatpush.bf16.msra.mxu0 %v817
        %875 = vmatpush.bf16.msra.mxu0 %v814
        %876 = vmatpush.bf16.msra.mxu0 %v811
        %877 = vmatpush.bf16.msra.mxu0 %v808
        %878 = vmatpush.bf16.msra.mxu0 %v805
        %879 = vmatmul.bf16.gmra.mxu0 %v682
        %v880 = vpop.f32.mrf.mxu0
        %v881 = vadd.f32 %v719, %v880
        %v882 = vpop.f32.mrf.mxu0
        %v883 = vadd.f32 %v719, %v882
        %884 = vmatmul.bf16.gmra.mxu0 %v683
        %v885 = vpop.f32.mrf.mxu0
        %v886 = vadd.f32 %v719, %v885
        %v887 = vpop.f32.mrf.mxu0
        %v888 = vadd.f32 %v719, %v887
        %889 = vdwg.mxu0
        %890 = vmatpush.bf16.msra.mxu0 %v827
        %891 = vmatpush.bf16.msra.mxu0 %v824
        %892 = vmatpush.bf16.msra.mxu0 %v821
        %893 = vmatpush.bf16.msra.mxu0 %v818
        %894 = vmatpush.bf16.msra.mxu0 %v815
        %895 = vmatpush.bf16.msra.mxu0 %v812
        %896 = vmatpush.bf16.msra.mxu0 %v809
        %897 = vmatpush.bf16.msra.mxu0 %v806
        %898 = vmatmul.bf16.gmra.mxu0 %v682
        %v899 = vpop.f32.mrf.mxu0
        %v900 = vadd.f32 %v720, %v899
        %v901 = vpop.f32.mrf.mxu0
        %v902 = vadd.f32 %v720, %v901
        %903 = vmatmul.bf16.gmra.mxu0 %v683
        %v904 = vpop.f32.mrf.mxu0
        %v905 = vadd.f32 %v720, %v904
        %v906 = vpop.f32.mrf.mxu0
        %v907 = vadd.f32 %v720, %v906
        %908 = vdwg.mxu0
        %v909 = vpack.c.bf16 %v862, %v862
        %v910 = vpack.c.bf16 %v864, %v864
        %v911 = vpack.c.bf16 %v867, %v867
        %v912 = vpack.c.bf16 %v869, %v869
        %v913 = vpack.c.bf16 %v881, %v881
        %v914 = vpack.c.bf16 %v883, %v883
        %v915 = vpack.c.bf16 %v886, %v886
        %v916 = vpack.c.bf16 %v888, %v888
        %v917 = vpack.c.bf16 %v900, %v900
        %v918 = vpack.c.bf16 %v902, %v902
        %v919 = vpack.c.bf16 %v905, %v905
        %v920 = vpack.c.bf16 %v907, %v907
        %v921 = vld [vmem:[#allocation10] sm:$0xf]
        %v922 = vld [vmem:[#allocation10 + $0x4] sm:$0xf]
        %v923 = vld [vmem:[#allocation10 + $0x8] sm:$0xf]
        %v924 = vld [vmem:[#allocation10 + $0xc] sm:$0xf]
        %v925 = vld [vmem:[#allocation10 + $0x10] sm:$0xf]
        %v926 = vld [vmem:[#allocation10 + $0x14] sm:$0xf]
        %v927 = vld [vmem:[#allocation10 + $0x18] sm:$0xf]
        %v928 = vld [vmem:[#allocation10 + $0x1c] sm:$0xf]
        %v929 = vld [vmem:[#allocation10 + $0x20] sm:$0xf]
        %v930 = vld [vmem:[#allocation10 + $0x24] sm:$0xf]
        %v931 = vld [vmem:[#allocation10 + $0x28] sm:$0xf]
        %v932 = vld [vmem:[#allocation10 + $0x2c] sm:$0xf]
        %v933 = vld [vmem:[#allocation10 + $0x30] sm:$0xf]
        %v934 = vld [vmem:[#allocation10 + $0x34] sm:$0xf]
        %v935 = vld [vmem:[#allocation10 + $0x38] sm:$0xf]
        %v936 = vld [vmem:[#allocation10 + $0x3c] sm:$0xf]
        %v937 = vld [vmem:[#allocation11] sm:$0x1]
        %v939 = vperm.slane %v937, 0
        %v941 = vadd.f32 %v939, 0.0
        %v944 = vunpack.c.l.b16 %v909
        %v945 = vunpack.c.l.b16 %v910
        %v946 = vpack.c.b16 %v945, %v944
        %v949 = vunpack.c.l.b16 %v913
        %v950 = vunpack.c.l.b16 %v914
        %v951 = vpack.c.b16 %v950, %v949
        %vm952 = vcmask 261120
        %v954 = vsel %vm952, %v946, 0
        %v957 = vsel %vm952, %v951, 0
        %959 = vmatpush.bf16.xpose.msra.mxu0 0
        %960 = vmatpush.bf16.xpose.msra.mxu0 0
        %961 = vmatpush.bf16.xpose.msra.mxu0 0
        %962 = vmatpush.bf16.xpose.msra.mxu0 0
        %963 = vmatpush.bf16.xpose.msra.mxu0 0
        %964 = vmatpush.bf16.xpose.msra.mxu0 0
        %965 = vmatpush.bf16.xpose.msra.mxu0 0
        %966 = vmatpush.bf16.xpose.msra.mxu0 %v957
        %967 = vmatmul.bf16.gmra.mxu0 %v954
        %v968 = vpop.f32.mrf.mxu0
        %v969 = vadd.f32 0.0, %v968
        %v970 = vpop.f32.mrf.mxu0
        %v971 = vadd.f32 0.0, %v970
        %972 = vdwg.mxu0
        %v975 = vunpack.c.l.b16 %v911
        %v976 = vunpack.c.l.b16 %v912
        %v977 = vpack.c.b16 %v976, %v975
        %v980 = vunpack.c.l.b16 %v915
        %v981 = vunpack.c.l.b16 %v916
        %v982 = vpack.c.b16 %v981, %v980
        %v984 = vsel %vm952, %v977, 0
        %v987 = vsel %vm952, %v982, 0
        %989 = vmatpush.bf16.xpose.msra.mxu0 0
        %990 = vmatpush.bf16.xpose.msra.mxu0 0
        %991 = vmatpush.bf16.xpose.msra.mxu0 0
        %992 = vmatpush.bf16.xpose.msra.mxu0 0
        %993 = vmatpush.bf16.xpose.msra.mxu0 0
        %994 = vmatpush.bf16.xpose.msra.mxu0 0
        %995 = vmatpush.bf16.xpose.msra.mxu0 0
        %996 = vmatpush.bf16.xpose.msra.mxu0 %v987
        %997 = vmatmul.bf16.gmra.mxu0 %v984
        %v998 = vpop.f32.mrf.mxu0
        %v999 = vadd.f32 0.0, %v998
        %v1000 = vpop.f32.mrf.mxu0
        %v1001 = vadd.f32 0.0, %v1000
        %1002 = vdwg.mxu0
        %vm1003 = vcmask 130048
        %v1004 = vsel %vm1003, %v969, -inf
        %1005 = vmax.xlane.f32.xlu0 %v1004
        %v1006 = vpop.xlane.xlu0 %1005
        %v1007 = vsel %vm1003, %v971, -inf
        %1008 = vmax.xlane.f32.xlu0 %v1007
        %v1009 = vpop.xlane.xlu0 %1008
        %v1010 = vsel %vm1003, %v999, -inf
        %1011 = vmax.xlane.f32.xlu0 %v1010
        %v1012 = vpop.xlane.xlu0 %1011
        %v1013 = vsel %vm1003, %v1001, -inf
        %1014 = vmax.xlane.f32.xlu0 %v1013
        %v1015 = vpop.xlane.xlu0 %1014
        %v1016 = vsub.f32 %v969, %v1006
        %v1017 = vsub.f32 %v971, %v1009
        %v1018 = vsub.f32 %v999, %v1012
        %v1019 = vsub.f32 %v1001, %v1015
        %v1020 = vmul.f32 %v1016, 1.442695
        %v1021 = vpow.pop %v1020
        %v1022 = vmul.f32 %v1017, 1.442695
        %v1023 = vpow.pop %v1022
        %v1024 = vmul.f32 %v1018, 1.442695
        %v1025 = vpow.pop %v1024
        %v1026 = vmul.f32 %v1019, 1.442695
        %v1027 = vpow.pop %v1026
        %v1028 = vsel %vm1003, %v1021, 0.0
        %1029 = vadd.xlane.f32.xlu0 %v1028
        %v1030 = vpop.xlane.xlu0 %1029
        %v1031 = vsel %vm1003, %v1023, 0.0
        %1032 = vadd.xlane.f32.xlu0 %v1031
        %v1033 = vpop.xlane.xlu0 %1032
        %v1034 = vsel %vm1003, %v1025, 0.0
        %1035 = vadd.xlane.f32.xlu0 %v1034
        %v1036 = vpop.xlane.xlu0 %1035
        %v1037 = vsel %vm1003, %v1027, 0.0
        %1038 = vadd.xlane.f32.xlu0 %v1037
        %v1039 = vpop.xlane.xlu0 %1038
        %v1040 = vrcp.pop %v1030
        %v1041 = vrcp.pop %v1033
        %v1042 = vrcp.pop %v1036
        %v1043 = vrcp.pop %v1039
        %v1044 = vmul.f32 %v1021, %v1040
        %v1045 = vmul.f32 %v1023, %v1041
        %v1046 = vmul.f32 %v1025, %v1042
        %v1047 = vmul.f32 %v1027, %v1043
        %v1048 = vpack.c.bf16 %v1044, %v1044
        %v1049 = vpack.c.bf16 %v1045, %v1045
        %v1050 = vpack.c.bf16 %v1046, %v1046
        %v1051 = vpack.c.bf16 %v1047, %v1047
        %v1054 = vunpack.c.l.b16 %v1048
        %v1055 = vunpack.c.l.b16 %v1049
        %v1056 = vpack.c.b16 %v1055, %v1054
        %v1059 = vunpack.c.l.b16 %v917
        %v1060 = vunpack.c.l.b16 %v918
        %v1061 = vpack.c.b16 %v1060, %v1059
        %v1064 = vsel %vm1003, %v1056, 0
        %1066 = vmatpush.bf16.msra.mxu0 0
        %1067 = vmatpush.bf16.msra.mxu0 0
        %1068 = vmatpush.bf16.msra.mxu0 0
        %1069 = vmatpush.bf16.msra.mxu0 0
        %1070 = vmatpush.bf16.msra.mxu0 0
        %1071 = vmatpush.bf16.msra.mxu0 0
        %1072 = vmatpush.bf16.msra.mxu0 0
        %1073 = vmatpush.bf16.msra.mxu0 %v1061
        %1074 = vmatmul.bf16.gmra.mxu0 %v1064
        %v1075 = vpop.f32.mrf.mxu0
        %v1076 = vadd.f32 0.0, %v1075
        %v1077 = vpop.f32.mrf.mxu0
        %v1078 = vadd.f32 0.0, %v1077
        %1079 = vdwg.mxu0
        %v1082 = vunpack.c.l.b16 %v1050
        %v1083 = vunpack.c.l.b16 %v1051
        %v1084 = vpack.c.b16 %v1083, %v1082
        %v1087 = vunpack.c.l.b16 %v919
        %v1088 = vunpack.c.l.b16 %v920
        %v1089 = vpack.c.b16 %v1088, %v1087
        %v1092 = vsel %vm1003, %v1084, 0
        %1094 = vmatpush.bf16.msra.mxu0 0
        %1095 = vmatpush.bf16.msra.mxu0 0
        %1096 = vmatpush.bf16.msra.mxu0 0
        %1097 = vmatpush.bf16.msra.mxu0 0
        %1098 = vmatpush.bf16.msra.mxu0 0
        %1099 = vmatpush.bf16.msra.mxu0 0
        %1100 = vmatpush.bf16.msra.mxu0 0
        %1101 = vmatpush.bf16.msra.mxu0 %v1089
        %1102 = vmatmul.bf16.gmra.mxu0 %v1092
        %v1103 = vpop.f32.mrf.mxu0
        %v1104 = vadd.f32 0.0, %v1103
        %v1105 = vpop.f32.mrf.mxu0
        %v1106 = vadd.f32 0.0, %v1105
        %1107 = vdwg.mxu0
        %v1108 = vpack.c.bf16 %v1078, %v1076
        %v1109 = vpack.c.bf16 %v1106, %v1104
        %v1114 = vunpack.c.l.b16 %v921
        %v1115 = vunpack.c.l.b16 %v922
        %v1116 = vunpack.c.l.b16 %v923
        %v1117 = vunpack.c.l.b16 %v924
        %v1118 = vpack.c.b16 %v1115, %v1114
        %v1119 = vpack.c.b16 %v1117, %v1116
        %v1123 = vsel %vm952, %v1108, 0
        %v1126 = vsel %vm952, %v1109, 0
        %1128 = vmatpush.bf16.msra.mxu0 0
        %1129 = vmatpush.bf16.msra.mxu0 0
        %1130 = vmatpush.bf16.msra.mxu0 0
        %1131 = vmatpush.bf16.msra.mxu0 0
        %1132 = vmatpush.bf16.msra.mxu0 0
        %1133 = vmatpush.bf16.msra.mxu0 0
        %1134 = vmatpush.bf16.msra.mxu0 %v1119
        %1135 = vmatpush.bf16.msra.mxu0 %v1118
        %1136 = vmatmul.bf16.gmra.mxu0 %v1123
        %v1137 = vpop.f32.mrf.mxu0
        %v1138 = vadd.f32 0.0, %v1137
        %v1139 = vpop.f32.mrf.mxu0
        %v1140 = vadd.f32 0.0, %v1139
        %1141 = vmatmul.bf16.gmra.mxu0 %v1126
        %v1142 = vpop.f32.mrf.mxu0
        %v1143 = vadd.f32 0.0, %v1142
        %v1144 = vpop.f32.mrf.mxu0
        %v1145 = vadd.f32 0.0, %v1144
        %1146 = vdwg.mxu0
        %v1147 = vadd.f32 %v941, %v1138
        %v1148 = vadd.f32 %v941, %v1140
        %v1149 = vadd.f32 %v941, %v1143
        %v1150 = vadd.f32 %v941, %v1145
        %1151 = vrot.lane.b32.xlu0 %v946, 96
        %v1152 = vpop.permute.xlu0 %1151
        %1153 = vrot.lane.b32.xlu0 %v951, 96
        %v1154 = vpop.permute.xlu0 %1153
        %v1156 = vsel %vm952, %v1152, 0
        %v1159 = vsel %vm952, %v1154, 0
        %1161 = vmatpush.bf16.xpose.msra.mxu0 0
        %1162 = vmatpush.bf16.xpose.msra.mxu0 0
        %1163 = vmatpush.bf16.xpose.msra.mxu0 0
        %1164 = vmatpush.bf16.xpose.msra.mxu0 0
        %1165 = vmatpush.bf16.xpose.msra.mxu0 0
        %1166 = vmatpush.bf16.xpose.msra.mxu0 0
        %1167 = vmatpush.bf16.xpose.msra.mxu0 0
        %1168 = vmatpush.bf16.xpose.msra.mxu0 %v1159
        %1169 = vmatmul.bf16.gmra.mxu0 %v1156
        %v1170 = vpop.f32.mrf.mxu0
        %v1171 = vadd.f32 0.0, %v1170
        %v1172 = vpop.f32.mrf.mxu0
        %v1173 = vadd.f32 0.0, %v1172
        %1174 = vdwg.mxu0
        %1175 = vrot.lane.b32.xlu0 %v977, 96
        %v1176 = vpop.permute.xlu0 %1175
        %1177 = vrot.lane.b32.xlu0 %v982, 96
        %v1178 = vpop.permute.xlu0 %1177
        %v1180 = vsel %vm952, %v1176, 0
        %v1183 = vsel %vm952, %v1178, 0
        %1185 = vmatpush.bf16.xpose.msra.mxu0 0
        %1186 = vmatpush.bf16.xpose.msra.mxu0 0
        %1187 = vmatpush.bf16.xpose.msra.mxu0 0
        %1188 = vmatpush.bf16.xpose.msra.mxu0 0
        %1189 = vmatpush.bf16.xpose.msra.mxu0 0
        %1190 = vmatpush.bf16.xpose.msra.mxu0 0
        %1191 = vmatpush.bf16.xpose.msra.mxu0 0
        %1192 = vmatpush.bf16.xpose.msra.mxu0 %v1183
        %1193 = vmatmul.bf16.gmra.mxu0 %v1180
        %v1194 = vpop.f32.mrf.mxu0
        %v1195 = vadd.f32 0.0, %v1194
        %v1196 = vpop.f32.mrf.mxu0
        %v1197 = vadd.f32 0.0, %v1196
        %1198 = vdwg.mxu0
        %v1199 = vsel %vm1003, %v1171, -inf
        %1200 = vmax.xlane.f32.xlu0 %v1199
        %v1201 = vpop.xlane.xlu0 %1200
        %v1202 = vsel %vm1003, %v1173, -inf
        %1203 = vmax.xlane.f32.xlu0 %v1202
        %v1204 = vpop.xlane.xlu0 %1203
        %v1205 = vsel %vm1003, %v1195, -inf
        %1206 = vmax.xlane.f32.xlu0 %v1205
        %v1207 = vpop.xlane.xlu0 %1206
        %v1208 = vsel %vm1003, %v1197, -inf
        %1209 = vmax.xlane.f32.xlu0 %v1208
        %v1210 = vpop.xlane.xlu0 %1209
        %v1211 = vsub.f32 %v1171, %v1201
        %v1212 = vsub.f32 %v1173, %v1204
        %v1213 = vsub.f32 %v1195, %v1207
        %v1214 = vsub.f32 %v1197, %v1210
        %v1215 = vmul.f32 %v1211, 1.442695
        %v1216 = vpow.pop %v1215
        %v1217 = vmul.f32 %v1212, 1.442695
        %v1218 = vpow.pop %v1217
        %v1219 = vmul.f32 %v1213, 1.442695
        %v1220 = vpow.pop %v1219
        %v1221 = vmul.f32 %v1214, 1.442695
        %v1222 = vpow.pop %v1221
        %v1223 = vsel %vm1003, %v1216, 0.0
        %1224 = vadd.xlane.f32.xlu0 %v1223
        %v1225 = vpop.xlane.xlu0 %1224
        %v1226 = vsel %vm1003, %v1218, 0.0
        %1227 = vadd.xlane.f32.xlu0 %v1226
        %v1228 = vpop.xlane.xlu0 %1227
        %v1229 = vsel %vm1003, %v1220, 0.0
        %1230 = vadd.xlane.f32.xlu0 %v1229
        %v1231 = vpop.xlane.xlu0 %1230
        %v1232 = vsel %vm1003, %v1222, 0.0
        %1233 = vadd.xlane.f32.xlu0 %v1232
        %v1234 = vpop.xlane.xlu0 %1233
        %v1235 = vrcp.pop %v1225
        %v1236 = vrcp.pop %v1228
        %v1237 = vrcp.pop %v1231
        %v1238 = vrcp.pop %v1234
        %v1239 = vmul.f32 %v1216, %v1235
        %v1240 = vmul.f32 %v1218, %v1236
        %v1241 = vmul.f32 %v1220, %v1237
        %v1242 = vmul.f32 %v1222, %v1238
        %v1243 = vpack.c.bf16 %v1239, %v1239
        %v1244 = vpack.c.bf16 %v1240, %v1240
        %v1245 = vpack.c.bf16 %v1241, %v1241
        %v1246 = vpack.c.bf16 %v1242, %v1242
        %v1249 = vunpack.c.l.b16 %v1243
        %v1250 = vunpack.c.l.b16 %v1244
        %v1251 = vpack.c.b16 %v1250, %v1249
        %1252 = vrot.lane.b32.xlu0 %v1061, 96
        %v1253 = vpop.permute.xlu0 %1252
        %v1256 = vsel %vm1003, %v1251, 0
        %1258 = vmatpush.bf16.msra.mxu0 0
        %1259 = vmatpush.bf16.msra.mxu0 0
        %1260 = vmatpush.bf16.msra.mxu0 0
        %1261 = vmatpush.bf16.msra.mxu0 0
        %1262 = vmatpush.bf16.msra.mxu0 0
        %1263 = vmatpush.bf16.msra.mxu0 0
        %1264 = vmatpush.bf16.msra.mxu0 0
        %1265 = vmatpush.bf16.msra.mxu0 %v1253
        %1266 = vmatmul.bf16.gmra.mxu0 %v1256
        %v1267 = vpop.f32.mrf.mxu0
        %v1268 = vadd.f32 0.0, %v1267
        %v1269 = vpop.f32.mrf.mxu0
        %v1270 = vadd.f32 0.0, %v1269
        %1271 = vdwg.mxu0
        %v1274 = vunpack.c.l.b16 %v1245
        %v1275 = vunpack.c.l.b16 %v1246
        %v1276 = vpack.c.b16 %v1275, %v1274
        %1277 = vrot.lane.b32.xlu0 %v1089, 96
        %v1278 = vpop.permute.xlu0 %1277
        %v1281 = vsel %vm1003, %v1276, 0
        %1283 = vmatpush.bf16.msra.mxu0 0
        %1284 = vmatpush.bf16.msra.mxu0 0
        %1285 = vmatpush.bf16.msra.mxu0 0
        %1286 = vmatpush.bf16.msra.mxu0 0
        %1287 = vmatpush.bf16.msra.mxu0 0
        %1288 = vmatpush.bf16.msra.mxu0 0
        %1289 = vmatpush.bf16.msra.mxu0 0
        %1290 = vmatpush.bf16.msra.mxu0 %v1278
        %1291 = vmatmul.bf16.gmra.mxu0 %v1281
        %v1292 = vpop.f32.mrf.mxu0
        %v1293 = vadd.f32 0.0, %v1292
        %v1294 = vpop.f32.mrf.mxu0
        %v1295 = vadd.f32 0.0, %v1294
        %1296 = vdwg.mxu0
        %v1297 = vpack.c.bf16 %v1270, %v1268
        %v1298 = vpack.c.bf16 %v1295, %v1293
        %v1303 = vunpack.c.l.b16 %v925
        %v1304 = vunpack.c.l.b16 %v926
        %v1305 = vunpack.c.l.b16 %v927
        %v1306 = vunpack.c.l.b16 %v928
        %v1307 = vpack.c.b16 %v1304, %v1303
        %v1308 = vpack.c.b16 %v1306, %v1305
        %v1312 = vsel %vm952, %v1297, 0
        %v1315 = vsel %vm952, %v1298, 0
        %1317 = vmatpush.bf16.msra.mxu0 0
        %1318 = vmatpush.bf16.msra.mxu0 0
        %1319 = vmatpush.bf16.msra.mxu0 0
        %1320 = vmatpush.bf16.msra.mxu0 0
        %1321 = vmatpush.bf16.msra.mxu0 0
        %1322 = vmatpush.bf16.msra.mxu0 0
        %1323 = vmatpush.bf16.msra.mxu0 %v1308
        %1324 = vmatpush.bf16.msra.mxu0 %v1307
        %1325 = vmatmul.bf16.gmra.mxu0 %v1312
        %v1326 = vpop.f32.mrf.mxu0
        %v1327 = vadd.f32 0.0, %v1326
        %v1328 = vpop.f32.mrf.mxu0
        %v1329 = vadd.f32 0.0, %v1328
        %1330 = vmatmul.bf16.gmra.mxu0 %v1315
        %v1331 = vpop.f32.mrf.mxu0
        %v1332 = vadd.f32 0.0, %v1331
        %v1333 = vpop.f32.mrf.mxu0
        %v1334 = vadd.f32 0.0, %v1333
        %1335 = vdwg.mxu0
        %v1336 = vadd.f32 %v1147, %v1327
        %v1337 = vadd.f32 %v1148, %v1329
        %v1338 = vadd.f32 %v1149, %v1332
        %v1339 = vadd.f32 %v1150, %v1334
        %1340 = vrot.lane.b32.xlu0 %v946, 64
        %v1341 = vpop.permute.xlu0 %1340
        %1342 = vrot.lane.b32.xlu0 %v951, 64
        %v1343 = vpop.permute.xlu0 %1342
        %v1345 = vsel %vm952, %v1341, 0
        %v1348 = vsel %vm952, %v1343, 0
        %1350 = vmatpush.bf16.xpose.msra.mxu0 0
        %1351 = vmatpush.bf16.xpose.msra.mxu0 0
        %1352 = vmatpush.bf16.xpose.msra.mxu0 0
        %1353 = vmatpush.bf16.xpose.msra.mxu0 0
        %1354 = vmatpush.bf16.xpose.msra.mxu0 0
        %1355 = vmatpush.bf16.xpose.msra.mxu0 0
        %1356 = vmatpush.bf16.xpose.msra.mxu0 0
        %1357 = vmatpush.bf16.xpose.msra.mxu0 %v1348
        %1358 = vmatmul.bf16.gmra.mxu0 %v1345
        %v1359 = vpop.f32.mrf.mxu0
        %v1360 = vadd.f32 0.0, %v1359
        %v1361 = vpop.f32.mrf.mxu0
        %v1362 = vadd.f32 0.0, %v1361
        %1363 = vdwg.mxu0
        %1364 = vrot.lane.b32.xlu0 %v977, 64
        %v1365 = vpop.permute.xlu0 %1364
        %1366 = vrot.lane.b32.xlu0 %v982, 64
        %v1367 = vpop.permute.xlu0 %1366
        %v1369 = vsel %vm952, %v1365, 0
        %v1372 = vsel %vm952, %v1367, 0
        %1374 = vmatpush.bf16.xpose.msra.mxu0 0
        %1375 = vmatpush.bf16.xpose.msra.mxu0 0
        %1376 = vmatpush.bf16.xpose.msra.mxu0 0
        %1377 = vmatpush.bf16.xpose.msra.mxu0 0
        %1378 = vmatpush.bf16.xpose.msra.mxu0 0
        %1379 = vmatpush.bf16.xpose.msra.mxu0 0
        %1380 = vmatpush.bf16.xpose.msra.mxu0 0
        %1381 = vmatpush.bf16.xpose.msra.mxu0 %v1372
        %1382 = vmatmul.bf16.gmra.mxu0 %v1369
        %v1383 = vpop.f32.mrf.mxu0
        %v1384 = vadd.f32 0.0, %v1383
        %v1385 = vpop.f32.mrf.mxu0
        %v1386 = vadd.f32 0.0, %v1385
        %1387 = vdwg.mxu0
        %v1388 = vsel %vm1003, %v1360, -inf
        %1389 = vmax.xlane.f32.xlu0 %v1388
        %v1390 = vpop.xlane.xlu0 %1389
        %v1391 = vsel %vm1003, %v1362, -inf
        %1392 = vmax.xlane.f32.xlu0 %v1391
        %v1393 = vpop.xlane.xlu0 %1392
        %v1394 = vsel %vm1003, %v1384, -inf
        %1395 = vmax.xlane.f32.xlu0 %v1394
        %v1396 = vpop.xlane.xlu0 %1395
        %v1397 = vsel %vm1003, %v1386, -inf
        %1398 = vmax.xlane.f32.xlu0 %v1397
        %v1399 = vpop.xlane.xlu0 %1398
        %v1400 = vsub.f32 %v1360, %v1390
        %v1401 = vsub.f32 %v1362, %v1393
        %v1402 = vsub.f32 %v1384, %v1396
        %v1403 = vsub.f32 %v1386, %v1399
        %v1404 = vmul.f32 %v1400, 1.442695
        %v1405 = vpow.pop %v1404
        %v1406 = vmul.f32 %v1401, 1.442695
        %v1407 = vpow.pop %v1406
        %v1408 = vmul.f32 %v1402, 1.442695
        %v1409 = vpow.pop %v1408
        %v1410 = vmul.f32 %v1403, 1.442695
        %v1411 = vpow.pop %v1410
        %v1412 = vsel %vm1003, %v1405, 0.0
        %1413 = vadd.xlane.f32.xlu0 %v1412
        %v1414 = vpop.xlane.xlu0 %1413
        %v1415 = vsel %vm1003, %v1407, 0.0
        %1416 = vadd.xlane.f32.xlu0 %v1415
        %v1417 = vpop.xlane.xlu0 %1416
        %v1418 = vsel %vm1003, %v1409, 0.0
        %1419 = vadd.xlane.f32.xlu0 %v1418
        %v1420 = vpop.xlane.xlu0 %1419
        %v1421 = vsel %vm1003, %v1411, 0.0
        %1422 = vadd.xlane.f32.xlu0 %v1421
        %v1423 = vpop.xlane.xlu0 %1422
        %v1424 = vrcp.pop %v1414
        %v1425 = vrcp.pop %v1417
        %v1426 = vrcp.pop %v1420
        %v1427 = vrcp.pop %v1423
        %v1428 = vmul.f32 %v1405, %v1424
        %v1429 = vmul.f32 %v1407, %v1425
        %v1430 = vmul.f32 %v1409, %v1426
        %v1431 = vmul.f32 %v1411, %v1427
        %v1432 = vpack.c.bf16 %v1428, %v1428
        %v1433 = vpack.c.bf16 %v1429, %v1429
        %v1434 = vpack.c.bf16 %v1430, %v1430
        %v1435 = vpack.c.bf16 %v1431, %v1431
        %v1438 = vunpack.c.l.b16 %v1432
        %v1439 = vunpack.c.l.b16 %v1433
        %v1440 = vpack.c.b16 %v1439, %v1438
        %1441 = vrot.lane.b32.xlu0 %v1061, 64
        %v1442 = vpop.permute.xlu0 %1441
        %v1445 = vsel %vm1003, %v1440, 0
        %1447 = vmatpush.bf16.msra.mxu0 0
        %1448 = vmatpush.bf16.msra.mxu0 0
        %1449 = vmatpush.bf16.msra.mxu0 0
        %1450 = vmatpush.bf16.msra.mxu0 0
        %1451 = vmatpush.bf16.msra.mxu0 0
        %1452 = vmatpush.bf16.msra.mxu0 0
        %1453 = vmatpush.bf16.msra.mxu0 0
        %1454 = vmatpush.bf16.msra.mxu0 %v1442
        %1455 = vmatmul.bf16.gmra.mxu0 %v1445
        %v1456 = vpop.f32.mrf.mxu0
        %v1457 = vadd.f32 0.0, %v1456
        %v1458 = vpop.f32.mrf.mxu0
        %v1459 = vadd.f32 0.0, %v1458
        %1460 = vdwg.mxu0
        %v1463 = vunpack.c.l.b16 %v1434
        %v1464 = vunpack.c.l.b16 %v1435
        %v1465 = vpack.c.b16 %v1464, %v1463
        %1466 = vrot.lane.b32.xlu0 %v1089, 64
        %v1467 = vpop.permute.xlu0 %1466
        %v1470 = vsel %vm1003, %v1465, 0
        %1472 = vmatpush.bf16.msra.mxu0 0
        %1473 = vmatpush.bf16.msra.mxu0 0
        %1474 = vmatpush.bf16.msra.mxu0 0
        %1475 = vmatpush.bf16.msra.mxu0 0
        %1476 = vmatpush.bf16.msra.mxu0 0
        %1477 = vmatpush.bf16.msra.mxu0 0
        %1478 = vmatpush.bf16.msra.mxu0 0
        %1479 = vmatpush.bf16.msra.mxu0 %v1467
        %1480 = vmatmul.bf16.gmra.mxu0 %v1470
        %v1481 = vpop.f32.mrf.mxu0
        %v1482 = vadd.f32 0.0, %v1481
        %v1483 = vpop.f32.mrf.mxu0
        %v1484 = vadd.f32 0.0, %v1483
        %1485 = vdwg.mxu0
        %v1486 = vpack.c.bf16 %v1459, %v1457
        %v1487 = vpack.c.bf16 %v1484, %v1482
        %v1492 = vunpack.c.l.b16 %v929
        %v1493 = vunpack.c.l.b16 %v930
        %v1494 = vunpack.c.l.b16 %v931
        %v1495 = vunpack.c.l.b16 %v932
        %v1496 = vpack.c.b16 %v1493, %v1492
        %v1497 = vpack.c.b16 %v1495, %v1494
        %v1501 = vsel %vm952, %v1486, 0
        %v1504 = vsel %vm952, %v1487, 0
        %1506 = vmatpush.bf16.msra.mxu0 0
        %1507 = vmatpush.bf16.msra.mxu0 0
        %1508 = vmatpush.bf16.msra.mxu0 0
        %1509 = vmatpush.bf16.msra.mxu0 0
        %1510 = vmatpush.bf16.msra.mxu0 0
        %1511 = vmatpush.bf16.msra.mxu0 0
        %1512 = vmatpush.bf16.msra.mxu0 %v1497
        %1513 = vmatpush.bf16.msra.mxu0 %v1496
        %1514 = vmatmul.bf16.gmra.mxu0 %v1501
        %v1515 = vpop.f32.mrf.mxu0
        %v1516 = vadd.f32 0.0, %v1515
        %v1517 = vpop.f32.mrf.mxu0
        %v1518 = vadd.f32 0.0, %v1517
        %1519 = vmatmul.bf16.gmra.mxu0 %v1504
        %v1520 = vpop.f32.mrf.mxu0
        %v1521 = vadd.f32 0.0, %v1520
        %v1522 = vpop.f32.mrf.mxu0
        %v1523 = vadd.f32 0.0, %v1522
        %1524 = vdwg.mxu0
        %v1525 = vadd.f32 %v1336, %v1516
        %v1526 = vadd.f32 %v1337, %v1518
        %v1527 = vadd.f32 %v1338, %v1521
        %v1528 = vadd.f32 %v1339, %v1523
        %1529 = vrot.lane.b32.xlu0 %v946, 32
        %v1530 = vpop.permute.xlu0 %1529
        %1531 = vrot.lane.b32.xlu0 %v951, 32
        %v1532 = vpop.permute.xlu0 %1531
        %v1534 = vsel %vm952, %v1530, 0
        %v1537 = vsel %vm952, %v1532, 0
        %1539 = vmatpush.bf16.xpose.msra.mxu0 0
        %1540 = vmatpush.bf16.xpose.msra.mxu0 0
        %1541 = vmatpush.bf16.xpose.msra.mxu0 0
        %1542 = vmatpush.bf16.xpose.msra.mxu0 0
        %1543 = vmatpush.bf16.xpose.msra.mxu0 0
        %1544 = vmatpush.bf16.xpose.msra.mxu0 0
        %1545 = vmatpush.bf16.xpose.msra.mxu0 0
        %1546 = vmatpush.bf16.xpose.msra.mxu0 %v1537
        %1547 = vmatmul.bf16.gmra.mxu0 %v1534
        %v1548 = vpop.f32.mrf.mxu0
        %v1549 = vadd.f32 0.0, %v1548
        %v1550 = vpop.f32.mrf.mxu0
        %v1551 = vadd.f32 0.0, %v1550
        %1552 = vdwg.mxu0
        %1553 = vrot.lane.b32.xlu0 %v977, 32
        %v1554 = vpop.permute.xlu0 %1553
        %1555 = vrot.lane.b32.xlu0 %v982, 32
        %v1556 = vpop.permute.xlu0 %1555
        %v1558 = vsel %vm952, %v1554, 0
        %v1561 = vsel %vm952, %v1556, 0
        %1563 = vmatpush.bf16.xpose.msra.mxu0 0
        %1564 = vmatpush.bf16.xpose.msra.mxu0 0
        %1565 = vmatpush.bf16.xpose.msra.mxu0 0
        %1566 = vmatpush.bf16.xpose.msra.mxu0 0
        %1567 = vmatpush.bf16.xpose.msra.mxu0 0
        %1568 = vmatpush.bf16.xpose.msra.mxu0 0
        %1569 = vmatpush.bf16.xpose.msra.mxu0 0
        %1570 = vmatpush.bf16.xpose.msra.mxu0 %v1561
        %1571 = vmatmul.bf16.gmra.mxu0 %v1558
        %v1572 = vpop.f32.mrf.mxu0
        %v1573 = vadd.f32 0.0, %v1572
        %v1574 = vpop.f32.mrf.mxu0
        %v1575 = vadd.f32 0.0, %v1574
        %1576 = vdwg.mxu0
        %v1577 = vsel %vm1003, %v1549, -inf
        %1578 = vmax.xlane.f32.xlu0 %v1577
        %v1579 = vpop.xlane.xlu0 %1578
        %v1580 = vsel %vm1003, %v1551, -inf
        %1581 = vmax.xlane.f32.xlu0 %v1580
        %v1582 = vpop.xlane.xlu0 %1581
        %v1583 = vsel %vm1003, %v1573, -inf
        %1584 = vmax.xlane.f32.xlu0 %v1583
        %v1585 = vpop.xlane.xlu0 %1584
        %v1586 = vsel %vm1003, %v1575, -inf
        %1587 = vmax.xlane.f32.xlu0 %v1586
        %v1588 = vpop.xlane.xlu0 %1587
        %v1589 = vsub.f32 %v1549, %v1579
        %v1590 = vsub.f32 %v1551, %v1582
        %v1591 = vsub.f32 %v1573, %v1585
        %v1592 = vsub.f32 %v1575, %v1588
        %v1593 = vmul.f32 %v1589, 1.442695
        %v1594 = vpow.pop %v1593
        %v1595 = vmul.f32 %v1590, 1.442695
        %v1596 = vpow.pop %v1595
        %v1597 = vmul.f32 %v1591, 1.442695
        %v1598 = vpow.pop %v1597
        %v1599 = vmul.f32 %v1592, 1.442695
        %v1600 = vpow.pop %v1599
        %v1601 = vsel %vm1003, %v1594, 0.0
        %1602 = vadd.xlane.f32.xlu0 %v1601
        %v1603 = vpop.xlane.xlu0 %1602
        %v1604 = vsel %vm1003, %v1596, 0.0
        %1605 = vadd.xlane.f32.xlu0 %v1604
        %v1606 = vpop.xlane.xlu0 %1605
        %v1607 = vsel %vm1003, %v1598, 0.0
        %1608 = vadd.xlane.f32.xlu0 %v1607
        %v1609 = vpop.xlane.xlu0 %1608
        %v1610 = vsel %vm1003, %v1600, 0.0
        %1611 = vadd.xlane.f32.xlu0 %v1610
        %v1612 = vpop.xlane.xlu0 %1611
        %v1613 = vrcp.pop %v1603
        %v1614 = vrcp.pop %v1606
        %v1615 = vrcp.pop %v1609
        %v1616 = vrcp.pop %v1612
        %v1617 = vmul.f32 %v1594, %v1613
        %v1618 = vmul.f32 %v1596, %v1614
        %v1619 = vmul.f32 %v1598, %v1615
        %v1620 = vmul.f32 %v1600, %v1616
        %v1621 = vpack.c.bf16 %v1617, %v1617
        %v1622 = vpack.c.bf16 %v1618, %v1618
        %v1623 = vpack.c.bf16 %v1619, %v1619
        %v1624 = vpack.c.bf16 %v1620, %v1620
        %v1627 = vunpack.c.l.b16 %v1621
        %v1628 = vunpack.c.l.b16 %v1622
        %v1629 = vpack.c.b16 %v1628, %v1627
        %1630 = vrot.lane.b32.xlu0 %v1061, 32
        %v1631 = vpop.permute.xlu0 %1630
        %v1634 = vsel %vm1003, %v1629, 0
        %1636 = vmatpush.bf16.msra.mxu0 0
        %1637 = vmatpush.bf16.msra.mxu0 0
        %1638 = vmatpush.bf16.msra.mxu0 0
        %1639 = vmatpush.bf16.msra.mxu0 0
        %1640 = vmatpush.bf16.msra.mxu0 0
        %1641 = vmatpush.bf16.msra.mxu0 0
        %1642 = vmatpush.bf16.msra.mxu0 0
        %1643 = vmatpush.bf16.msra.mxu0 %v1631
        %1644 = vmatmul.bf16.gmra.mxu0 %v1634
        %v1645 = vpop.f32.mrf.mxu0
        %v1646 = vadd.f32 0.0, %v1645
        %v1647 = vpop.f32.mrf.mxu0
        %v1648 = vadd.f32 0.0, %v1647
        %1649 = vdwg.mxu0
        %v1652 = vunpack.c.l.b16 %v1623
        %v1653 = vunpack.c.l.b16 %v1624
        %v1654 = vpack.c.b16 %v1653, %v1652
        %1655 = vrot.lane.b32.xlu0 %v1089, 32
        %v1656 = vpop.permute.xlu0 %1655
        %v1659 = vsel %vm1003, %v1654, 0
        %1661 = vmatpush.bf16.msra.mxu0 0
        %1662 = vmatpush.bf16.msra.mxu0 0
        %1663 = vmatpush.bf16.msra.mxu0 0
        %1664 = vmatpush.bf16.msra.mxu0 0
        %1665 = vmatpush.bf16.msra.mxu0 0
        %1666 = vmatpush.bf16.msra.mxu0 0
        %1667 = vmatpush.bf16.msra.mxu0 0
        %1668 = vmatpush.bf16.msra.mxu0 %v1656
        %1669 = vmatmul.bf16.gmra.mxu0 %v1659
        %v1670 = vpop.f32.mrf.mxu0
        %v1671 = vadd.f32 0.0, %v1670
        %v1672 = vpop.f32.mrf.mxu0
        %v1673 = vadd.f32 0.0, %v1672
        %1674 = vdwg.mxu0
        %v1675 = vpack.c.bf16 %v1648, %v1646
        %v1676 = vpack.c.bf16 %v1673, %v1671
        %v1681 = vunpack.c.l.b16 %v933
        %v1682 = vunpack.c.l.b16 %v934
        %v1683 = vunpack.c.l.b16 %v935
        %v1684 = vunpack.c.l.b16 %v936
        %v1685 = vpack.c.b16 %v1682, %v1681
        %v1686 = vpack.c.b16 %v1684, %v1683
        %v1690 = vsel %vm952, %v1675, 0
        %v1693 = vsel %vm952, %v1676, 0
        %1695 = vmatpush.bf16.msra.mxu0 0
        %1696 = vmatpush.bf16.msra.mxu0 0
        %1697 = vmatpush.bf16.msra.mxu0 0
        %1698 = vmatpush.bf16.msra.mxu0 0
        %1699 = vmatpush.bf16.msra.mxu0 0
        %1700 = vmatpush.bf16.msra.mxu0 0
        %1701 = vmatpush.bf16.msra.mxu0 %v1686
        %1702 = vmatpush.bf16.msra.mxu0 %v1685
        %1703 = vmatmul.bf16.gmra.mxu0 %v1690
        %v1704 = vpop.f32.mrf.mxu0
        %v1705 = vadd.f32 0.0, %v1704
        %v1706 = vpop.f32.mrf.mxu0
        %v1707 = vadd.f32 0.0, %v1706
        %1708 = vmatmul.bf16.gmra.mxu0 %v1693
        %v1709 = vpop.f32.mrf.mxu0
        %v1710 = vadd.f32 0.0, %v1709
        %v1711 = vpop.f32.mrf.mxu0
        %v1712 = vadd.f32 0.0, %v1711
        %1713 = vdwg.mxu0
        %v1714 = vadd.f32 %v1525, %v1705
        %v1715 = vadd.f32 %v1526, %v1707
        %v1716 = vadd.f32 %v1527, %v1710
        %v1717 = vadd.f32 %v1528, %v1712
        %v1718 = vadd.f32 %v575, %v1714
        %v1719 = vadd.f32 %v576, %v1715
        %v1720 = vadd.f32 %v577, %v1716
        %v1721 = vadd.f32 %v578, %v1717
        %v1722 = vld [vmem:[%s7] sm:$0x1]
        %v1723 = vld [vmem:[%s8] sm:$0x1]
        %1724 = vadd.xlane.f32.xlu0 %v1718
        %v1725 = vpop.xlane.xlu0 %1724
        %1726 = vadd.xlane.f32.xlu0 %v1719
        %v1727 = vpop.xlane.xlu0 %1726
        %1728 = vadd.xlane.f32.xlu0 %v1720
        %v1729 = vpop.xlane.xlu0 %1728
        %1730 = vadd.xlane.f32.xlu0 %v1721
        %v1731 = vpop.xlane.xlu0 %1730
        %v1732 = vmul.f32 %v1725, %v595
        %v1733 = vmul.f32 %v1727, %v595
        %v1734 = vmul.f32 %v1729, %v595
        %v1735 = vmul.f32 %v1731, %v595
        %v1736 = vsub.f32 %v1718, %v1732
        %v1737 = vsub.f32 %v1719, %v1733
        %v1738 = vsub.f32 %v1720, %v1734
        %v1739 = vsub.f32 %v1721, %v1735
        %v1740 = vmul.f32 %v1736, %v1736
        %v1741 = vmul.f32 %v1737, %v1737
        %v1742 = vmul.f32 %v1738, %v1738
        %v1743 = vmul.f32 %v1739, %v1739
        %1744 = vadd.xlane.f32.xlu0 %v1740
        %v1745 = vpop.xlane.xlu0 %1744
        %1746 = vadd.xlane.f32.xlu0 %v1741
        %v1747 = vpop.xlane.xlu0 %1746
        %1748 = vadd.xlane.f32.xlu0 %v1742
        %v1749 = vpop.xlane.xlu0 %1748
        %1750 = vadd.xlane.f32.xlu0 %v1743
        %v1751 = vpop.xlane.xlu0 %1750
        %v1752 = vmul.f32 %v1745, %v595
        %v1753 = vmul.f32 %v1747, %v595
        %v1754 = vmul.f32 %v1749, %v595
        %v1755 = vmul.f32 %v1751, %v595
        %v1756 = vadd.f32 %v1752, 1e-05
        %v1757 = vadd.f32 %v1753, 1e-05
        %v1758 = vadd.f32 %v1754, 1e-05
        %v1759 = vadd.f32 %v1755, 1e-05
        %v1760 = vrsqrt.pop %v1756
        %v1761 = vmul.f32 %v1760, %v1756
        %v1762 = vmul.f32 %v1761, %v1760
        %v1763 = vmul.f32 0.5, %v1762
        %v1764 = vsub.f32 1.5, %v1763
        %v1765 = vmul.f32 %v1760, %v1764
        %vm1766 = vweird.f32 %v1756
        %vm1767 = vweird.f32 %v1760
        %vm1768 = vmor %vm1766, %vm1767
        %v1769 = vsel %vm1768, %v1760, %v1765
        %v1770 = vrsqrt.pop %v1757
        %v1771 = vmul.f32 %v1770, %v1757
        %v1772 = vmul.f32 %v1771, %v1770
        %v1773 = vmul.f32 0.5, %v1772
        %v1774 = vsub.f32 1.5, %v1773
        %v1775 = vmul.f32 %v1770, %v1774
        %vm1776 = vweird.f32 %v1757
        %vm1777 = vweird.f32 %v1770
        %vm1778 = vmor %vm1776, %vm1777
        %v1779 = vsel %vm1778, %v1770, %v1775
        %v1780 = vrsqrt.pop %v1758
        %v1781 = vmul.f32 %v1780, %v1758
        %v1782 = vmul.f32 %v1781, %v1780
        %v1783 = vmul.f32 0.5, %v1782
        %v1784 = vsub.f32 1.5, %v1783
        %v1785 = vmul.f32 %v1780, %v1784
        %vm1786 = vweird.f32 %v1758
        %vm1787 = vweird.f32 %v1780
        %vm1788 = vmor %vm1786, %vm1787
        %v1789 = vsel %vm1788, %v1780, %v1785
        %v1790 = vrsqrt.pop %v1759
        %v1791 = vmul.f32 %v1790, %v1759
        %v1792 = vmul.f32 %v1791, %v1790
        %v1793 = vmul.f32 0.5, %v1792
        %v1794 = vsub.f32 1.5, %v1793
        %v1795 = vmul.f32 %v1790, %v1794
        %vm1796 = vweird.f32 %v1759
        %vm1797 = vweird.f32 %v1790
        %vm1798 = vmor %vm1796, %vm1797
        %v1799 = vsel %vm1798, %v1790, %v1795
        %v1800 = vmul.f32 %v1736, %v1769
        %v1801 = vmul.f32 %v1737, %v1779
        %v1802 = vmul.f32 %v1738, %v1789
        %v1803 = vmul.f32 %v1739, %v1799
        %v1805 = vperm.slane %v1722, 0
        %v1807 = vmul.f32 %v1800, %v1805
        %v1808 = vmul.f32 %v1801, %v1805
        %v1809 = vmul.f32 %v1802, %v1805
        %v1810 = vmul.f32 %v1803, %v1805
        %v1812 = vperm.slane %v1723, 0
        %v1814 = vadd.f32 %v1807, %v1812
        %v1815 = vadd.f32 %v1808, %v1812
        %v1816 = vadd.f32 %v1809, %v1812
        %v1817 = vadd.f32 %v1810, %v1812
        %v1818 = vpack.c.bf16 %v1815, %v1814
        %v1819 = vpack.c.bf16 %v1817, %v1816
        %v1820 = vld [vmem:[#allocation13] sm:$0xff]
        %v1821 = vld [vmem:[#allocation13 + $0x8] sm:$0xff]
        %v1822 = vld [vmem:[#allocation13 + $0x10] sm:$0xff]
        %v1823 = vld [vmem:[#allocation13 + $0x18] sm:$0xff]
        %v1824 = vld [vmem:[#allocation13 + $0x20] sm:$0xff]
        %v1825 = vld [vmem:[#allocation13 + $0x28] sm:$0xff]
        %v1826 = vld [vmem:[#allocation13 + $0x30] sm:$0xff]
        %v1827 = vld [vmem:[#allocation13 + $0x38] sm:$0xff]
        %v1828 = vld [vmem:[#allocation13 + $0x40] sm:$0xff]
        %v1829 = vld [vmem:[#allocation13 + $0x48] sm:$0xff]
        %v1830 = vld [vmem:[#allocation13 + $0x50] sm:$0xff]
        %v1831 = vld [vmem:[#allocation13 + $0x58] sm:$0xff]
        %v1832 = vld [vmem:[#allocation13 + $0x60] sm:$0xff]
        %v1833 = vld [vmem:[#allocation13 + $0x68] sm:$0xff]
        %v1834 = vld [vmem:[#allocation13 + $0x70] sm:$0xff]
        %v1835 = vld [vmem:[#allocation13 + $0x78] sm:$0xff]
        %v1836 = vld [vmem:[%s10] sm:$0x3]
        %v1838 = vperm.slane %v1836, 0
        %v1839 = vperm.slane %v1836, 1
        %v1858 = vunpack.c.l.b16 %v1820
        %v1859 = vunpack.c.h.b16 %v1820
        %v1860 = vunpack.c.l.b16 %v1821
        %v1861 = vunpack.c.h.b16 %v1821
        %v1862 = vunpack.c.l.b16 %v1822
        %v1863 = vunpack.c.h.b16 %v1822
        %v1864 = vunpack.c.l.b16 %v1823
        %v1865 = vunpack.c.h.b16 %v1823
        %v1866 = vunpack.c.l.b16 %v1824
        %v1867 = vunpack.c.h.b16 %v1824
        %v1868 = vunpack.c.l.b16 %v1825
        %v1869 = vunpack.c.h.b16 %v1825
        %v1870 = vunpack.c.l.b16 %v1826
        %v1871 = vunpack.c.h.b16 %v1826
        %v1872 = vunpack.c.l.b16 %v1827
        %v1873 = vunpack.c.h.b16 %v1827
        %v1874 = vunpack.c.l.b16 %v1828
        %v1875 = vunpack.c.h.b16 %v1828
        %v1876 = vunpack.c.l.b16 %v1829
        %v1877 = vunpack.c.h.b16 %v1829
        %v1878 = vunpack.c.l.b16 %v1830
        %v1879 = vunpack.c.h.b16 %v1830
        %v1880 = vunpack.c.l.b16 %v1831
        %v1881 = vunpack.c.h.b16 %v1831
        %v1882 = vunpack.c.l.b16 %v1832
        %v1883 = vunpack.c.h.b16 %v1832
        %v1884 = vunpack.c.l.b16 %v1833
        %v1885 = vunpack.c.h.b16 %v1833
        %v1886 = vunpack.c.l.b16 %v1834
        %v1887 = vunpack.c.h.b16 %v1834
        %v1888 = vunpack.c.l.b16 %v1835
        %v1889 = vunpack.c.h.b16 %v1835
        %v1890 = vpack.c.b16 %v1860, %v1858
        %v1891 = vpack.c.b16 %v1861, %v1859
        %v1892 = vpack.c.b16 %v1864, %v1862
        %v1893 = vpack.c.b16 %v1865, %v1863
        %v1894 = vpack.c.b16 %v1868, %v1866
        %v1895 = vpack.c.b16 %v1869, %v1867
        %v1896 = vpack.c.b16 %v1872, %v1870
        %v1897 = vpack.c.b16 %v1873, %v1871
        %v1898 = vpack.c.b16 %v1876, %v1874
        %v1899 = vpack.c.b16 %v1877, %v1875
        %v1900 = vpack.c.b16 %v1880, %v1878
        %v1901 = vpack.c.b16 %v1881, %v1879
        %v1902 = vpack.c.b16 %v1884, %v1882
        %v1903 = vpack.c.b16 %v1885, %v1883
        %v1904 = vpack.c.b16 %v1888, %v1886
        %v1905 = vpack.c.b16 %v1889, %v1887
        %1922 = vmatpush.bf16.msra.mxu0 %v1904
        %1923 = vmatpush.bf16.msra.mxu0 %v1902
        %1924 = vmatpush.bf16.msra.mxu0 %v1900
        %1925 = vmatpush.bf16.msra.mxu0 %v1898
        %1926 = vmatpush.bf16.msra.mxu0 %v1896
        %1927 = vmatpush.bf16.msra.mxu0 %v1894
        %1928 = vmatpush.bf16.msra.mxu0 %v1892
        %1929 = vmatpush.bf16.msra.mxu0 %v1890
        %1930 = vmatmul.bf16.gmra.mxu0 %v1818
        %v1931 = vpop.f32.mrf.mxu0
        %v1932 = vadd.f32 %v1838, %v1931
        %v1933 = vpop.f32.mrf.mxu0
        %v1934 = vadd.f32 %v1838, %v1933
        %1935 = vmatmul.bf16.gmra.mxu0 %v1819
        %v1936 = vpop.f32.mrf.mxu0
        %v1937 = vadd.f32 %v1838, %v1936
        %v1938 = vpop.f32.mrf.mxu0
        %v1939 = vadd.f32 %v1838, %v1938
        %1940 = vdwg.mxu0
        %1941 = vmatpush.bf16.msra.mxu0 %v1905
        %1942 = vmatpush.bf16.msra.mxu0 %v1903
        %1943 = vmatpush.bf16.msra.mxu0 %v1901
        %1944 = vmatpush.bf16.msra.mxu0 %v1899
        %1945 = vmatpush.bf16.msra.mxu0 %v1897
        %1946 = vmatpush.bf16.msra.mxu0 %v1895
        %1947 = vmatpush.bf16.msra.mxu0 %v1893
        %1948 = vmatpush.bf16.msra.mxu0 %v1891
        %1949 = vmatmul.bf16.gmra.mxu0 %v1818
        %v1950 = vpop.f32.mrf.mxu0
        %v1951 = vadd.f32 %v1839, %v1950
        %v1952 = vpop.f32.mrf.mxu0
        %v1953 = vadd.f32 %v1839, %v1952
        %1954 = vmatmul.bf16.gmra.mxu0 %v1819
        %v1955 = vpop.f32.mrf.mxu0
        %v1956 = vadd.f32 %v1839, %v1955
        %v1957 = vpop.f32.mrf.mxu0
        %v1958 = vadd.f32 %v1839, %v1957
        %1959 = vdwg.mxu0
        %v1960 = vmul.f32 %v1932, 0.5
        %v1961 = vmul.f32 %v1951, 0.5
        %v1962 = vmul.f32 %v1934, 0.5
        %v1963 = vmul.f32 %v1953, 0.5
        %v1964 = vmul.f32 %v1937, 0.5
        %v1965 = vmul.f32 %v1956, 0.5
        %v1966 = vmul.f32 %v1939, 0.5
        %v1967 = vmul.f32 %v1958, 0.5
        %v1968 = vmul.f32 %v1932, 0.70710677
        %v1969 = vmul.f32 %v1951, 0.70710677
        %v1970 = vmul.f32 %v1934, 0.70710677
        %v1971 = vmul.f32 %v1953, 0.70710677
        %v1972 = vmul.f32 %v1937, 0.70710677
        %v1973 = vmul.f32 %v1956, 0.70710677
        %v1974 = vmul.f32 %v1939, 0.70710677
        %v1975 = vmul.f32 %v1958, 0.70710677
        %v1976 = vmul.f32 %v1968, %v1968
        %v1977 = vmin.f32 16.0, %v1976
        %v1978 = vmul.f32 %v1977, 2.1237322e-06
        %v1979 = vadd.f32 %v1978, 0.00028619796
        %v1980 = vmul.f32 %v1977, %v1979
        %v1981 = vadd.f32 %v1980, 0.0036580483
        %v1982 = vmul.f32 %v1977, %v1981
        %v1983 = vadd.f32 %v1982, 0.05243302
        %v1984 = vmul.f32 %v1977, %v1983
        %v1985 = vadd.f32 %v1984, 0.18741608
        %v1986 = vmul.f32 %v1977, %v1985
        %v1987 = vadd.f32 %v1986, 1.1283791
        %v1988 = vmul.f32 %v1968, %v1987
        %v1989 = vmul.f32 %v1977, 3.8918573e-05
        %v1990 = vadd.f32 %v1989, 0.001143296
        %v1991 = vmul.f32 %v1977, %v1990
        %v1992 = vadd.f32 %v1991, 0.014752088
        %v1993 = vmul.f32 %v1977, %v1992
        %v1994 = vadd.f32 %v1993, 0.112945676
        %v1995 = vmul.f32 %v1977, %v1994
        %v1996 = vadd.f32 %v1995, 0.4994258
        %v1997 = vmul.f32 %v1977, %v1996
        %v1998 = vadd.f32 %v1997, 1.0
        %v1999 = vrcp.pop %v1998
        %v2000 = vmul.f32 %v1998, %v1999
        %v2001 = vsub.f32 1.0, %v2000
        %v2002 = vmul.f32 %v1999, %v2001
        %v2003 = vadd.f32 %v1999, %v2002
        %vm2004 = vweird.f32 %v1998
        %vm2005 = vweird.f32 %v1999
        %vm2006 = vmor %vm2004, %vm2005
        %v2007 = vsel %vm2006, %v1999, %v2003
        %v2008 = vand.u32 2147483647, %v1998
        %vm2009 = vcmp.eq.f32.partialorder %v2008, 8.507059e+37
        %v2010 = vand.u32 %v1998, 2147483648
        %v2011 = vor.u32 1.1754944e-38, %v2010
        %v2012 = vsel %vm2009, %v2011, %v2007
        %v2013 = vmul.f32 %v1988, %v2012
        %v2014 = vmin.f32 %v2013, 1.0
        %v2015 = vmax.f32 %v2014, -1.0
        %v2016 = vmul.f32 %v1969, %v1969
        %v2017 = vmin.f32 16.0, %v2016
        %v2018 = vmul.f32 %v2017, 2.1237322e-06
        %v2019 = vadd.f32 %v2018, 0.00028619796
        %v2020 = vmul.f32 %v2017, %v2019
        %v2021 = vadd.f32 %v2020, 0.0036580483
        %v2022 = vmul.f32 %v2017, %v2021
        %v2023 = vadd.f32 %v2022, 0.05243302
        %v2024 = vmul.f32 %v2017, %v2023
        %v2025 = vadd.f32 %v2024, 0.18741608
        %v2026 = vmul.f32 %v2017, %v2025
        %v2027 = vadd.f32 %v2026, 1.1283791
        %v2028 = vmul.f32 %v1969, %v2027
        %v2029 = vmul.f32 %v2017, 3.8918573e-05
        %v2030 = vadd.f32 %v2029, 0.001143296
        %v2031 = vmul.f32 %v2017, %v2030
        %v2032 = vadd.f32 %v2031, 0.014752088
        %v2033 = vmul.f32 %v2017, %v2032
        %v2034 = vadd.f32 %v2033, 0.112945676
        %v2035 = vmul.f32 %v2017, %v2034
        %v2036 = vadd.f32 %v2035, 0.4994258
        %v2037 = vmul.f32 %v2017, %v2036
        %v2038 = vadd.f32 %v2037, 1.0
        %v2039 = vrcp.pop %v2038
        %v2040 = vmul.f32 %v2038, %v2039
        %v2041 = vsub.f32 1.0, %v2040
        %v2042 = vmul.f32 %v2039, %v2041
        %v2043 = vadd.f32 %v2039, %v2042
        %vm2044 = vweird.f32 %v2038
        %vm2045 = vweird.f32 %v2039
        %vm2046 = vmor %vm2044, %vm2045
        %v2047 = vsel %vm2046, %v2039, %v2043
        %v2048 = vand.u32 2147483647, %v2038
        %vm2049 = vcmp.eq.f32.partialorder %v2048, 8.507059e+37
        %v2050 = vand.u32 %v2038, 2147483648
        %v2051 = vor.u32 1.1754944e-38, %v2050
        %v2052 = vsel %vm2049, %v2051, %v2047
        %v2053 = vmul.f32 %v2028, %v2052
        %v2054 = vmin.f32 %v2053, 1.0
        %v2055 = vmax.f32 %v2054, -1.0
        %v2056 = vmul.f32 %v1970, %v1970
        %v2057 = vmin.f32 16.0, %v2056
        %v2058 = vmul.f32 %v2057, 2.1237322e-06
        %v2059 = vadd.f32 %v2058, 0.00028619796
        %v2060 = vmul.f32 %v2057, %v2059
        %v2061 = vadd.f32 %v2060, 0.0036580483
        %v2062 = vmul.f32 %v2057, %v2061
        %v2063 = vadd.f32 %v2062, 0.05243302
        %v2064 = vmul.f32 %v2057, %v2063
        %v2065 = vadd.f32 %v2064, 0.18741608
        %v2066 = vmul.f32 %v2057, %v2065
        %v2067 = vadd.f32 %v2066, 1.1283791
        %v2068 = vmul.f32 %v1970, %v2067
        %v2069 = vmul.f32 %v2057, 3.8918573e-05
        %v2070 = vadd.f32 %v2069, 0.001143296
        %v2071 = vmul.f32 %v2057, %v2070
        %v2072 = vadd.f32 %v2071, 0.014752088
        %v2073 = vmul.f32 %v2057, %v2072
        %v2074 = vadd.f32 %v2073, 0.112945676
        %v2075 = vmul.f32 %v2057, %v2074
        %v2076 = vadd.f32 %v2075, 0.4994258
        %v2077 = vmul.f32 %v2057, %v2076
        %v2078 = vadd.f32 %v2077, 1.0
        %v2079 = vrcp.pop %v2078
        %v2080 = vmul.f32 %v2078, %v2079
        %v2081 = vsub.f32 1.0, %v2080
        %v2082 = vmul.f32 %v2079, %v2081
        %v2083 = vadd.f32 %v2079, %v2082
        %vm2084 = vweird.f32 %v2078
        %vm2085 = vweird.f32 %v2079
        %vm2086 = vmor %vm2084, %vm2085
        %v2087 = vsel %vm2086, %v2079, %v2083
        %v2088 = vand.u32 2147483647, %v2078
        %vm2089 = vcmp.eq.f32.partialorder %v2088, 8.507059e+37
        %v2090 = vand.u32 %v2078, 2147483648
        %v2091 = vor.u32 1.1754944e-38, %v2090
        %v2092 = vsel %vm2089, %v2091, %v2087
        %v2093 = vmul.f32 %v2068, %v2092
        %v2094 = vmin.f32 %v2093, 1.0
        %v2095 = vmax.f32 %v2094, -1.0
        %v2096 = vmul.f32 %v1971, %v1971
        %v2097 = vmin.f32 16.0, %v2096
        %v2098 = vmul.f32 %v2097, 2.1237322e-06
        %v2099 = vadd.f32 %v2098, 0.00028619796
        %v2100 = vmul.f32 %v2097, %v2099
        %v2101 = vadd.f32 %v2100, 0.0036580483
        %v2102 = vmul.f32 %v2097, %v2101
        %v2103 = vadd.f32 %v2102, 0.05243302
        %v2104 = vmul.f32 %v2097, %v2103
        %v2105 = vadd.f32 %v2104, 0.18741608
        %v2106 = vmul.f32 %v2097, %v2105
        %v2107 = vadd.f32 %v2106, 1.1283791
        %v2108 = vmul.f32 %v1971, %v2107
        %v2109 = vmul.f32 %v2097, 3.8918573e-05
        %v2110 = vadd.f32 %v2109, 0.001143296
        %v2111 = vmul.f32 %v2097, %v2110
        %v2112 = vadd.f32 %v2111, 0.014752088
        %v2113 = vmul.f32 %v2097, %v2112
        %v2114 = vadd.f32 %v2113, 0.112945676
        %v2115 = vmul.f32 %v2097, %v2114
        %v2116 = vadd.f32 %v2115, 0.4994258
        %v2117 = vmul.f32 %v2097, %v2116
        %v2118 = vadd.f32 %v2117, 1.0
        %v2119 = vrcp.pop %v2118
        %v2120 = vmul.f32 %v2118, %v2119
        %v2121 = vsub.f32 1.0, %v2120
        %v2122 = vmul.f32 %v2119, %v2121
        %v2123 = vadd.f32 %v2119, %v2122
        %vm2124 = vweird.f32 %v2118
        %vm2125 = vweird.f32 %v2119
        %vm2126 = vmor %vm2124, %vm2125
        %v2127 = vsel %vm2126, %v2119, %v2123
        %v2128 = vand.u32 2147483647, %v2118
        %vm2129 = vcmp.eq.f32.partialorder %v2128, 8.507059e+37
        %v2130 = vand.u32 %v2118, 2147483648
        %v2131 = vor.u32 1.1754944e-38, %v2130
        %v2132 = vsel %vm2129, %v2131, %v2127
        %v2133 = vmul.f32 %v2108, %v2132
        %v2134 = vmin.f32 %v2133, 1.0
        %v2135 = vmax.f32 %v2134, -1.0
        %v2136 = vmul.f32 %v1972, %v1972
        %v2137 = vmin.f32 16.0, %v2136
        %v2138 = vmul.f32 %v2137, 2.1237322e-06
        %v2139 = vadd.f32 %v2138, 0.00028619796
        %v2140 = vmul.f32 %v2137, %v2139
        %v2141 = vadd.f32 %v2140, 0.0036580483
        %v2142 = vmul.f32 %v2137, %v2141
        %v2143 = vadd.f32 %v2142, 0.05243302
        %v2144 = vmul.f32 %v2137, %v2143
        %v2145 = vadd.f32 %v2144, 0.18741608
        %v2146 = vmul.f32 %v2137, %v2145
        %v2147 = vadd.f32 %v2146, 1.1283791
        %v2148 = vmul.f32 %v1972, %v2147
        %v2149 = vmul.f32 %v2137, 3.8918573e-05
        %v2150 = vadd.f32 %v2149, 0.001143296
        %v2151 = vmul.f32 %v2137, %v2150
        %v2152 = vadd.f32 %v2151, 0.014752088
        %v2153 = vmul.f32 %v2137, %v2152
        %v2154 = vadd.f32 %v2153, 0.112945676
        %v2155 = vmul.f32 %v2137, %v2154
        %v2156 = vadd.f32 %v2155, 0.4994258
        %v2157 = vmul.f32 %v2137, %v2156
        %v2158 = vadd.f32 %v2157, 1.0
        %v2159 = vrcp.pop %v2158
        %v2160 = vmul.f32 %v2158, %v2159
        %v2161 = vsub.f32 1.0, %v2160
        %v2162 = vmul.f32 %v2159, %v2161
        %v2163 = vadd.f32 %v2159, %v2162
        %vm2164 = vweird.f32 %v2158
        %vm2165 = vweird.f32 %v2159
        %vm2166 = vmor %vm2164, %vm2165
        %v2167 = vsel %vm2166, %v2159, %v2163
        %v2168 = vand.u32 2147483647, %v2158
        %vm2169 = vcmp.eq.f32.partialorder %v2168, 8.507059e+37
        %v2170 = vand.u32 %v2158, 2147483648
        %v2171 = vor.u32 1.1754944e-38, %v2170
        %v2172 = vsel %vm2169, %v2171, %v2167
        %v2173 = vmul.f32 %v2148, %v2172
        %v2174 = vmin.f32 %v2173, 1.0
        %v2175 = vmax.f32 %v2174, -1.0
        %v2176 = vmul.f32 %v1973, %v1973
        %v2177 = vmin.f32 16.0, %v2176
        %v2178 = vmul.f32 %v2177, 2.1237322e-06
        %v2179 = vadd.f32 %v2178, 0.00028619796
        %v2180 = vmul.f32 %v2177, %v2179
        %v2181 = vadd.f32 %v2180, 0.0036580483
        %v2182 = vmul.f32 %v2177, %v2181
        %v2183 = vadd.f32 %v2182, 0.05243302
        %v2184 = vmul.f32 %v2177, %v2183
        %v2185 = vadd.f32 %v2184, 0.18741608
        %v2186 = vmul.f32 %v2177, %v2185
        %v2187 = vadd.f32 %v2186, 1.1283791
        %v2188 = vmul.f32 %v1973, %v2187
        %v2189 = vmul.f32 %v2177, 3.8918573e-05
        %v2190 = vadd.f32 %v2189, 0.001143296
        %v2191 = vmul.f32 %v2177, %v2190
        %v2192 = vadd.f32 %v2191, 0.014752088
        %v2193 = vmul.f32 %v2177, %v2192
        %v2194 = vadd.f32 %v2193, 0.112945676
        %v2195 = vmul.f32 %v2177, %v2194
        %v2196 = vadd.f32 %v2195, 0.4994258
        %v2197 = vmul.f32 %v2177, %v2196
        %v2198 = vadd.f32 %v2197, 1.0
        %v2199 = vrcp.pop %v2198
        %v2200 = vmul.f32 %v2198, %v2199
        %v2201 = vsub.f32 1.0, %v2200
        %v2202 = vmul.f32 %v2199, %v2201
        %v2203 = vadd.f32 %v2199, %v2202
        %vm2204 = vweird.f32 %v2198
        %vm2205 = vweird.f32 %v2199
        %vm2206 = vmor %vm2204, %vm2205
        %v2207 = vsel %vm2206, %v2199, %v2203
        %v2208 = vand.u32 2147483647, %v2198
        %vm2209 = vcmp.eq.f32.partialorder %v2208, 8.507059e+37
        %v2210 = vand.u32 %v2198, 2147483648
        %v2211 = vor.u32 1.1754944e-38, %v2210
        %v2212 = vsel %vm2209, %v2211, %v2207
        %v2213 = vmul.f32 %v2188, %v2212
        %v2214 = vmin.f32 %v2213, 1.0
        %v2215 = vmax.f32 %v2214, -1.0
        %v2216 = vmul.f32 %v1974, %v1974
        %v2217 = vmin.f32 16.0, %v2216
        %v2218 = vmul.f32 %v2217, 2.1237322e-06
        %v2219 = vadd.f32 %v2218, 0.00028619796
        %v2220 = vmul.f32 %v2217, %v2219
        %v2221 = vadd.f32 %v2220, 0.0036580483
        %v2222 = vmul.f32 %v2217, %v2221
        %v2223 = vadd.f32 %v2222, 0.05243302
        %v2224 = vmul.f32 %v2217, %v2223
        %v2225 = vadd.f32 %v2224, 0.18741608
        %v2226 = vmul.f32 %v2217, %v2225
        %v2227 = vadd.f32 %v2226, 1.1283791
        %v2228 = vmul.f32 %v1974, %v2227
        %v2229 = vmul.f32 %v2217, 3.8918573e-05
        %v2230 = vadd.f32 %v2229, 0.001143296
        %v2231 = vmul.f32 %v2217, %v2230
        %v2232 = vadd.f32 %v2231, 0.014752088
        %v2233 = vmul.f32 %v2217, %v2232
        %v2234 = vadd.f32 %v2233, 0.112945676
        %v2235 = vmul.f32 %v2217, %v2234
        %v2236 = vadd.f32 %v2235, 0.4994258
        %v2237 = vmul.f32 %v2217, %v2236
        %v2238 = vadd.f32 %v2237, 1.0
        %v2239 = vrcp.pop %v2238
        %v2240 = vmul.f32 %v2238, %v2239
        %v2241 = vsub.f32 1.0, %v2240
        %v2242 = vmul.f32 %v2239, %v2241
        %v2243 = vadd.f32 %v2239, %v2242
        %vm2244 = vweird.f32 %v2238
        %vm2245 = vweird.f32 %v2239
        %vm2246 = vmor %vm2244, %vm2245
        %v2247 = vsel %vm2246, %v2239, %v2243
        %v2248 = vand.u32 2147483647, %v2238
        %vm2249 = vcmp.eq.f32.partialorder %v2248, 8.507059e+37
        %v2250 = vand.u32 %v2238, 2147483648
        %v2251 = vor.u32 1.1754944e-38, %v2250
        %v2252 = vsel %vm2249, %v2251, %v2247
        %v2253 = vmul.f32 %v2228, %v2252
        %v2254 = vmin.f32 %v2253, 1.0
        %v2255 = vmax.f32 %v2254, -1.0
        %v2256 = vmul.f32 %v1975, %v1975
        %v2257 = vmin.f32 16.0, %v2256
        %v2258 = vmul.f32 %v2257, 2.1237322e-06
        %v2259 = vadd.f32 %v2258, 0.00028619796
        %v2260 = vmul.f32 %v2257, %v2259
        %v2261 = vadd.f32 %v2260, 0.0036580483
        %v2262 = vmul.f32 %v2257, %v2261
        %v2263 = vadd.f32 %v2262, 0.05243302
        %v2264 = vmul.f32 %v2257, %v2263
        %v2265 = vadd.f32 %v2264, 0.18741608
        %v2266 = vmul.f32 %v2257, %v2265
        %v2267 = vadd.f32 %v2266, 1.1283791
        %v2268 = vmul.f32 %v1975, %v2267
        %v2269 = vmul.f32 %v2257, 3.8918573e-05
        %v2270 = vadd.f32 %v2269, 0.001143296
        %v2271 = vmul.f32 %v2257, %v2270
        %v2272 = vadd.f32 %v2271, 0.014752088
        %v2273 = vmul.f32 %v2257, %v2272
        %v2274 = vadd.f32 %v2273, 0.112945676
        %v2275 = vmul.f32 %v2257, %v2274
        %v2276 = vadd.f32 %v2275, 0.4994258
        %v2277 = vmul.f32 %v2257, %v2276
        %v2278 = vadd.f32 %v2277, 1.0
        %v2279 = vrcp.pop %v2278
        %v2280 = vmul.f32 %v2278, %v2279
        %v2281 = vsub.f32 1.0, %v2280
        %v2282 = vmul.f32 %v2279, %v2281
        %v2283 = vadd.f32 %v2279, %v2282
        %vm2284 = vweird.f32 %v2278
        %vm2285 = vweird.f32 %v2279
        %vm2286 = vmor %vm2284, %vm2285
        %v2287 = vsel %vm2286, %v2279, %v2283
        %v2288 = vand.u32 2147483647, %v2278
        %vm2289 = vcmp.eq.f32.partialorder %v2288, 8.507059e+37
        %v2290 = vand.u32 %v2278, 2147483648
        %v2291 = vor.u32 1.1754944e-38, %v2290
        %v2292 = vsel %vm2289, %v2291, %v2287
        %v2293 = vmul.f32 %v2268, %v2292
        %v2294 = vmin.f32 %v2293, 1.0
        %v2295 = vmax.f32 %v2294, -1.0
        %v2296 = vadd.f32 %v2015, 1.0
        %v2297 = vadd.f32 %v2055, 1.0
        %v2298 = vadd.f32 %v2095, 1.0
        %v2299 = vadd.f32 %v2135, 1.0
        %v2300 = vadd.f32 %v2175, 1.0
        %v2301 = vadd.f32 %v2215, 1.0
        %v2302 = vadd.f32 %v2255, 1.0
        %v2303 = vadd.f32 %v2295, 1.0
        %v2304 = vmul.f32 %v1960, %v2296
        %v2305 = vmul.f32 %v1961, %v2297
        %v2306 = vmul.f32 %v1962, %v2298
        %v2307 = vmul.f32 %v1963, %v2299
        %v2308 = vmul.f32 %v1964, %v2300
        %v2309 = vmul.f32 %v1965, %v2301
        %v2310 = vmul.f32 %v1966, %v2302
        %v2311 = vmul.f32 %v1967, %v2303
        %v2312 = vpack.c.bf16 %v2306, %v2304
        %v2313 = vpack.c.bf16 %v2307, %v2305
        %v2314 = vpack.c.bf16 %v2310, %v2308
        %v2315 = vpack.c.bf16 %v2311, %v2309
        %v2316 = vld [vmem:[#allocation14] sm:$0xf]
        %v2317 = vld [vmem:[#allocation14 + $0x4] sm:$0xf]
        %v2318 = vld [vmem:[#allocation14 + $0x8] sm:$0xf]
        %v2319 = vld [vmem:[#allocation14 + $0xc] sm:$0xf]
        %v2320 = vld [vmem:[#allocation14 + $0x10] sm:$0xf]
        %v2321 = vld [vmem:[#allocation14 + $0x14] sm:$0xf]
        %v2322 = vld [vmem:[#allocation14 + $0x18] sm:$0xf]
        %v2323 = vld [vmem:[#allocation14 + $0x1c] sm:$0xf]
        %v2324 = vld [vmem:[#allocation14 + $0x20] sm:$0xf]
        %v2325 = vld [vmem:[#allocation14 + $0x24] sm:$0xf]
        %v2326 = vld [vmem:[#allocation14 + $0x28] sm:$0xf]
        %v2327 = vld [vmem:[#allocation14 + $0x2c] sm:$0xf]
        %v2328 = vld [vmem:[#allocation14 + $0x30] sm:$0xf]
        %v2329 = vld [vmem:[#allocation14 + $0x34] sm:$0xf]
        %v2330 = vld [vmem:[#allocation14 + $0x38] sm:$0xf]
        %v2331 = vld [vmem:[#allocation14 + $0x3c] sm:$0xf]
        %v2332 = vld [vmem:[#allocation14 + $0x40] sm:$0xf]
        %v2333 = vld [vmem:[#allocation14 + $0x44] sm:$0xf]
        %v2334 = vld [vmem:[#allocation14 + $0x48] sm:$0xf]
        %v2335 = vld [vmem:[#allocation14 + $0x4c] sm:$0xf]
        %v2336 = vld [vmem:[#allocation14 + $0x50] sm:$0xf]
        %v2337 = vld [vmem:[#allocation14 + $0x54] sm:$0xf]
        %v2338 = vld [vmem:[#allocation14 + $0x58] sm:$0xf]
        %v2339 = vld [vmem:[#allocation14 + $0x5c] sm:$0xf]
        %v2340 = vld [vmem:[#allocation14 + $0x60] sm:$0xf]
        %v2341 = vld [vmem:[#allocation14 + $0x64] sm:$0xf]
        %v2342 = vld [vmem:[#allocation14 + $0x68] sm:$0xf]
        %v2343 = vld [vmem:[#allocation14 + $0x6c] sm:$0xf]
        %v2344 = vld [vmem:[#allocation14 + $0x70] sm:$0xf]
        %v2345 = vld [vmem:[#allocation14 + $0x74] sm:$0xf]
        %v2346 = vld [vmem:[#allocation14 + $0x78] sm:$0xf]
        %v2347 = vld [vmem:[#allocation14 + $0x7c] sm:$0xf]
        %v2348 = vld [vmem:[%s12] sm:$0x1]
        %v2350 = vperm.slane %v2348, 0
        %v2384 = vunpack.c.l.b16 %v2316
        %v2385 = vunpack.c.l.b16 %v2317
        %v2386 = vunpack.c.l.b16 %v2318
        %v2387 = vunpack.c.l.b16 %v2319
        %v2388 = vunpack.c.l.b16 %v2320
        %v2389 = vunpack.c.l.b16 %v2321
        %v2390 = vunpack.c.l.b16 %v2322
        %v2391 = vunpack.c.l.b16 %v2323
        %v2392 = vunpack.c.l.b16 %v2324
        %v2393 = vunpack.c.l.b16 %v2325
        %v2394 = vunpack.c.l.b16 %v2326
        %v2395 = vunpack.c.l.b16 %v2327
        %v2396 = vunpack.c.l.b16 %v2328
        %v2397 = vunpack.c.l.b16 %v2329
        %v2398 = vunpack.c.l.b16 %v2330
        %v2399 = vunpack.c.l.b16 %v2331
        %v2400 = vunpack.c.l.b16 %v2332
        %v2401 = vunpack.c.l.b16 %v2333
        %v2402 = vunpack.c.l.b16 %v2334
        %v2403 = vunpack.c.l.b16 %v2335
        %v2404 = vunpack.c.l.b16 %v2336
        %v2405 = vunpack.c.l.b16 %v2337
        %v2406 = vunpack.c.l.b16 %v2338
        %v2407 = vunpack.c.l.b16 %v2339
        %v2408 = vunpack.c.l.b16 %v2340
        %v2409 = vunpack.c.l.b16 %v2341
        %v2410 = vunpack.c.l.b16 %v2342
        %v2411 = vunpack.c.l.b16 %v2343
        %v2412 = vunpack.c.l.b16 %v2344
        %v2413 = vunpack.c.l.b16 %v2345
        %v2414 = vunpack.c.l.b16 %v2346
        %v2415 = vunpack.c.l.b16 %v2347
        %v2416 = vpack.c.b16 %v2385, %v2384
        %v2417 = vpack.c.b16 %v2387, %v2386
        %v2418 = vpack.c.b16 %v2389, %v2388
        %v2419 = vpack.c.b16 %v2391, %v2390
        %v2420 = vpack.c.b16 %v2393, %v2392
        %v2421 = vpack.c.b16 %v2395, %v2394
        %v2422 = vpack.c.b16 %v2397, %v2396
        %v2423 = vpack.c.b16 %v2399, %v2398
        %v2424 = vpack.c.b16 %v2401, %v2400
        %v2425 = vpack.c.b16 %v2403, %v2402
        %v2426 = vpack.c.b16 %v2405, %v2404
        %v2427 = vpack.c.b16 %v2407, %v2406
        %v2428 = vpack.c.b16 %v2409, %v2408
        %v2429 = vpack.c.b16 %v2411, %v2410
        %v2430 = vpack.c.b16 %v2413, %v2412
        %v2431 = vpack.c.b16 %v2415, %v2414
        %2448 = vmatpush.bf16.msra.mxu0 %v2423
        %2449 = vmatpush.bf16.msra.mxu0 %v2422
        %2450 = vmatpush.bf16.msra.mxu0 %v2421
        %2451 = vmatpush.bf16.msra.mxu0 %v2420
        %2452 = vmatpush.bf16.msra.mxu0 %v2419
        %2453 = vmatpush.bf16.msra.mxu0 %v2418
        %2454 = vmatpush.bf16.msra.mxu0 %v2417
        %2455 = vmatpush.bf16.msra.mxu0 %v2416
        %2456 = vmatmul.bf16.gmra.mxu0 %v2312
        %v2457 = vpop.f32.mrf.mxu0
        %v2458 = vadd.f32 %v2350, %v2457
        %v2459 = vpop.f32.mrf.mxu0
        %v2460 = vadd.f32 %v2350, %v2459
        %2461 = vmatmul.bf16.gmra.mxu0 %v2314
        %v2462 = vpop.f32.mrf.mxu0
        %v2463 = vadd.f32 %v2350, %v2462
        %v2464 = vpop.f32.mrf.mxu0
        %v2465 = vadd.f32 %v2350, %v2464
        %2466 = vdwg.mxu0
        %2467 = vmatpush.bf16.msra.mxu0 %v2431
        %2468 = vmatpush.bf16.msra.mxu0 %v2430
        %2469 = vmatpush.bf16.msra.mxu0 %v2429
        %2470 = vmatpush.bf16.msra.mxu0 %v2428
        %2471 = vmatpush.bf16.msra.mxu0 %v2427
        %2472 = vmatpush.bf16.msra.mxu0 %v2426
        %2473 = vmatpush.bf16.msra.mxu0 %v2425
        %2474 = vmatpush.bf16.msra.mxu0 %v2424
        %2475 = vmatmul.bf16.gmra.mxu0 %v2313
        %v2476 = vpop.f32.mrf.mxu0
        %v2477 = vadd.f32 %v2458, %v2476
        %v2478 = vpop.f32.mrf.mxu0
        %v2479 = vadd.f32 %v2460, %v2478
        %2480 = vmatmul.bf16.gmra.mxu0 %v2315
        %v2481 = vpop.f32.mrf.mxu0
        %v2482 = vadd.f32 %v2463, %v2481
        %v2483 = vpop.f32.mrf.mxu0
        %v2484 = vadd.f32 %v2465, %v2483
        %2485 = vdwg.mxu0
        %v2486 = vadd.f32 %v1718, %v2477
        %v2487 = vadd.f32 %v1719, %v2479
        %v2488 = vadd.f32 %v1720, %v2482
        %v2489 = vadd.f32 %v1721, %v2484
        %2490 = vst [vmem:[%s571] sm:$0xff] %v2486
        %2491 = vst [vmem:[%s571 + $0x8] sm:$0xff] %v2487
        %2492 = vst [vmem:[%s571 + $0x10] sm:$0xff] %v2488
        %2493 = vst [vmem:[%s571 + $0x18] sm:$0xff] %v2489
        %s2494 = sand.u32 %s320, 1
        %s2495 = scalar_lea.sflag [#allocation4], %s2494
        %s2496 = sand.u32 %s320, 1
        %s2497 = smul.addr %s2496, 32
        %s2498 = scalar_lea.vmem [#allocation16], %s2497
        // Predicated region
        $region105: #{tpu_custom_call.1} parent=71 // pred_check
          %p2499 = pneg %p330
        $region106: #{tpu_custom_call.1} parent=71 // pred_check_branch
          %2501 = sbr.rel (%p2499) target = $region108
        $region107: #{tpu_custom_call.1} parent=71 // pred_region
          %s2502 = smul.u32 2, %s34
          %2504 = vsyncadd %s2495, 0
          %s2505 = smul.addr %s2502, 2
          %s2506 = smul.addr %s2505, 8
          %s2507 = scalar_lea.hbm %s13, %s2506
          %s2508 = sshll.u32 %s2498, 4
          %s2509 = int_to_ptr.vmem [resolvable:$true] %s2508
          %s2510 = sshll.u32 %s2507, 4
          %s2511 = int_to_ptr.hbm [resolvable:$true] %s2510
          %2516 = dma.vmem_to_hbm [thread:$0]  %s2509, 512, %s2511, %s2495, 128, 128, 8
        $region108: #{tpu_custom_call.1} parent=71 // pred_fallthru
          _
      $region72: #{tpu_custom_call.1} parent=5 // pred_fallthru
        _
      %p2517 = scmp.le.s32.totalorder 2, %s29
      // Predicated region
      $region109: #{tpu_custom_call.1} parent=5 // pred_check
        %p2518 = pneg %p2517
      $region110: #{tpu_custom_call.1} parent=5 // pred_check_branch
        %2520 = sbr.rel (%p2518) target = $region112
      $region111: #{tpu_custom_call.1} parent=5 // pred_region
        %s2521 = ssub.s32 %s29, 2
        // Predicated region
        $region113: #{tpu_custom_call.1} parent=111 // pred_check
          %p2522 = pneg %p336
        $region114: #{tpu_custom_call.1} parent=111 // pred_check_branch
          %2524 = sbr.rel (%p2522) target = $region116
        $region115: #{tpu_custom_call.1} parent=111 // pred_region
          %s2525 = sand.u32 %s321, 1
          %s2526 = scalar_lea.sflag [#allocation4], %s2525
          %s2527 = sand.u32 %s321, 1
          %s2528 = smul.addr %s2527, 32
          %s2529 = scalar_lea.vmem [#allocation16], %s2528
          %2531 = dma.done %s2526, 512
        $region116: #{tpu_custom_call.1} parent=111 // pred_fallthru
          _
      $region112: #{tpu_custom_call.1} parent=5 // pred_fallthru
        _
    $region6: #{tpu_custom_call.1} parent=1 // loop_footer
      %s33 = sadd.s32 1, %s29
    $region7: #{tpu_custom_call.1} parent=1 // loop_footer_branch
      %28 = sbr.rel target = $region3
    $region8: #{tpu_custom_call.1} parent=1 // loop_exit
      _
    %2532 = vsyncpa [#allocation3], 1
    %s2533 = scalar_lea.sflag [#allocation3], 1
    %2534 = vsyncpa %s2533, 1
    %2535 = vsyncpa [#allocation6], 1
    %2536 = vsyncpa [#allocation9], 1
    %2537 = vsyncpa [#allocation12], 1
    %2538 = vsyncpa [#allocation15], 1
    %2539 = vsyncpa [#allocation4], 1
    %s2540 = scalar_lea.sflag [#allocation4], 1
    %2541 = vsyncpa %s2540, 1

// kernel: tpu_custom_call.1
$region0: #{tpu_custom_call.1}
  #allocation0 [shape = 'u32[]', space=smem, size = 0x4, offset = 0x4, fixed_abs, tag = 'smem constant byte address 0x4 - core index']
  #allocation1 [shape = 'u32[72,128]{1,0:T(1,128)}', space=vmem, size = 0x9000, scoped, tag = 'internal scratch']
  %s0 = inlined_call_operand.hbm [shape: f32[4,16,128], index: 0, kind: input, shape index: {}]
  %s1 = inlined_call_operand.hbm [shape: f32[1,128], index: 1, kind: input, shape index: {}]
  %s2 = inlined_call_operand.hbm [shape: f32[1,128], index: 2, kind: input, shape index: {}]
  %s3 = inlined_call_operand.hbm [shape: bf16[128,384], index: 3, kind: input, shape index: {}]
  %s4 = inlined_call_operand.vmem [shape: f32[1,384], index: 4, kind: input, shape index: {}]
  %s5 = inlined_call_operand.hbm [shape: bf16[128,128], index: 5, kind: input, shape index: {}]
  %s6 = inlined_call_operand.hbm [shape: f32[1,128], index: 6, kind: input, shape index: {}]
  %s7 = inlined_call_operand.vmem [shape: f32[1,128], index: 7, kind: input, shape index: {}]
  %s8 = inlined_call_operand.vmem [shape: f32[1,128], index: 8, kind: input, shape index: {}]
  %s9 = inlined_call_operand.hbm [shape: bf16[128,256], index: 9, kind: input, shape index: {}]
  %s10 = inlined_call_operand.vmem [shape: f32[1,256], index: 10, kind: input, shape index: {}]
  %s11 = inlined_call_operand.hbm [shape: bf16[256,128], index: 11, kind: input, shape index: {}]
  %s12 = inlined_call_operand.vmem [shape: f32[1,128], index: 12, kind: input, shape index: {}]
  %s13 = inlined_call_operand.hbm [shape: f32[4,16,128], index: 13, kind: output, shape index: {}]
  %s14 = sld [smem:[#allocation0]]
  $region117: #{tpu_custom_call.1} parent=0
    _
  %s16 = ssub.s32 1, %s14
  %s17 = scalar_select 0, %s16, %s14
  $region1: #{tpu_custom_call.1} parent=0
    #allocation2 [shape = 'u8[32768]{0}', space=vmem, size = 0x8000, scoped, tag = 'input window, operand 0']
    #allocation3 [shape = 's32[2]{0}', space=sflag, size = 0x8, scoped, tag = 'scoped memory for tpu_custom_call.1']
    #allocation4 [shape = 's32[2]{0}', space=sflag, size = 0x8, scoped, tag = 'scoped memory for tpu_custom_call.1']
    #allocation5 [shape = 'u8[512]{0}', space=vmem, size = 0x400, scoped, tag = 'input window, operand 1, single buffered']
    #allocation6 [shape = 's32[1]{0}', space=sflag, size = 0x4, scoped, tag = 'scoped memory for tpu_custom_call.1']
    #allocation7 [shape = 'u8[512]{0}', space=vmem, size = 0x400, scoped, tag = 'input window, operand 2, single buffered']
    #allocation8 [shape = 'u8[98304]{0}', space=vmem, size = 0x18000, scoped, tag = 'input window, operand 3, single buffered']
    #allocation9 [shape = 's32[1]{0}', space=sflag, size = 0x4, scoped, tag = 'scoped memory for tpu_custom_call.1']
    #allocation10 [shape = 'u8[32768]{0}', space=vmem, size = 0x8000, scoped, tag = 'input window, operand 5, single buffered']
    #allocation11 [shape = 'u8[512]{0}', space=vmem, size = 0x400, scoped, tag = 'input window, operand 6, single buffered']
    #allocation12 [shape = 's32[1]{0}', space=sflag, size = 0x4, scoped, tag = 'scoped memory for tpu_custom_call.1']
    #allocation13 [shape = 'u8[65536]{0}', space=vmem, size = 0x10000, scoped, tag = 'input window, operand 9, single buffered']
    #allocation14 [shape = 'u8[65536]{0}', space=vmem, size = 0x10000, scoped, tag = 'input window, operand 11, single buffered']
    #allocation15 [shape = 's32[1]{0}', space=sflag, size = 0x4, scoped, tag = 'scoped memory for tpu_custom_call.1']
    #allocation16 [shape = 'u8[32768]{0}', space=vmem, size = 0x8000, scoped, tag = 'output window, operand 0']
    %18 = vsyncpa [#allocation3], 0
    %s19 = scalar_lea.sflag [#allocation3], 1
    %20 = vsyncpa %s19, 0
    %21 = vsyncpa [#allocation6], 0
    %22 = vsyncpa [#allocation9], 0
    %23 = vsyncpa [#allocation12], 0
    %24 = vsyncpa [#allocation15], 0
    %25 = vsyncpa [#allocation4], 0
    %s26 = scalar_lea.sflag [#allocation4], 1
    %27 = vsyncpa %s26, 0
    loop: start=0, step=1, limit=4
    $region2: #{tpu_custom_call.1} parent=1 // loop_pre_header
      _
    $region3: #{tpu_custom_call.1} parent=1 // loop_header
      %s29 = sphi 0, %s33
      %p30 = scmp.ge.s32.totalorder %s29, 4
      %s39 = sphi 0, %s41
      %s42 = sphi 0, %s39
      %s43 = sphi 0, %s42
      %s59 = sphi 0, %s43
      %s63 = sphi 0, %s63
      %s65 = sphi 0, %s63
      %s66 = sphi 0, %s65
      %s80 = sphi 0, %s66
      %s84 = sphi 0, %s84
      %s86 = sphi 0, %s84
      %s87 = sphi 0, %s86
      %s101 = sphi 0, %s87
      %s105 = sphi 0, %s105
      %s107 = sphi 0, %s105
      %s108 = sphi 0, %s107
      %s122 = sphi 0, %s108
      %s126 = sphi 0, %s126
      %s128 = sphi 0, %s126
      %s129 = sphi 0, %s128
      %s143 = sphi 0, %s129
      %s147 = sphi 0, %s147
      %s149 = sphi 0, %s147
      %s150 = sphi 0, %s149
      %s164 = sphi 0, %s150
      %s168 = sphi 0, %s168
      %s170 = sphi 0, %s168
      %s171 = sphi 0, %s170
      %s185 = sphi 0, %s171
      %s189 = sphi 0, %s189
      %s191 = sphi 0, %s189
      %s192 = sphi 0, %s191
      %s206 = sphi 0, %s192
      %s210 = sphi 0, %s210
      %s212 = sphi 0, %s210
      %s213 = sphi 0, %s212
      %s227 = sphi 0, %s213
      %s231 = sphi 0, %s231
      %s233 = sphi 0, %s231
      %s234 = sphi 0, %s233
      %s248 = sphi 0, %s234
      %s252 = sphi 0, %s252
      %s254 = sphi 0, %s252
      %s255 = sphi 0, %s254
      %s269 = sphi 0, %s255
      %s273 = sphi 0, %s273
      %s275 = sphi 0, %s273
      %s276 = sphi 0, %s275
      %s290 = sphi 0, %s276
      %s294 = sphi 0, %s294
      %s296 = sphi 0, %s294
      %s297 = sphi 0, %s296
      %s311 = sphi 0, %s297
      %s317 = sphi 0, %s319
      %s320 = sphi 0, %s317
      %s321 = sphi 0, %s320
      %s337 = sphi 0, %s321
    $region4: #{tpu_custom_call.1} parent=1 // loop_header_branch
      %32 = sbr.rel (%p30) target = $region8
    $region5: #{tpu_custom_call.1} parent=1 // loop_body
      %s34 = ssub.s32 %s29, 1
      %s35 = ssub.s32 %s29, 2
      %s36 = sadd.s32 %s29, 1
      %s37 = ssub.s32 %s29, %s36
      %p38 = scmp.eq.s32.totalorder %s37, 0
      %s40 = sadd.s32 %s39, 1
      %s41 = scalar_select %p38, %s39, %s40
      %p44 = pneg %p38
      %p45 = scmp.eq.s32.totalorder %s29, 1
      %p46 = por %p44, %p45
      %p47 = scmp.ne.s32.totalorder %s39, %s42
      %p48 = scmp.eq.s32.totalorder %s29, 0
      %p49 = por %p47, %p48
      %p50 = scmp.ne.s32.totalorder %s39, %s42
      %p51 = scmp.eq.s32.totalorder %s34, 1
      %p52 = por %p50, %p51
      %p53 = scmp.ne.s32.totalorder %s42, %s43
      %p54 = scmp.eq.s32.totalorder %s34, 0
      %p55 = por %p53, %p54
      %p56 = scmp.ne.s32.totalorder %s42, %s43
      %p57 = scmp.eq.s32.totalorder %s35, 1
      %p58 = por %p56, %p57
      %p60 = scmp.ne.s32.totalorder %s43, %s59
      %p61 = scmp.eq.s32.totalorder %s35, 0
      %p62 = por %p60, %p61
      %s64 = sadd.s32 %s63, 1
      %p67 = scmp.eq.s32.totalorder %s29, 1
      %p68 = scmp.ne.s32.totalorder %s63, %s65
      %p69 = scmp.eq.s32.totalorder %s29, 0
      %p70 = por %p68, %p69
      %p71 = scmp.ne.s32.totalorder %s63, %s65
      %p72 = scmp.eq.s32.totalorder %s34, 1
      %p73 = por %p71, %p72
      %p74 = scmp.ne.s32.totalorder %s65, %s66
      %p75 = scmp.eq.s32.totalorder %s34, 0
      %p76 = por %p74, %p75
      %p77 = scmp.ne.s32.totalorder %s65, %s66
      %p78 = scmp.eq.s32.totalorder %s35, 1
      %p79 = por %p77, %p78
      %p81 = scmp.ne.s32.totalorder %s66, %s80
      %p82 = scmp.eq.s32.totalorder %s35, 0
      %p83 = por %p81, %p82
      %s85 = sadd.s32 %s84, 1
      %p88 = scmp.eq.s32.totalorder %s29, 1
      %p89 = scmp.ne.s32.totalorder %s84, %s86
      %p90 = scmp.eq.s32.totalorder %s29, 0
      %p91 = por %p89, %p90
      %p92 = scmp.ne.s32.totalorder %s84, %s86
      %p93 = scmp.eq.s32.totalorder %s34, 1
      %p94 = por %p92, %p93
      %p95 = scmp.ne.s32.totalorder %s86, %s87
      %p96 = scmp.eq.s32.totalorder %s34, 0
      %p97 = por %p95, %p96
      %p98 = scmp.ne.s32.totalorder %s86, %s87
      %p99 = scmp.eq.s32.totalorder %s35, 1
      %p100 = por %p98, %p99
      %p102 = scmp.ne.s32.totalorder %s87, %s101
      %p103 = scmp.eq.s32.totalorder %s35, 0
      %p104 = por %p102, %p103
      %s106 = sadd.s32 %s105, 1
      %p109 = scmp.eq.s32.totalorder %s29, 1
      %p110 = scmp.ne.s32.totalorder %s105, %s107
      %p111 = scmp.eq.s32.totalorder %s29, 0
      %p112 = por %p110, %p111
      %p113 = scmp.ne.s32.totalorder %s105, %s107
      %p114 = scmp.eq.s32.totalorder %s34, 1
      %p115 = por %p113, %p114
      %p116 = scmp.ne.s32.totalorder %s107, %s108
      %p117 = scmp.eq.s32.totalorder %s34, 0
      %p118 = por %p116, %p117
      %p119 = scmp.ne.s32.totalorder %s107, %s108
      %p120 = scmp.eq.s32.totalorder %s35, 1
      %p121 = por %p119, %p120
      %p123 = scmp.ne.s32.totalorder %s108, %s122
      %p124 = scmp.eq.s32.totalorder %s35, 0
      %p125 = por %p123, %p124
      %s127 = sadd.s32 %s126, 1
      %p130 = scmp.eq.s32.totalorder %s29, 1
      %p131 = scmp.ne.s32.totalorder %s126, %s128
      %p132 = scmp.eq.s32.totalorder %s29, 0
      %p133 = por %p131, %p132
      %p134 = scmp.ne.s32.totalorder %s126, %s128
      %p135 = scmp.eq.s32.totalorder %s34, 1
      %p136 = por %p134, %p135
      %p137 = scmp.ne.s32.totalorder %s128, %s129
      %p138 = scmp.eq.s32.totalorder %s34, 0
      %p139 = por %p137, %p138
      %p140 = scmp.ne.s32.totalorder %s128, %s129
      %p141 = scmp.eq.s32.totalorder %s35, 1
      %p142 = por %p140, %p141
      %p144 = scmp.ne.s32.totalorder %s129, %s143
      %p145 = scmp.eq.s32.totalorder %s35, 0
      %p146 = por %p144, %p145
      %s148 = sadd.s32 %s147, 1
      %p151 = scmp.eq.s32.totalorder %s29, 1
      %p152 = scmp.ne.s32.totalorder %s147, %s149
      %p153 = scmp.eq.s32.totalorder %s29, 0
      %p154 = por %p152, %p153
      %p155 = scmp.ne.s32.totalorder %s147, %s149
      %p156 = scmp.eq.s32.totalorder %s34, 1
      %p157 = por %p155, %p156
      %p158 = scmp.ne.s32.totalorder %s149, %s150
      %p159 = scmp.eq.s32.totalorder %s34, 0
      %p160 = por %p158, %p159
      %p161 = scmp.ne.s32.totalorder %s149, %s150
      %p162 = scmp.eq.s32.totalorder %s35, 1
      %p163 = por %p161, %p162
      %p165 = scmp.ne.s32.totalorder %s150, %s164
      %p166 = scmp.eq.s32.totalorder %s35, 0
      %p167 = por %p165, %p166
      %s169 = sadd.s32 %s168, 1
      %p172 = scmp.eq.s32.totalorder %s29, 1
      %p173 = scmp.ne.s32.totalorder %s168, %s170
      %p174 = scmp.eq.s32.totalorder %s29, 0
      %p175 = por %p173, %p174
      %p176 = scmp.ne.s32.totalorder %s168, %s170
      %p177 = scmp.eq.s32.totalorder %s34, 1
      %p178 = por %p176, %p177
      %p179 = scmp.ne.s32.totalorder %s170, %s171
      %p180 = scmp.eq.s32.totalorder %s34, 0
      %p181 = por %p179, %p180
      %p182 = scmp.ne.s32.totalorder %s170, %s171
      %p183 = scmp.eq.s32.totalorder %s35, 1
      %p184 = por %p182, %p183
      %p186 = scmp.ne.s32.totalorder %s171, %s185
      %p187 = scmp.eq.s32.totalorder %s35, 0
      %p188 = por %p186, %p187
      %s190 = sadd.s32 %s189, 1
      %p193 = scmp.eq.s32.totalorder %s29, 1
      %p194 = scmp.ne.s32.totalorder %s189, %s191
      %p195 = scmp.eq.s32.totalorder %s29, 0
      %p196 = por %p194, %p195
      %p197 = scmp.ne.s32.totalorder %s189, %s191
      %p198 = scmp.eq.s32.totalorder %s34, 1
      %p199 = por %p197, %p198
      %p200 = scmp.ne.s32.totalorder %s191, %s192
      %p201 = scmp.eq.s32.totalorder %s34, 0
      %p202 = por %p200, %p201
      %p203 = scmp.ne.s32.totalorder %s191, %s192
      %p204 = scmp.eq.s32.totalorder %s35, 1
      %p205 = por %p203, %p204
      %p207 = scmp.ne.s32.totalorder %s192, %s206
      %p208 = scmp.eq.s32.totalorder %s35, 0
      %p209 = por %p207, %p208
      %s211 = sadd.s32 %s210, 1
      %p214 = scmp.eq.s32.totalorder %s29, 1
      %p215 = scmp.ne.s32.totalorder %s210, %s212
      %p216 = scmp.eq.s32.totalorder %s29, 0
      %p217 = por %p215, %p216
      %p218 = scmp.ne.s32.totalorder %s210, %s212
      %p219 = scmp.eq.s32.totalorder %s34, 1
      %p220 = por %p218, %p219
      %p221 = scmp.ne.s32.totalorder %s212, %s213
      %p222 = scmp.eq.s32.totalorder %s34, 0
      %p223 = por %p221, %p222
      %p224 = scmp.ne.s32.totalorder %s212, %s213
      %p225 = scmp.eq.s32.totalorder %s35, 1
      %p226 = por %p224, %p225
      %p228 = scmp.ne.s32.totalorder %s213, %s227
      %p229 = scmp.eq.s32.totalorder %s35, 0
      %p230 = por %p228, %p229
      %s232 = sadd.s32 %s231, 1
      %p235 = scmp.eq.s32.totalorder %s29, 1
      %p236 = scmp.ne.s32.totalorder %s231, %s233
      %p237 = scmp.eq.s32.totalorder %s29, 0
      %p238 = por %p236, %p237
      %p239 = scmp.ne.s32.totalorder %s231, %s233
      %p240 = scmp.eq.s32.totalorder %s34, 1
      %p241 = por %p239, %p240
      %p242 = scmp.ne.s32.totalorder %s233, %s234
      %p243 = scmp.eq.s32.totalorder %s34, 0
      %p244 = por %p242, %p243
      %p245 = scmp.ne.s32.totalorder %s233, %s234
      %p246 = scmp.eq.s32.totalorder %s35, 1
      %p247 = por %p245, %p246
      %p249 = scmp.ne.s32.totalorder %s234, %s248
      %p250 = scmp.eq.s32.totalorder %s35, 0
      %p251 = por %p249, %p250
      %s253 = sadd.s32 %s252, 1
      %p256 = scmp.eq.s32.totalorder %s29, 1
      %p257 = scmp.ne.s32.totalorder %s252, %s254
      %p258 = scmp.eq.s32.totalorder %s29, 0
      %p259 = por %p257, %p258
      %p260 = scmp.ne.s32.totalorder %s252, %s254
      %p261 = scmp.eq.s32.totalorder %s34, 1
      %p262 = por %p260, %p261
      %p263 = scmp.ne.s32.totalorder %s254, %s255
      %p264 = scmp.eq.s32.totalorder %s34, 0
      %p265 = por %p263, %p264
      %p266 = scmp.ne.s32.totalorder %s254, %s255
      %p267 = scmp.eq.s32.totalorder %s35, 1
      %p268 = por %p266, %p267
      %p270 = scmp.ne.s32.totalorder %s255, %s269
      %p271 = scmp.eq.s32.totalorder %s35, 0
      %p272 = por %p270, %p271
      %s274 = sadd.s32 %s273, 1
      %p277 = scmp.eq.s32.totalorder %s29, 1
      %p278 = scmp.ne.s32.totalorder %s273, %s275
      %p279 = scmp.eq.s32.totalorder %s29, 0
      %p280 = por %p278, %p279
      %p281 = scmp.ne.s32.totalorder %s273, %s275
      %p282 = scmp.eq.s32.totalorder %s34, 1
      %p283 = por %p281, %p282
      %p284 = scmp.ne.s32.totalorder %s275, %s276
      %p285 = scmp.eq.s32.totalorder %s34, 0
      %p286 = por %p284, %p285
      %p287 = scmp.ne.s32.totalorder %s275, %s276
      %p288 = scmp.eq.s32.totalorder %s35, 1
      %p289 = por %p287, %p288
      %p291 = scmp.ne.s32.totalorder %s276, %s290
      %p292 = scmp.eq.s32.totalorder %s35, 0
      %p293 = por %p291, %p292
      %s295 = sadd.s32 %s294, 1
      %p298 = scmp.eq.s32.totalorder %s29, 1
      %p299 = scmp.ne.s32.totalorder %s294, %s296
      %p300 = scmp.eq.s32.totalorder %s29, 0
      %p301 = por %p299, %p300
      %p302 = scmp.ne.s32.totalorder %s294, %s296
      %p303 = scmp.eq.s32.totalorder %s34, 1
      %p304 = por %p302, %p303
      %p305 = scmp.ne.s32.totalorder %s296, %s297
      %p306 = scmp.eq.s32.totalorder %s34, 0
      %p307 = por %p305, %p306
      %p308 = scmp.ne.s32.totalorder %s296, %s297
      %p309 = scmp.eq.s32.totalorder %s35, 1
      %p310 = por %p308, %p309
      %p312 = scmp.ne.s32.totalorder %s297, %s311
      %p313 = scmp.eq.s32.totalorder %s35, 0
      %p314 = por %p312, %p313
      %s315 = ssub.s32 %s29, %s36
      %p316 = scmp.eq.s32.totalorder %s315, 0
      %s318 = sadd.s32 %s317, 1
      %s319 = scalar_select %p316, %s317, %s318
      %p322 = pneg %p316
      %p323 = scmp.eq.s32.totalorder %s29, 1
      %p324 = por %p322, %p323
      %p325 = scmp.ne.s32.totalorder %s317, %s320
      %p326 = scmp.eq.s32.totalorder %s29, 0
      %p327 = por %p325, %p326
      %p328 = scmp.ne.s32.totalorder %s317, %s320
      %p329 = scmp.eq.s32.totalorder %s34, 1
      %p330 = por %p328, %p329
      %p331 = scmp.ne.s32.totalorder %s320, %s321
      %p332 = scmp.eq.s32.totalorder %s34, 0
      %p333 = por %p331, %p332
      %p334 = scmp.ne.s32.totalorder %s320, %s321
      %p335 = scmp.eq.s32.totalorder %s35, 1
      %p336 = por %p334, %p335
      %p338 = scmp.ne.s32.totalorder %s321, %s337
      %p339 = scmp.eq.s32.totalorder %s35, 0
      %p340 = por %p338, %p339
      %p341 = scmp.le.s32.totalorder 1, %s29
      %p342 = scmp.lt.s32.totalorder %s29, 3
      %p343 = pnand %p341, %p342
      %p344 = pneg %p343
      // Predicated region
      $region9: #{tpu_custom_call.1} parent=5 // pred_check
        _
      $region10: #{tpu_custom_call.1} parent=5 // pred_check_branch
        %346 = sbr.rel (%p343) target = $region12
      $region11: #{tpu_custom_call.1} parent=5 // pred_region
        %s347 = ssub.s32 %s29, 1
        // Predicated region
        $region13: #{tpu_custom_call.1} parent=11 // pred_check
          %p348 = pneg %p76
        $region14: #{tpu_custom_call.1} parent=11 // pred_check_branch
          %350 = sbr.rel (%p348) target = $region16
        $region15: #{tpu_custom_call.1} parent=11 // pred_region
          %352 = vsyncadd [#allocation6], 0
          %s354 = sshll.u32 %s1, 4
          %s355 = int_to_ptr.hbm [resolvable:$true] %s354
          %s356 = sshll.u32 [#allocation5], 4
          %s357 = int_to_ptr.vmem [resolvable:$true] %s356
          %359 = dma.hbm_to_vmem [thread:$0]  %s355, 16, %s357, [#allocation6]
        $region16: #{tpu_custom_call.1} parent=11 // pred_fallthru
          _
        // Predicated region
        $region17: #{tpu_custom_call.1} parent=11 // pred_check
          %p360 = pneg %p97
        $region18: #{tpu_custom_call.1} parent=11 // pred_check_branch
          %362 = sbr.rel (%p360) target = $region20
        $region19: #{tpu_custom_call.1} parent=11 // pred_region
          %364 = vsyncadd [#allocation6], 0
          %s366 = sshll.u32 %s2, 4
          %s367 = int_to_ptr.hbm [resolvable:$true] %s366
          %s368 = sshll.u32 [#allocation7], 4
          %s369 = int_to_ptr.vmem [resolvable:$true] %s368
          %371 = dma.hbm_to_vmem [thread:$0]  %s367, 16, %s369, [#allocation6]
        $region20: #{tpu_custom_call.1} parent=11 // pred_fallthru
          _
        // Predicated region
        $region21: #{tpu_custom_call.1} parent=11 // pred_check
          %p372 = pneg %p118
        $region22: #{tpu_custom_call.1} parent=11 // pred_check_branch
          %374 = sbr.rel (%p372) target = $region24
        $region23: #{tpu_custom_call.1} parent=11 // pred_region
          %376 = vsyncadd [#allocation9], 0
          %s377 = sshll.u32 %s3, 4
          %s378 = int_to_ptr.hbm [resolvable:$true] %s377
          %s379 = sshll.u32 [#allocation8], 4
          %s380 = int_to_ptr.vmem [resolvable:$true] %s379
          %385 = dma.hbm_to_vmem [thread:$0]  %s378, 3072, %s380, [#allocation9], 192, 192, 12
        $region24: #{tpu_custom_call.1} parent=11 // pred_fallthru
          _
        // Predicated region
        $region25: #{tpu_custom_call.1} parent=11 // pred_check
          %p386 = pneg %p139
        $region26: #{tpu_custom_call.1} parent=11 // pred_check_branch
          %388 = sbr.rel (%p386) target = $region28
        $region27: #{tpu_custom_call.1} parent=11 // pred_region
          _
        $region28: #{tpu_custom_call.1} parent=11 // pred_fallthru
          _
        // Predicated region
        $region29: #{tpu_custom_call.1} parent=11 // pred_check
          %p389 = pneg %p160
        $region30: #{tpu_custom_call.1} parent=11 // pred_check_branch
          %391 = sbr.rel (%p389) target = $region32
        $region31: #{tpu_custom_call.1} parent=11 // pred_region
          %393 = vsyncadd [#allocation9], 0
          %s394 = sshll.u32 %s5, 4
          %s395 = int_to_ptr.hbm [resolvable:$true] %s394
          %s396 = sshll.u32 [#allocation10], 4
          %s397 = int_to_ptr.vmem [resolvable:$true] %s396
          %402 = dma.hbm_to_vmem [thread:$0]  %s395, 1024, %s397, [#allocation9], 64, 64, 4
        $region32: #{tpu_custom_call.1} parent=11 // pred_fallthru
          _
        // Predicated region
        $region33: #{tpu_custom_call.1} parent=11 // pred_check
          %p403 = pneg %p181
        $region34: #{tpu_custom_call.1} parent=11 // pred_check_branch
          %405 = sbr.rel (%p403) target = $region36
        $region35: #{tpu_custom_call.1} parent=11 // pred_region
          %407 = vsyncadd [#allocation12], 0
          %s409 = sshll.u32 %s6, 4
          %s410 = int_to_ptr.hbm [resolvable:$true] %s409
          %s411 = sshll.u32 [#allocation11], 4
          %s412 = int_to_ptr.vmem [resolvable:$true] %s411
          %414 = dma.hbm_to_vmem [thread:$0]  %s410, 16, %s412, [#allocation12]
        $region36: #{tpu_custom_call.1} parent=11 // pred_fallthru
          _
        // Predicated region
        $region37: #{tpu_custom_call.1} parent=11 // pred_check
          %p415 = pneg %p202
        $region38: #{tpu_custom_call.1} parent=11 // pred_check_branch
          %417 = sbr.rel (%p415) target = $region40
        $region39: #{tpu_custom_call.1} parent=11 // pred_region
          _
        $region40: #{tpu_custom_call.1} parent=11 // pred_fallthru
          _
        // Predicated region
        $region41: #{tpu_custom_call.1} parent=11 // pred_check
          %p418 = pneg %p223
        $region42: #{tpu_custom_call.1} parent=11 // pred_check_branch
          %420 = sbr.rel (%p418) target = $region44
        $region43: #{tpu_custom_call.1} parent=11 // pred_region
          _
        $region44: #{tpu_custom_call.1} parent=11 // pred_fallthru
          _
        // Predicated region
        $region45: #{tpu_custom_call.1} parent=11 // pred_check
          %p421 = pneg %p244
        $region46: #{tpu_custom_call.1} parent=11 // pred_check_branch
          %423 = sbr.rel (%p421) target = $region48
        $region47: #{tpu_custom_call.1} parent=11 // pred_region
          %425 = vsyncadd [#allocation12], 0
          %s426 = sshll.u32 %s9, 4
          %s427 = int_to_ptr.hbm [resolvable:$true] %s426
          %s428 = sshll.u32 [#allocation13], 4
          %s429 = int_to_ptr.vmem [resolvable:$true] %s428
          %434 = dma.hbm_to_vmem [thread:$0]  %s427, 2048, %s429, [#allocation12], 128, 128, 8
        $region48: #{tpu_custom_call.1} parent=11 // pred_fallthru
          _
        // Predicated region
        $region49: #{tpu_custom_call.1} parent=11 // pred_check
          %p435 = pneg %p265
        $region50: #{tpu_custom_call.1} parent=11 // pred_check_branch
          %437 = sbr.rel (%p435) target = $region52
        $region51: #{tpu_custom_call.1} parent=11 // pred_region
          _
        $region52: #{tpu_custom_call.1} parent=11 // pred_fallthru
          _
        // Predicated region
        $region53: #{tpu_custom_call.1} parent=11 // pred_check
          %p438 = pneg %p286
        $region54: #{tpu_custom_call.1} parent=11 // pred_check_branch
          %440 = sbr.rel (%p438) target = $region56
        $region55: #{tpu_custom_call.1} parent=11 // pred_region
          %442 = vsyncadd [#allocation15], 0
          %s443 = sshll.u32 %s11, 4
          %s444 = int_to_ptr.hbm [resolvable:$true] %s443
          %s445 = sshll.u32 [#allocation14], 4
          %s446 = int_to_ptr.vmem [resolvable:$true] %s445
          %451 = dma.hbm_to_vmem [thread:$0]  %s444, 2048, %s446, [#allocation15], 64, 64, 4
        $region56: #{tpu_custom_call.1} parent=11 // pred_fallthru
          _
        // Predicated region
        $region57: #{tpu_custom_call.1} parent=11 // pred_check
          %p452 = pneg %p307
        $region58: #{tpu_custom_call.1} parent=11 // pred_check_branch
          %454 = sbr.rel (%p452) target = $region60
        $region59: #{tpu_custom_call.1} parent=11 // pred_region
          _
        $region60: #{tpu_custom_call.1} parent=11 // pred_fallthru
          _
      $region12: #{tpu_custom_call.1} parent=5 // pred_fallthru
        _
      %p455 = scmp.lt.s32.totalorder %s29, 2
      // Predicated region
      $region61: #{tpu_custom_call.1} parent=5 // pred_check
        %p456 = pneg %p455
      $region62: #{tpu_custom_call.1} parent=5 // pred_check_branch
        %458 = sbr.rel (%p456) target = $region64
      $region63: #{tpu_custom_call.1} parent=5 // pred_region
        // Predicated region
        $region65: #{tpu_custom_call.1} parent=63 // pred_check
          %p459 = pneg %p49
        $region66: #{tpu_custom_call.1} parent=63 // pred_check_branch
          %461 = sbr.rel (%p459) target = $region68
        $region67: #{tpu_custom_call.1} parent=63 // pred_region
          %s462 = sand.u32 %s39, 1
          %s463 = scalar_lea.sflag [#allocation3], %s462
          %s464 = sand.u32 %s39, 1
          %s465 = smul.addr %s464, 32
          %s466 = scalar_lea.vmem [#allocation2], %s465
          %s467 = smul.u32 2, %s29
          %469 = vsyncadd %s463, 0
          %s470 = smul.addr %s467, 2
          %s471 = smul.addr %s470, 8
          %s472 = scalar_lea.hbm %s0, %s471
          %s473 = sshll.u32 %s472, 4
          %s474 = int_to_ptr.hbm [resolvable:$true] %s473
          %s475 = sshll.u32 %s466, 4
          %s476 = int_to_ptr.vmem [resolvable:$true] %s475
          %481 = dma.hbm_to_vmem [thread:$0]  %s474, 512, %s476, %s463, 128, 128, 8
        $region68: #{tpu_custom_call.1} parent=63 // pred_fallthru
          _
      $region64: #{tpu_custom_call.1} parent=5 // pred_fallthru
        _
      %p482 = scmp.le.s32.totalorder 1, %s29
      %p483 = scmp.lt.s32.totalorder %s29, 3
      %p484 = pnand %p482, %p483
      %p485 = pneg %p484
      // Predicated region
      $region69: #{tpu_custom_call.1} parent=5 // pred_check
        _
      $region70: #{tpu_custom_call.1} parent=5 // pred_check_branch
        %487 = sbr.rel (%p484) target = $region72
      $region71: #{tpu_custom_call.1} parent=5 // pred_region
        %s488 = ssub.s32 %s29, 1
        %s489 = sand.u32 %s42, 1
        %s490 = scalar_lea.sflag [#allocation3], %s489
        %s491 = sand.u32 %s42, 1
        %s492 = smul.addr %s491, 32
        %s493 = scalar_lea.vmem [#allocation2], %s492
        // Predicated region
        $region73: #{tpu_custom_call.1} parent=71 // pred_check
          %p494 = pneg %p55
        $region74: #{tpu_custom_call.1} parent=71 // pred_check_branch
          %496 = sbr.rel (%p494) target = $region76
        $region75: #{tpu_custom_call.1} parent=71 // pred_region
          %498 = dma.done %s490, 512
        $region76: #{tpu_custom_call.1} parent=71 // pred_fallthru
          _
        // Predicated region
        $region77: #{tpu_custom_call.1} parent=71 // pred_check
          %p499 = pneg %p76
        $region78: #{tpu_custom_call.1} parent=71 // pred_check_branch
          %501 = sbr.rel (%p499) target = $region80
        $region79: #{tpu_custom_call.1} parent=71 // pred_region
          %503 = dma.done [#allocation6], 16
        $region80: #{tpu_custom_call.1} parent=71 // pred_fallthru
          _
        // Predicated region
        $region81: #{tpu_custom_call.1} parent=71 // pred_check
          %p504 = pneg %p97
        $region82: #{tpu_custom_call.1} parent=71 // pred_check_branch
          %506 = sbr.rel (%p504) target = $region84
        $region83: #{tpu_custom_call.1} parent=71 // pred_region
          %508 = dma.done [#allocation6], 16
        $region84: #{tpu_custom_call.1} parent=71 // pred_fallthru
          _
        // Predicated region
        $region85: #{tpu_custom_call.1} parent=71 // pred_check
          %p509 = pneg %p118
        $region86: #{tpu_custom_call.1} parent=71 // pred_check_branch
          %511 = sbr.rel (%p509) target = $region88
        $region87: #{tpu_custom_call.1} parent=71 // pred_region
          %513 = dma.done [#allocation9], 3072
        $region88: #{tpu_custom_call.1} parent=71 // pred_fallthru
          _
        // Predicated region
        $region89: #{tpu_custom_call.1} parent=71 // pred_check
          %p514 = pneg %p160
        $region90: #{tpu_custom_call.1} parent=71 // pred_check_branch
          %516 = sbr.rel (%p514) target = $region92
        $region91: #{tpu_custom_call.1} parent=71 // pred_region
          %518 = dma.done [#allocation9], 1024
        $region92: #{tpu_custom_call.1} parent=71 // pred_fallthru
          _
        // Predicated region
        $region93: #{tpu_custom_call.1} parent=71 // pred_check
          %p519 = pneg %p181
        $region94: #{tpu_custom_call.1} parent=71 // pred_check_branch
          %521 = sbr.rel (%p519) target = $region96
        $region95: #{tpu_custom_call.1} parent=71 // pred_region
          %523 = dma.done [#allocation12], 16
        $region96: #{tpu_custom_call.1} parent=71 // pred_fallthru
          _
        // Predicated region
        $region97: #{tpu_custom_call.1} parent=71 // pred_check
          %p524 = pneg %p244
        $region98: #{tpu_custom_call.1} parent=71 // pred_check_branch
          %526 = sbr.rel (%p524) target = $region100
        $region99: #{tpu_custom_call.1} parent=71 // pred_region
          %528 = dma.done [#allocation12], 2048
        $region100: #{tpu_custom_call.1} parent=71 // pred_fallthru
          _
        // Predicated region
        $region101: #{tpu_custom_call.1} parent=71 // pred_check
          %p529 = pneg %p286
        $region102: #{tpu_custom_call.1} parent=71 // pred_check_branch
          %531 = sbr.rel (%p529) target = $region104
        $region103: #{tpu_custom_call.1} parent=71 // pred_region
          %533 = dma.done [#allocation15], 2048
        $region104: #{tpu_custom_call.1} parent=71 // pred_fallthru
          _
        %s534 = sand.u32 %s42, 1
        %s535 = scalar_lea.sflag [#allocation3], %s534
        %s536 = sand.u32 %s42, 1
        %s537 = smul.addr %s536, 32
        %s538 = scalar_lea.vmem [#allocation2], %s537
        %p539 = pneg %p55
        %p540 = pneg %p52
        %p541 = pneg %p76
        %p542 = pneg %p73
        %p543 = pneg %p97
        %p544 = pneg %p94
        %p545 = pneg %p118
        %p546 = pneg %p115
        %p547 = pneg %p139
        %p548 = pneg %p136
        %p549 = pneg %p160
        %p550 = pneg %p157
        %p551 = pneg %p181
        %p552 = pneg %p178
        %p553 = pneg %p202
        %p554 = pneg %p199
        %p555 = pneg %p223
        %p556 = pneg %p220
        %p557 = pneg %p244
        %p558 = pneg %p241
        %p559 = pneg %p265
        %p560 = pneg %p262
        %p561 = pneg %p286
        %p562 = pneg %p283
        %p563 = pneg %p307
        %p564 = pneg %p304
        %p565 = pneg %p333
        %p566 = pneg %p330
        %s567 = sand.u32 %s320, 1
        %s568 = scalar_lea.sflag [#allocation4], %s567
        %s569 = sand.u32 %s320, 1
        %s570 = smul.addr %s569, 32
        %s571 = scalar_lea.vmem [#allocation16], %s570
        %s572 = smul.u32 2, %s34
        %s573 = smul.u32 2, %s34
        %v575 = vld [vmem:[%s493] sm:$0xff]
        %v576 = vld [vmem:[%s493 + $0x8] sm:$0xff]
        %v577 = vld [vmem:[%s493 + $0x10] sm:$0xff]
        %v578 = vld [vmem:[%s493 + $0x18] sm:$0xff]
        %v579 = vld [vmem:[#allocation5] sm:$0x1]
        %v580 = vld [vmem:[#allocation7] sm:$0x1]
        %581 = vadd.xlane.f32.xlu0 %v575
        %v582 = vpop.xlane.xlu0 %581
        %583 = vadd.xlane.f32.xlu0 %v576
        %v584 = vpop.xlane.xlu0 %583
        %585 = vadd.xlane.f32.xlu0 %v577
        %v586 = vpop.xlane.xlu0 %585
        %587 = vadd.xlane.f32.xlu0 %v578
        %v588 = vpop.xlane.xlu0 %587
        %v589 = vrcp.pop 128.0
        %v590 = vmul.f32 128.0, %v589
        %v591 = vsub.f32 1.0, %v590
        %v592 = vmul.f32 %v589, %v591
        %v593 = vadd.f32 %v589, %v592
        %vm594 = vweird.f32 %v589
        %v595 = vsel %vm594, %v589, %v593
        %v596 = vmul.f32 %v582, %v595
        %v597 = vmul.f32 %v584, %v595
        %v598 = vmul.f32 %v586, %v595
        %v599 = vmul.f32 %v588, %v595
        %v600 = vsub.f32 %v575, %v596
        %v601 = vsub.f32 %v576, %v597
        %v602 = vsub.f32 %v577, %v598
        %v603 = vsub.f32 %v578, %v599
        %v604 = vmul.f32 %v600, %v600
        %v605 = vmul.f32 %v601, %v601
        %v606 = vmul.f32 %v602, %v602
        %v607 = vmul.f32 %v603, %v603
        %608 = vadd.xlane.f32.xlu0 %v604
        %v609 = vpop.xlane.xlu0 %608
        %610 = vadd.xlane.f32.xlu0 %v605
        %v611 = vpop.xlane.xlu0 %610
        %612 = vadd.xlane.f32.xlu0 %v606
        %v613 = vpop.xlane.xlu0 %612
        %614 = vadd.xlane.f32.xlu0 %v607
        %v615 = vpop.xlane.xlu0 %614
        %v616 = vmul.f32 %v609, %v595
        %v617 = vmul.f32 %v611, %v595
        %v618 = vmul.f32 %v613, %v595
        %v619 = vmul.f32 %v615, %v595
        %v620 = vadd.f32 %v616, 1e-05
        %v621 = vadd.f32 %v617, 1e-05
        %v622 = vadd.f32 %v618, 1e-05
        %v623 = vadd.f32 %v619, 1e-05
        %v624 = vrsqrt.pop %v620
        %v625 = vmul.f32 %v624, %v620
        %v626 = vmul.f32 %v625, %v624
        %v627 = vmul.f32 0.5, %v626
        %v628 = vsub.f32 1.5, %v627
        %v629 = vmul.f32 %v624, %v628
        %vm630 = vweird.f32 %v620
        %vm631 = vweird.f32 %v624
        %vm632 = vmor %vm630, %vm631
        %v633 = vsel %vm632, %v624, %v629
        %v634 = vrsqrt.pop %v621
        %v635 = vmul.f32 %v634, %v621
        %v636 = vmul.f32 %v635, %v634
        %v637 = vmul.f32 0.5, %v636
        %v638 = vsub.f32 1.5, %v637
        %v639 = vmul.f32 %v634, %v638
        %vm640 = vweird.f32 %v621
        %vm641 = vweird.f32 %v634
        %vm642 = vmor %vm640, %vm641
        %v643 = vsel %vm642, %v634, %v639
        %v644 = vrsqrt.pop %v622
        %v645 = vmul.f32 %v644, %v622
        %v646 = vmul.f32 %v645, %v644
        %v647 = vmul.f32 0.5, %v646
        %v648 = vsub.f32 1.5, %v647
        %v649 = vmul.f32 %v644, %v648
        %vm650 = vweird.f32 %v622
        %vm651 = vweird.f32 %v644
        %vm652 = vmor %vm650, %vm651
        %v653 = vsel %vm652, %v644, %v649
        %v654 = vrsqrt.pop %v623
        %v655 = vmul.f32 %v654, %v623
        %v656 = vmul.f32 %v655, %v654
        %v657 = vmul.f32 0.5, %v656
        %v658 = vsub.f32 1.5, %v657
        %v659 = vmul.f32 %v654, %v658
        %vm660 = vweird.f32 %v623
        %vm661 = vweird.f32 %v654
        %vm662 = vmor %vm660, %vm661
        %v663 = vsel %vm662, %v654, %v659
        %v664 = vmul.f32 %v600, %v633
        %v665 = vmul.f32 %v601, %v643
        %v666 = vmul.f32 %v602, %v653
        %v667 = vmul.f32 %v603, %v663
        %v669 = vperm.slane %v579, 0
        %v671 = vmul.f32 %v664, %v669
        %v672 = vmul.f32 %v665, %v669
        %v673 = vmul.f32 %v666, %v669
        %v674 = vmul.f32 %v667, %v669
        %v676 = vperm.slane %v580, 0
        %v678 = vadd.f32 %v671, %v676
        %v679 = vadd.f32 %v672, %v676
        %v680 = vadd.f32 %v673, %v676
        %v681 = vadd.f32 %v674, %v676
        %v682 = vpack.c.bf16 %v679, %v678
        %v683 = vpack.c.bf16 %v681, %v680
        %v684 = vld [vmem:[#allocation8] sm:$0xff]
        %v685 = vld [vmem:[#allocation8 + $0x8] sm:$0xf]
        %v686 = vld [vmem:[#allocation8 + $0xc] sm:$0xff]
        %v687 = vld [vmem:[#allocation8 + $0x14] sm:$0xf]
        %v688 = vld [vmem:[#allocation8 + $0x18] sm:$0xff]
        %v689 = vld [vmem:[#allocation8 + $0x20] sm:$0xf]
        %v690 = vld [vmem:[#allocation8 + $0x24] sm:$0xff]
        %v691 = vld [vmem:[#allocation8 + $0x2c] sm:$0xf]
        %v692 = vld [vmem:[#allocation8 + $0x30] sm:$0xff]
        %v693 = vld [vmem:[#allocation8 + $0x38] sm:$0xf]
        %v694 = vld [vmem:[#allocation8 + $0x3c] sm:$0xff]
        %v695 = vld [vmem:[#allocation8 + $0x44] sm:$0xf]
        %v696 = vld [vmem:[#allocation8 + $0x48] sm:$0xff]
        %v697 = vld [vmem:[#allocation8 + $0x50] sm:$0xf]
        %v698 = vld [vmem:[#allocation8 + $0x54] sm:$0xff]
        %v699 = vld [vmem:[#allocation8 + $0x5c] sm:$0xf]
        %v700 = vld [vmem:[#allocation8 + $0x60] sm:$0xff]
        %v701 = vld [vmem:[#allocation8 + $0x68] sm:$0xf]
        %v702 = vld [vmem:[#allocation8 + $0x6c] sm:$0xff]
        %v703 = vld [vmem:[#allocation8 + $0x74] sm:$0xf]
        %v704 = vld [vmem:[#allocation8 + $0x78] sm:$0xff]
        %v705 = vld [vmem:[#allocation8 + $0x80] sm:$0xf]
        %v706 = vld [vmem:[#allocation8 + $0x84] sm:$0xff]
        %v707 = vld [vmem:[#allocation8 + $0x8c] sm:$0xf]
        %v708 = vld [vmem:[#allocation8 + $0x90] sm:$0xff]
        %v709 = vld [vmem:[#allocation8 + $0x98] sm:$0xf]
        %v710 = vld [vmem:[#allocation8 + $0x9c] sm:$0xff]
        %v711 = vld [vmem:[#allocation8 + $0xa4] sm:$0xf]
        %v712 = vld [vmem:[#allocation8 + $0xa8] sm:$0xff]
        %v713 = vld [vmem:[#allocation8 + $0xb0] sm:$0xf]
        %v714 = vld [vmem:[#allocation8 + $0xb4] sm:$0xff]
        %v715 = vld [vmem:[#allocation8 + $0xbc] sm:$0xf]
        %v716 = vld [vmem:[%s4] sm:$0x7]
        %v718 = vperm.slane %v716, 0
        %v719 = vperm.slane %v716, 1
        %v720 = vperm.slane %v716, 2
        %v756 = vunpack.c.l.b16 %v684
        %v757 = vunpack.c.h.b16 %v684
        %v758 = vunpack.c.l.b16 %v685
        %v759 = vunpack.c.l.b16 %v686
        %v760 = vunpack.c.h.b16 %v686
        %v761 = vunpack.c.l.b16 %v687
        %v762 = vunpack.c.l.b16 %v688
        %v763 = vunpack.c.h.b16 %v688
        %v764 = vunpack.c.l.b16 %v689
        %v765 = vunpack.c.l.b16 %v690
        %v766 = vunpack.c.h.b16 %v690
        %v767 = vunpack.c.l.b16 %v691
        %v768 = vunpack.c.l.b16 %v692
        %v769 = vunpack.c.h.b16 %v692
        %v770 = vunpack.c.l.b16 %v693
        %v771 = vunpack.c.l.b16 %v694
        %v772 = vunpack.c.h.b16 %v694
        %v773 = vunpack.c.l.b16 %v695
        %v774 = vunpack.c.l.b16 %v696
        %v775 = vunpack.c.h.b16 %v696
        %v776 = vunpack.c.l.b16 %v697
        %v777 = vunpack.c.l.b16 %v698
        %v778 = vunpack.c.h.b16 %v698
        %v779 = vunpack.c.l.b16 %v699
        %v780 = vunpack.c.l.b16 %v700
        %v781 = vunpack.c.h.b16 %v700
        %v782 = vunpack.c.l.b16 %v701
        %v783 = vunpack.c.l.b16 %v702
        %v784 = vunpack.c.h.b16 %v702
        %v785 = vunpack.c.l.b16 %v703
        %v786 = vunpack.c.l.b16 %v704
        %v787 = vunpack.c.h.b16 %v704
        %v788 = vunpack.c.l.b16 %v705
        %v789 = vunpack.c.l.b16 %v706
        %v790 = vunpack.c.h.b16 %v706
        %v791 = vunpack.c.l.b16 %v707
        %v792 = vunpack.c.l.b16 %v708
        %v793 = vunpack.c.h.b16 %v708
        %v794 = vunpack.c.l.b16 %v709
        %v795 = vunpack.c.l.b16 %v710
        %v796 = vunpack.c.h.b16 %v710
        %v797 = vunpack.c.l.b16 %v711
        %v798 = vunpack.c.l.b16 %v712
        %v799 = vunpack.c.h.b16 %v712
        %v800 = vunpack.c.l.b16 %v713
        %v801 = vunpack.c.l.b16 %v714
        %v802 = vunpack.c.h.b16 %v714
        %v803 = vunpack.c.l.b16 %v715
        %v804 = vpack.c.b16 %v759, %v756
        %v805 = vpack.c.b16 %v760, %v757
        %v806 = vpack.c.b16 %v761, %v758
        %v807 = vpack.c.b16 %v765, %v762
        %v808 = vpack.c.b16 %v766, %v763
        %v809 = vpack.c.b16 %v767, %v764
        %v810 = vpack.c.b16 %v771, %v768
        %v811 = vpack.c.b16 %v772, %v769
        %v812 = vpack.c.b16 %v773, %v770
        %v813 = vpack.c.b16 %v777, %v774
        %v814 = vpack.c.b16 %v778, %v775
        %v815 = vpack.c.b16 %v779, %v776
        %v816 = vpack.c.b16 %v783, %v780
        %v817 = vpack.c.b16 %v784, %v781
        %v818 = vpack.c.b16 %v785, %v782
        %v819 = vpack.c.b16 %v789, %v786
        %v820 = vpack.c.b16 %v790, %v787
        %v821 = vpack.c.b16 %v791, %v788
        %v822 = vpack.c.b16 %v795, %v792
        %v823 = vpack.c.b16 %v796, %v793
        %v824 = vpack.c.b16 %v797, %v794
        %v825 = vpack.c.b16 %v801, %v798
        %v826 = vpack.c.b16 %v802, %v799
        %v827 = vpack.c.b16 %v803, %v800
        %852 = vmatpush.bf16.msra.mxu0 %v825
        %853 = vmatpush.bf16.msra.mxu0 %v822
        %854 = vmatpush.bf16.msra.mxu0 %v819
        %855 = vmatpush.bf16.msra.mxu0 %v816
        %856 = vmatpush.bf16.msra.mxu0 %v813
        %857 = vmatpush.bf16.msra.mxu0 %v810
        %858 = vmatpush.bf16.msra.mxu0 %v807
        %859 = vmatpush.bf16.msra.mxu0 %v804
        %860 = vmatmul.bf16.gmra.mxu0 %v682
        %v861 = vpop.f32.mrf.mxu0
        %v862 = vadd.f32 %v718, %v861
        %v863 = vpop.f32.mrf.mxu0
        %v864 = vadd.f32 %v718, %v863
        %865 = vmatmul.bf16.gmra.mxu0 %v683
        %v866 = vpop.f32.mrf.mxu0
        %v867 = vadd.f32 %v718, %v866
        %v868 = vpop.f32.mrf.mxu0
        %v869 = vadd.f32 %v718, %v868
        %870 = vdwg.mxu0
        %871 = vmatpush.bf16.msra.mxu0 %v826
        %872 = vmatpush.bf16.msra.mxu0 %v823
        %873 = vmatpush.bf16.msra.mxu0 %v820
        %874 = vmatpush.bf16.msra.mxu0 %v817
        %875 = vmatpush.bf16.msra.mxu0 %v814
        %876 = vmatpush.bf16.msra.mxu0 %v811
        %877 = vmatpush.bf16.msra.mxu0 %v808
        %878 = vmatpush.bf16.msra.mxu0 %v805
        %879 = vmatmul.bf16.gmra.mxu0 %v682
        %v880 = vpop.f32.mrf.mxu0
        %v881 = vadd.f32 %v719, %v880
        %v882 = vpop.f32.mrf.mxu0
        %v883 = vadd.f32 %v719, %v882
        %884 = vmatmul.bf16.gmra.mxu0 %v683
        %v885 = vpop.f32.mrf.mxu0
        %v886 = vadd.f32 %v719, %v885
        %v887 = vpop.f32.mrf.mxu0
        %v888 = vadd.f32 %v719, %v887
        %889 = vdwg.mxu0
        %890 = vmatpush.bf16.msra.mxu0 %v827
        %891 = vmatpush.bf16.msra.mxu0 %v824
        %892 = vmatpush.bf16.msra.mxu0 %v821
        %893 = vmatpush.bf16.msra.mxu0 %v818
        %894 = vmatpush.bf16.msra.mxu0 %v815
        %895 = vmatpush.bf16.msra.mxu0 %v812
        %896 = vmatpush.bf16.msra.mxu0 %v809
        %897 = vmatpush.bf16.msra.mxu0 %v806
        %898 = vmatmul.bf16.gmra.mxu0 %v682
        %v899 = vpop.f32.mrf.mxu0
        %v900 = vadd.f32 %v720, %v899
        %v901 = vpop.f32.mrf.mxu0
        %v902 = vadd.f32 %v720, %v901
        %903 = vmatmul.bf16.gmra.mxu0 %v683
        %v904 = vpop.f32.mrf.mxu0
        %v905 = vadd.f32 %v720, %v904
        %v906 = vpop.f32.mrf.mxu0
        %v907 = vadd.f32 %v720, %v906
        %908 = vdwg.mxu0
        %v909 = vpack.c.bf16 %v862, %v862
        %v910 = vpack.c.bf16 %v864, %v864
        %v911 = vpack.c.bf16 %v867, %v867
        %v912 = vpack.c.bf16 %v869, %v869
        %v913 = vpack.c.bf16 %v881, %v881
        %v914 = vpack.c.bf16 %v883, %v883
        %v915 = vpack.c.bf16 %v886, %v886
        %v916 = vpack.c.bf16 %v888, %v888
        %v917 = vpack.c.bf16 %v900, %v900
        %v918 = vpack.c.bf16 %v902, %v902
        %v919 = vpack.c.bf16 %v905, %v905
        %v920 = vpack.c.bf16 %v907, %v907
        %v921 = vld [vmem:[#allocation10] sm:$0xf]
        %v922 = vld [vmem:[#allocation10 + $0x4] sm:$0xf]
        %v923 = vld [vmem:[#allocation10 + $0x8] sm:$0xf]
        %v924 = vld [vmem:[#allocation10 + $0xc] sm:$0xf]
        %v925 = vld [vmem:[#allocation10 + $0x10] sm:$0xf]
        %v926 = vld [vmem:[#allocation10 + $0x14] sm:$0xf]
        %v927 = vld [vmem:[#allocation10 + $0x18] sm:$0xf]
        %v928 = vld [vmem:[#allocation10 + $0x1c] sm:$0xf]
        %v929 = vld [vmem:[#allocation10 + $0x20] sm:$0xf]
        %v930 = vld [vmem:[#allocation10 + $0x24] sm:$0xf]
        %v931 = vld [vmem:[#allocation10 + $0x28] sm:$0xf]
        %v932 = vld [vmem:[#allocation10 + $0x2c] sm:$0xf]
        %v933 = vld [vmem:[#allocation10 + $0x30] sm:$0xf]
        %v934 = vld [vmem:[#allocation10 + $0x34] sm:$0xf]
        %v935 = vld [vmem:[#allocation10 + $0x38] sm:$0xf]
        %v936 = vld [vmem:[#allocation10 + $0x3c] sm:$0xf]
        %v937 = vld [vmem:[#allocation11] sm:$0x1]
        %v939 = vperm.slane %v937, 0
        %v941 = vadd.f32 %v939, 0.0
        %v944 = vunpack.c.l.b16 %v909
        %v945 = vunpack.c.l.b16 %v910
        %v946 = vpack.c.b16 %v945, %v944
        %v949 = vunpack.c.l.b16 %v913
        %v950 = vunpack.c.l.b16 %v914
        %v951 = vpack.c.b16 %v950, %v949
        %vm952 = vcmask 261120
        %v954 = vsel %vm952, %v946, 0
        %v957 = vsel %vm952, %v951, 0
        %959 = vmatpush.bf16.xpose.msra.mxu0 0
        %960 = vmatpush.bf16.xpose.msra.mxu0 0
        %961 = vmatpush.bf16.xpose.msra.mxu0 0
        %962 = vmatpush.bf16.xpose.msra.mxu0 0
        %963 = vmatpush.bf16.xpose.msra.mxu0 0
        %964 = vmatpush.bf16.xpose.msra.mxu0 0
        %965 = vmatpush.bf16.xpose.msra.mxu0 0
        %966 = vmatpush.bf16.xpose.msra.mxu0 %v957
        %967 = vmatmul.bf16.gmra.mxu0 %v954
        %v968 = vpop.f32.mrf.mxu0
        %v969 = vadd.f32 0.0, %v968
        %v970 = vpop.f32.mrf.mxu0
        %v971 = vadd.f32 0.0, %v970
        %972 = vdwg.mxu0
        %v975 = vunpack.c.l.b16 %v911
        %v976 = vunpack.c.l.b16 %v912
        %v977 = vpack.c.b16 %v976, %v975
        %v980 = vunpack.c.l.b16 %v915
        %v981 = vunpack.c.l.b16 %v916
        %v982 = vpack.c.b16 %v981, %v980
        %v984 = vsel %vm952, %v977, 0
        %v987 = vsel %vm952, %v982, 0
        %989 = vmatpush.bf16.xpose.msra.mxu0 0
        %990 = vmatpush.bf16.xpose.msra.mxu0 0
        %991 = vmatpush.bf16.xpose.msra.mxu0 0
        %992 = vmatpush.bf16.xpose.msra.mxu0 0
        %993 = vmatpush.bf16.xpose.msra.mxu0 0
        %994 = vmatpush.bf16.xpose.msra.mxu0 0
        %995 = vmatpush.bf16.xpose.msra.mxu0 0
        %996 = vmatpush.bf16.xpose.msra.mxu0 %v987
        %997 = vmatmul.bf16.gmra.mxu0 %v984
        %v998 = vpop.f32.mrf.mxu0
        %v999 = vadd.f32 0.0, %v998
        %v1000 = vpop.f32.mrf.mxu0
        %v1001 = vadd.f32 0.0, %v1000
        %1002 = vdwg.mxu0
        %vm1003 = vcmask 130048
        %v1004 = vsel %vm1003, %v969, -inf
        %1005 = vmax.xlane.f32.xlu0 %v1004
        %v1006 = vpop.xlane.xlu0 %1005
        %v1007 = vsel %vm1003, %v971, -inf
        %1008 = vmax.xlane.f32.xlu0 %v1007
        %v1009 = vpop.xlane.xlu0 %1008
        %v1010 = vsel %vm1003, %v999, -inf
        %1011 = vmax.xlane.f32.xlu0 %v1010
        %v1012 = vpop.xlane.xlu0 %1011
        %v1013 = vsel %vm1003, %v1001, -inf
        %1014 = vmax.xlane.f32.xlu0 %v1013
        %v1015 = vpop.xlane.xlu0 %1014
        %v1016 = vsub.f32 %v969, %v1006
        %v1017 = vsub.f32 %v971, %v1009
        %v1018 = vsub.f32 %v999, %v1012
        %v1019 = vsub.f32 %v1001, %v1015
        %v1020 = vmul.f32 %v1016, 1.442695
        %v1021 = vpow.pop %v1020
        %v1022 = vmul.f32 %v1017, 1.442695
        %v1023 = vpow.pop %v1022
        %v1024 = vmul.f32 %v1018, 1.442695
        %v1025 = vpow.pop %v1024
        %v1026 = vmul.f32 %v1019, 1.442695
        %v1027 = vpow.pop %v1026
        %v1028 = vsel %vm1003, %v1021, 0.0
        %1029 = vadd.xlane.f32.xlu0 %v1028
        %v1030 = vpop.xlane.xlu0 %1029
        %v1031 = vsel %vm1003, %v1023, 0.0
        %1032 = vadd.xlane.f32.xlu0 %v1031
        %v1033 = vpop.xlane.xlu0 %1032
        %v1034 = vsel %vm1003, %v1025, 0.0
        %1035 = vadd.xlane.f32.xlu0 %v1034
        %v1036 = vpop.xlane.xlu0 %1035
        %v1037 = vsel %vm1003, %v1027, 0.0
        %1038 = vadd.xlane.f32.xlu0 %v1037
        %v1039 = vpop.xlane.xlu0 %1038
        %v1040 = vrcp.pop %v1030
        %v1041 = vrcp.pop %v1033
        %v1042 = vrcp.pop %v1036
        %v1043 = vrcp.pop %v1039
        %v1044 = vmul.f32 %v1021, %v1040
        %v1045 = vmul.f32 %v1023, %v1041
        %v1046 = vmul.f32 %v1025, %v1042
        %v1047 = vmul.f32 %v1027, %v1043
        %v1048 = vpack.c.bf16 %v1044, %v1044
        %v1049 = vpack.c.bf16 %v1045, %v1045
        %v1050 = vpack.c.bf16 %v1046, %v1046
        %v1051 = vpack.c.bf16 %v1047, %v1047
        %v1054 = vunpack.c.l.b16 %v1048
        %v1055 = vunpack.c.l.b16 %v1049
        %v1056 = vpack.c.b16 %v1055, %v1054
        %v1059 = vunpack.c.l.b16 %v917
        %v1060 = vunpack.c.l.b16 %v918
        %v1061 = vpack.c.b16 %v1060, %v1059
        %v1064 = vsel %vm1003, %v1056, 0
        %1066 = vmatpush.bf16.msra.mxu0 0
        %1067 = vmatpush.bf16.msra.mxu0 0
        %1068 = vmatpush.bf16.msra.mxu0 0
        %1069 = vmatpush.bf16.msra.mxu0 0
        %1070 = vmatpush.bf16.msra.mxu0 0
        %1071 = vmatpush.bf16.msra.mxu0 0
        %1072 = vmatpush.bf16.msra.mxu0 0
        %1073 = vmatpush.bf16.msra.mxu0 %v1061
        %1074 = vmatmul.bf16.gmra.mxu0 %v1064
        %v1075 = vpop.f32.mrf.mxu0
        %v1076 = vadd.f32 0.0, %v1075
        %v1077 = vpop.f32.mrf.mxu0
        %v1078 = vadd.f32 0.0, %v1077
        %1079 = vdwg.mxu0
        %v1082 = vunpack.c.l.b16 %v1050
        %v1083 = vunpack.c.l.b16 %v1051
        %v1084 = vpack.c.b16 %v1083, %v1082
        %v1087 = vunpack.c.l.b16 %v919
        %v1088 = vunpack.c.l.b16 %v920
        %v1089 = vpack.c.b16 %v1088, %v1087
        %v1092 = vsel %vm1003, %v1084, 0
        %1094 = vmatpush.bf16.msra.mxu0 0
        %1095 = vmatpush.bf16.msra.mxu0 0
        %1096 = vmatpush.bf16.msra.mxu0 0
        %1097 = vmatpush.bf16.msra.mxu0 0
        %1098 = vmatpush.bf16.msra.mxu0 0
        %1099 = vmatpush.bf16.msra.mxu0 0
        %1100 = vmatpush.bf16.msra.mxu0 0
        %1101 = vmatpush.bf16.msra.mxu0 %v1089
        %1102 = vmatmul.bf16.gmra.mxu0 %v1092
        %v1103 = vpop.f32.mrf.mxu0
        %v1104 = vadd.f32 0.0, %v1103
        %v1105 = vpop.f32.mrf.mxu0
        %v1106 = vadd.f32 0.0, %v1105
        %1107 = vdwg.mxu0
        %v1108 = vpack.c.bf16 %v1078, %v1076
        %v1109 = vpack.c.bf16 %v1106, %v1104
        %v1114 = vunpack.c.l.b16 %v921
        %v1115 = vunpack.c.l.b16 %v922
        %v1116 = vunpack.c.l.b16 %v923
        %v1117 = vunpack.c.l.b16 %v924
        %v1118 = vpack.c.b16 %v1115, %v1114
        %v1119 = vpack.c.b16 %v1117, %v1116
        %v1123 = vsel %vm952, %v1108, 0
        %v1126 = vsel %vm952, %v1109, 0
        %1128 = vmatpush.bf16.msra.mxu0 0
        %1129 = vmatpush.bf16.msra.mxu0 0
        %1130 = vmatpush.bf16.msra.mxu0 0
        %1131 = vmatpush.bf16.msra.mxu0 0
        %1132 = vmatpush.bf16.msra.mxu0 0
        %1133 = vmatpush.bf16.msra.mxu0 0
        %1134 = vmatpush.bf16.msra.mxu0 %v1119
        %1135 = vmatpush.bf16.msra.mxu0 %v1118
        %1136 = vmatmul.bf16.gmra.mxu0 %v1123
        %v1137 = vpop.f32.mrf.mxu0
        %v1138 = vadd.f32 0.0, %v1137
        %v1139 = vpop.f32.mrf.mxu0
        %v1140 = vadd.f32 0.0, %v1139
        %1141 = vmatmul.bf16.gmra.mxu0 %v1126
        %v1142 = vpop.f32.mrf.mxu0
        %v1143 = vadd.f32 0.0, %v1142
        %v1144 = vpop.f32.mrf.mxu0
        %v1145 = vadd.f32 0.0, %v1144
        %1146 = vdwg.mxu0
        %v1147 = vadd.f32 %v941, %v1138
        %v1148 = vadd.f32 %v941, %v1140
        %v1149 = vadd.f32 %v941, %v1143
        %v1150 = vadd.f32 %v941, %v1145
        %1151 = vrot.lane.b32.xlu0 %v946, 96
        %v1152 = vpop.permute.xlu0 %1151
        %1153 = vrot.lane.b32.xlu0 %v951, 96
        %v1154 = vpop.permute.xlu0 %1153
        %v1156 = vsel %vm952, %v1152, 0
        %v1159 = vsel %vm952, %v1154, 0
        %1161 = vmatpush.bf16.xpose.msra.mxu0 0
        %1162 = vmatpush.bf16.xpose.msra.mxu0 0
        %1163 = vmatpush.bf16.xpose.msra.mxu0 0
        %1164 = vmatpush.bf16.xpose.msra.mxu0 0
        %1165 = vmatpush.bf16.xpose.msra.mxu0 0
        %1166 = vmatpush.bf16.xpose.msra.mxu0 0
        %1167 = vmatpush.bf16.xpose.msra.mxu0 0
        %1168 = vmatpush.bf16.xpose.msra.mxu0 %v1159
        %1169 = vmatmul.bf16.gmra.mxu0 %v1156
        %v1170 = vpop.f32.mrf.mxu0
        %v1171 = vadd.f32 0.0, %v1170
        %v1172 = vpop.f32.mrf.mxu0
        %v1173 = vadd.f32 0.0, %v1172
        %1174 = vdwg.mxu0
        %1175 = vrot.lane.b32.xlu0 %v977, 96
        %v1176 = vpop.permute.xlu0 %1175
        %1177 = vrot.lane.b32.xlu0 %v982, 96
        %v1178 = vpop.permute.xlu0 %1177
        %v1180 = vsel %vm952, %v1176, 0
        %v1183 = vsel %vm952, %v1178, 0
        %1185 = vmatpush.bf16.xpose.msra.mxu0 0
        %1186 = vmatpush.bf16.xpose.msra.mxu0 0
        %1187 = vmatpush.bf16.xpose.msra.mxu0 0
        %1188 = vmatpush.bf16.xpose.msra.mxu0 0
        %1189 = vmatpush.bf16.xpose.msra.mxu0 0
        %1190 = vmatpush.bf16.xpose.msra.mxu0 0
        %1191 = vmatpush.bf16.xpose.msra.mxu0 0
        %1192 = vmatpush.bf16.xpose.msra.mxu0 %v1183
        %1193 = vmatmul.bf16.gmra.mxu0 %v1180
        %v1194 = vpop.f32.mrf.mxu0
        %v1195 = vadd.f32 0.0, %v1194
        %v1196 = vpop.f32.mrf.mxu0
        %v1197 = vadd.f32 0.0, %v1196
        %1198 = vdwg.mxu0
        %v1199 = vsel %vm1003, %v1171, -inf
        %1200 = vmax.xlane.f32.xlu0 %v1199
        %v1201 = vpop.xlane.xlu0 %1200
        %v1202 = vsel %vm1003, %v1173, -inf
        %1203 = vmax.xlane.f32.xlu0 %v1202
        %v1204 = vpop.xlane.xlu0 %1203
        %v1205 = vsel %vm1003, %v1195, -inf
        %1206 = vmax.xlane.f32.xlu0 %v1205
        %v1207 = vpop.xlane.xlu0 %1206
        %v1208 = vsel %vm1003, %v1197, -inf
        %1209 = vmax.xlane.f32.xlu0 %v1208
        %v1210 = vpop.xlane.xlu0 %1209
        %v1211 = vsub.f32 %v1171, %v1201
        %v1212 = vsub.f32 %v1173, %v1204
        %v1213 = vsub.f32 %v1195, %v1207
        %v1214 = vsub.f32 %v1197, %v1210
        %v1215 = vmul.f32 %v1211, 1.442695
        %v1216 = vpow.pop %v1215
        %v1217 = vmul.f32 %v1212, 1.442695
        %v1218 = vpow.pop %v1217
        %v1219 = vmul.f32 %v1213, 1.442695
        %v1220 = vpow.pop %v1219
        %v1221 = vmul.f32 %v1214, 1.442695
        %v1222 = vpow.pop %v1221
        %v1223 = vsel %vm1003, %v1216, 0.0
        %1224 = vadd.xlane.f32.xlu0 %v1223
        %v1225 = vpop.xlane.xlu0 %1224
        %v1226 = vsel %vm1003, %v1218, 0.0
        %1227 = vadd.xlane.f32.xlu0 %v1226
        %v1228 = vpop.xlane.xlu0 %1227
        %v1229 = vsel %vm1003, %v1220, 0.0
        %1230 = vadd.xlane.f32.xlu0 %v1229
        %v1231 = vpop.xlane.xlu0 %1230
        %v1232 = vsel %vm1003, %v1222, 0.0
        %1233 = vadd.xlane.f32.xlu0 %v1232
        %v1234 = vpop.xlane.xlu0 %1233
        %v1235 = vrcp.pop %v1225
        %v1236 = vrcp.pop %v1228
        %v1237 = vrcp.pop %v1231
        %v1238 = vrcp.pop %v1234
        %v1239 = vmul.f32 %v1216, %v1235
        %v1240 = vmul.f32 %v1218, %v1236
        %v1241 = vmul.f32 %v1220, %v1237
        %v1242 = vmul.f32 %v1222, %v1238
        %v1243 = vpack.c.bf16 %v1239, %v1239
        %v1244 = vpack.c.bf16 %v1240, %v1240
        %v1245 = vpack.c.bf16 %v1241, %v1241
        %v1246 = vpack.c.bf16 %v1242, %v1242
        %v1249 = vunpack.c.l.b16 %v1243
        %v1250 = vunpack.c.l.b16 %v1244
        %v1251 = vpack.c.b16 %v1250, %v1249
        %1252 = vrot.lane.b32.xlu0 %v1061, 96
        %v1253 = vpop.permute.xlu0 %1252
        %v1256 = vsel %vm1003, %v1251, 0
        %1258 = vmatpush.bf16.msra.mxu0 0
        %1259 = vmatpush.bf16.msra.mxu0 0
        %1260 = vmatpush.bf16.msra.mxu0 0
        %1261 = vmatpush.bf16.msra.mxu0 0
        %1262 = vmatpush.bf16.msra.mxu0 0
        %1263 = vmatpush.bf16.msra.mxu0 0
        %1264 = vmatpush.bf16.msra.mxu0 0
        %1265 = vmatpush.bf16.msra.mxu0 %v1253
        %1266 = vmatmul.bf16.gmra.mxu0 %v1256
        %v1267 = vpop.f32.mrf.mxu0
        %v1268 = vadd.f32 0.0, %v1267
        %v1269 = vpop.f32.mrf.mxu0
        %v1270 = vadd.f32 0.0, %v1269
        %1271 = vdwg.mxu0
        %v1274 = vunpack.c.l.b16 %v1245
        %v1275 = vunpack.c.l.b16 %v1246
        %v1276 = vpack.c.b16 %v1275, %v1274
        %1277 = vrot.lane.b32.xlu0 %v1089, 96
        %v1278 = vpop.permute.xlu0 %1277
        %v1281 = vsel %vm1003, %v1276, 0
        %1283 = vmatpush.bf16.msra.mxu0 0
        %1284 = vmatpush.bf16.msra.mxu0 0
        %1285 = vmatpush.bf16.msra.mxu0 0
        %1286 = vmatpush.bf16.msra.mxu0 0
        %1287 = vmatpush.bf16.msra.mxu0 0
        %1288 = vmatpush.bf16.msra.mxu0 0
        %1289 = vmatpush.bf16.msra.mxu0 0
        %1290 = vmatpush.bf16.msra.mxu0 %v1278
        %1291 = vmatmul.bf16.gmra.mxu0 %v1281
        %v1292 = vpop.f32.mrf.mxu0
        %v1293 = vadd.f32 0.0, %v1292
        %v1294 = vpop.f32.mrf.mxu0
        %v1295 = vadd.f32 0.0, %v1294
        %1296 = vdwg.mxu0
        %v1297 = vpack.c.bf16 %v1270, %v1268
        %v1298 = vpack.c.bf16 %v1295, %v1293
        %v1303 = vunpack.c.l.b16 %v925
        %v1304 = vunpack.c.l.b16 %v926
        %v1305 = vunpack.c.l.b16 %v927
        %v1306 = vunpack.c.l.b16 %v928
        %v1307 = vpack.c.b16 %v1304, %v1303
        %v1308 = vpack.c.b16 %v1306, %v1305
        %v1312 = vsel %vm952, %v1297, 0
        %v1315 = vsel %vm952, %v1298, 0
        %1317 = vmatpush.bf16.msra.mxu0 0
        %1318 = vmatpush.bf16.msra.mxu0 0
        %1319 = vmatpush.bf16.msra.mxu0 0
        %1320 = vmatpush.bf16.msra.mxu0 0
        %1321 = vmatpush.bf16.msra.mxu0 0
        %1322 = vmatpush.bf16.msra.mxu0 0
        %1323 = vmatpush.bf16.msra.mxu0 %v1308
        %1324 = vmatpush.bf16.msra.mxu0 %v1307
        %1325 = vmatmul.bf16.gmra.mxu0 %v1312
        %v1326 = vpop.f32.mrf.mxu0
        %v1327 = vadd.f32 0.0, %v1326
        %v1328 = vpop.f32.mrf.mxu0
        %v1329 = vadd.f32 0.0, %v1328
        %1330 = vmatmul.bf16.gmra.mxu0 %v1315
        %v1331 = vpop.f32.mrf.mxu0
        %v1332 = vadd.f32 0.0, %v1331
        %v1333 = vpop.f32.mrf.mxu0
        %v1334 = vadd.f32 0.0, %v1333
        %1335 = vdwg.mxu0
        %v1336 = vadd.f32 %v1147, %v1327
        %v1337 = vadd.f32 %v1148, %v1329
        %v1338 = vadd.f32 %v1149, %v1332
        %v1339 = vadd.f32 %v1150, %v1334
        %1340 = vrot.lane.b32.xlu0 %v946, 64
        %v1341 = vpop.permute.xlu0 %1340
        %1342 = vrot.lane.b32.xlu0 %v951, 64
        %v1343 = vpop.permute.xlu0 %1342
        %v1345 = vsel %vm952, %v1341, 0
        %v1348 = vsel %vm952, %v1343, 0
        %1350 = vmatpush.bf16.xpose.msra.mxu0 0
        %1351 = vmatpush.bf16.xpose.msra.mxu0 0
        %1352 = vmatpush.bf16.xpose.msra.mxu0 0
        %1353 = vmatpush.bf16.xpose.msra.mxu0 0
        %1354 = vmatpush.bf16.xpose.msra.mxu0 0
        %1355 = vmatpush.bf16.xpose.msra.mxu0 0
        %1356 = vmatpush.bf16.xpose.msra.mxu0 0
        %1357 = vmatpush.bf16.xpose.msra.mxu0 %v1348
        %1358 = vmatmul.bf16.gmra.mxu0 %v1345
        %v1359 = vpop.f32.mrf.mxu0
        %v1360 = vadd.f32 0.0, %v1359
        %v1361 = vpop.f32.mrf.mxu0
        %v1362 = vadd.f32 0.0, %v1361
        %1363 = vdwg.mxu0
        %1364 = vrot.lane.b32.xlu0 %v977, 64
        %v1365 = vpop.permute.xlu0 %1364
        %1366 = vrot.lane.b32.xlu0 %v982, 64
        %v1367 = vpop.permute.xlu0 %1366
        %v1369 = vsel %vm952, %v1365, 0
        %v1372 = vsel %vm952, %v1367, 0
        %1374 = vmatpush.bf16.xpose.msra.mxu0 0
        %1375 = vmatpush.bf16.xpose.msra.mxu0 0
        %1376 = vmatpush.bf16.xpose.msra.mxu0 0
        %1377 = vmatpush.bf16.xpose.msra.mxu0 0
        %1378 = vmatpush.bf16.xpose.msra.mxu0 0
        %1379 = vmatpush.bf16.xpose.msra.mxu0 0
        %1380 = vmatpush.bf16.xpose.msra.mxu0 0
        %1381 = vmatpush.bf16.xpose.msra.mxu0 %v1372
        %1382 = vmatmul.bf16.gmra.mxu0 %v1369
        %v1383 = vpop.f32.mrf.mxu0
        %v1384 = vadd.f32 0.0, %v1383
        %v1385 = vpop.f32.mrf.mxu0
        %v1386 = vadd.f32 0.0, %v1385
        %1387 = vdwg.mxu0
        %v1388 = vsel %vm1003, %v1360, -inf
        %1389 = vmax.xlane.f32.xlu0 %v1388
        %v1390 = vpop.xlane.xlu0 %1389
        %v1391 = vsel %vm1003, %v1362, -inf
        %1392 = vmax.xlane.f32.xlu0 %v1391
        %v1393 = vpop.xlane.xlu0 %1392
        %v1394 = vsel %vm1003, %v1384, -inf
        %1395 = vmax.xlane.f32.xlu0 %v1394
        %v1396 = vpop.xlane.xlu0 %1395
        %v1397 = vsel %vm1003, %v1386, -inf
        %1398 = vmax.xlane.f32.xlu0 %v1397
        %v1399 = vpop.xlane.xlu0 %1398
        %v1400 = vsub.f32 %v1360, %v1390
        %v1401 = vsub.f32 %v1362, %v1393
        %v1402 = vsub.f32 %v1384, %v1396
        %v1403 = vsub.f32 %v1386, %v1399
        %v1404 = vmul.f32 %v1400, 1.442695
        %v1405 = vpow.pop %v1404
        %v1406 = vmul.f32 %v1401, 1.442695
        %v1407 = vpow.pop %v1406
        %v1408 = vmul.f32 %v1402, 1.442695
        %v1409 = vpow.pop %v1408
        %v1410 = vmul.f32 %v1403, 1.442695
        %v1411 = vpow.pop %v1410
        %v1412 = vsel %vm1003, %v1405, 0.0
        %1413 = vadd.xlane.f32.xlu0 %v1412
        %v1414 = vpop.xlane.xlu0 %1413
        %v1415 = vsel %vm1003, %v1407, 0.0
        %1416 = vadd.xlane.f32.xlu0 %v1415
        %v1417 = vpop.xlane.xlu0 %1416
        %v1418 = vsel %vm1003, %v1409, 0.0
        %1419 = vadd.xlane.f32.xlu0 %v1418
        %v1420 = vpop.xlane.xlu0 %1419
        %v1421 = vsel %vm1003, %v1411, 0.0
        %1422 = vadd.xlane.f32.xlu0 %v1421
        %v1423 = vpop.xlane.xlu0 %1422
        %v1424 = vrcp.pop %v1414
        %v1425 = vrcp.pop %v1417
        %v1426 = vrcp.pop %v1420
        %v1427 = vrcp.pop %v1423
        %v1428 = vmul.f32 %v1405, %v1424
        %v1429 = vmul.f32 %v1407, %v1425
        %v1430 = vmul.f32 %v1409, %v1426
        %v1431 = vmul.f32 %v1411, %v1427
        %v1432 = vpack.c.bf16 %v1428, %v1428
        %v1433 = vpack.c.bf16 %v1429, %v1429
        %v1434 = vpack.c.bf16 %v1430, %v1430
        %v1435 = vpack.c.bf16 %v1431, %v1431
        %v1438 = vunpack.c.l.b16 %v1432
        %v1439 = vunpack.c.l.b16 %v1433
        %v1440 = vpack.c.b16 %v1439, %v1438
        %1441 = vrot.lane.b32.xlu0 %v1061, 64
        %v1442 = vpop.permute.xlu0 %1441
        %v1445 = vsel %vm1003, %v1440, 0
        %1447 = vmatpush.bf16.msra.mxu0 0
        %1448 = vmatpush.bf16.msra.mxu0 0
        %1449 = vmatpush.bf16.msra.mxu0 0
        %1450 = vmatpush.bf16.msra.mxu0 0
        %1451 = vmatpush.bf16.msra.mxu0 0
        %1452 = vmatpush.bf16.msra.mxu0 0
        %1453 = vmatpush.bf16.msra.mxu0 0
        %1454 = vmatpush.bf16.msra.mxu0 %v1442
        %1455 = vmatmul.bf16.gmra.mxu0 %v1445
        %v1456 = vpop.f32.mrf.mxu0
        %v1457 = vadd.f32 0.0, %v1456
        %v1458 = vpop.f32.mrf.mxu0
        %v1459 = vadd.f32 0.0, %v1458
        %1460 = vdwg.mxu0
        %v1463 = vunpack.c.l.b16 %v1434
        %v1464 = vunpack.c.l.b16 %v1435
        %v1465 = vpack.c.b16 %v1464, %v1463
        %1466 = vrot.lane.b32.xlu0 %v1089, 64
        %v1467 = vpop.permute.xlu0 %1466
        %v1470 = vsel %vm1003, %v1465, 0
        %1472 = vmatpush.bf16.msra.mxu0 0
        %1473 = vmatpush.bf16.msra.mxu0 0
        %1474 = vmatpush.bf16.msra.mxu0 0
        %1475 = vmatpush.bf16.msra.mxu0 0
        %1476 = vmatpush.bf16.msra.mxu0 0
        %1477 = vmatpush.bf16.msra.mxu0 0
        %1478 = vmatpush.bf16.msra.mxu0 0
        %1479 = vmatpush.bf16.msra.mxu0 %v1467
        %1480 = vmatmul.bf16.gmra.mxu0 %v1470
        %v1481 = vpop.f32.mrf.mxu0
        %v1482 = vadd.f32 0.0, %v1481
        %v1483 = vpop.f32.mrf.mxu0
        %v1484 = vadd.f32 0.0, %v1483
        %1485 = vdwg.mxu0
        %v1486 = vpack.c.bf16 %v1459, %v1457
        %v1487 = vpack.c.bf16 %v1484, %v1482
        %v1492 = vunpack.c.l.b16 %v929
        %v1493 = vunpack.c.l.b16 %v930
        %v1494 = vunpack.c.l.b16 %v931
        %v1495 = vunpack.c.l.b16 %v932
        %v1496 = vpack.c.b16 %v1493, %v1492
        %v1497 = vpack.c.b16 %v1495, %v1494
        %v1501 = vsel %vm952, %v1486, 0
        %v1504 = vsel %vm952, %v1487, 0
        %1506 = vmatpush.bf16.msra.mxu0 0
        %1507 = vmatpush.bf16.msra.mxu0 0
        %1508 = vmatpush.bf16.msra.mxu0 0
        %1509 = vmatpush.bf16.msra.mxu0 0
        %1510 = vmatpush.bf16.msra.mxu0 0
        %1511 = vmatpush.bf16.msra.mxu0 0
        %1512 = vmatpush.bf16.msra.mxu0 %v1497
        %1513 = vmatpush.bf16.msra.mxu0 %v1496
        %1514 = vmatmul.bf16.gmra.mxu0 %v1501
        %v1515 = vpop.f32.mrf.mxu0
        %v1516 = vadd.f32 0.0, %v1515
        %v1517 = vpop.f32.mrf.mxu0
        %v1518 = vadd.f32 0.0, %v1517
        %1519 = vmatmul.bf16.gmra.mxu0 %v1504
        %v1520 = vpop.f32.mrf.mxu0
        %v1521 = vadd.f32 0.0, %v1520
        %v1522 = vpop.f32.mrf.mxu0
        %v1523 = vadd.f32 0.0, %v1522
        %1524 = vdwg.mxu0
        %v1525 = vadd.f32 %v1336, %v1516
        %v1526 = vadd.f32 %v1337, %v1518
        %v1527 = vadd.f32 %v1338, %v1521
        %v1528 = vadd.f32 %v1339, %v1523
        %1529 = vrot.lane.b32.xlu0 %v946, 32
        %v1530 = vpop.permute.xlu0 %1529
        %1531 = vrot.lane.b32.xlu0 %v951, 32
        %v1532 = vpop.permute.xlu0 %1531
        %v1534 = vsel %vm952, %v1530, 0
        %v1537 = vsel %vm952, %v1532, 0
        %1539 = vmatpush.bf16.xpose.msra.mxu0 0
        %1540 = vmatpush.bf16.xpose.msra.mxu0 0
        %1541 = vmatpush.bf16.xpose.msra.mxu0 0
        %1542 = vmatpush.bf16.xpose.msra.mxu0 0
        %1543 = vmatpush.bf16.xpose.msra.mxu0 0
        %1544 = vmatpush.bf16.xpose.msra.mxu0 0
        %1545 = vmatpush.bf16.xpose.msra.mxu0 0
        %1546 = vmatpush.bf16.xpose.msra.mxu0 %v1537
        %1547 = vmatmul.bf16.gmra.mxu0 %v1534
        %v1548 = vpop.f32.mrf.mxu0
        %v1549 = vadd.f32 0.0, %v1548
        %v1550 = vpop.f32.mrf.mxu0
        %v1551 = vadd.f32 0.0, %v1550
        %1552 = vdwg.mxu0
        %1553 = vrot.lane.b32.xlu0 %v977, 32
        %v1554 = vpop.permute.xlu0 %1553
        %1555 = vrot.lane.b32.xlu0 %v982, 32
        %v1556 = vpop.permute.xlu0 %1555
        %v1558 = vsel %vm952, %v1554, 0
        %v1561 = vsel %vm952, %v1556, 0
        %1563 = vmatpush.bf16.xpose.msra.mxu0 0
        %1564 = vmatpush.bf16.xpose.msra.mxu0 0
        %1565 = vmatpush.bf16.xpose.msra.mxu0 0
        %1566 = vmatpush.bf16.xpose.msra.mxu0 0
        %1567 = vmatpush.bf16.xpose.msra.mxu0 0
        %1568 = vmatpush.bf16.xpose.msra.mxu0 0
        %1569 = vmatpush.bf16.xpose.msra.mxu0 0
        %1570 = vmatpush.bf16.xpose.msra.mxu0 %v1561
        %1571 = vmatmul.bf16.gmra.mxu0 %v1558
        %v1572 = vpop.f32.mrf.mxu0
        %v1573 = vadd.f32 0.0, %v1572
        %v1574 = vpop.f32.mrf.mxu0
        %v1575 = vadd.f32 0.0, %v1574
        %1576 = vdwg.mxu0
        %v1577 = vsel %vm1003, %v1549, -inf
        %1578 = vmax.xlane.f32.xlu0 %v1577
        %v1579 = vpop.xlane.xlu0 %1578
        %v1580 = vsel %vm1003, %v1551, -inf
        %1581 = vmax.xlane.f32.xlu0 %v1580
        %v1582 = vpop.xlane.xlu0 %1581
        %v1583 = vsel %vm1003, %v1573, -inf
        %1584 = vmax.xlane.f32.xlu0 %v1583
        %v1585 = vpop.xlane.xlu0 %1584
        %v1586 = vsel %vm1003, %v1575, -inf
        %1587 = vmax.xlane.f32.xlu0 %v1586
        %v1588 = vpop.xlane.xlu0 %1587
        %v1589 = vsub.f32 %v1549, %v1579
        %v1590 = vsub.f32 %v1551, %v1582
        %v1591 = vsub.f32 %v1573, %v1585
        %v1592 = vsub.f32 %v1575, %v1588
        %v1593 = vmul.f32 %v1589, 1.442695
        %v1594 = vpow.pop %v1593
        %v1595 = vmul.f32 %v1590, 1.442695
        %v1596 = vpow.pop %v1595
        %v1597 = vmul.f32 %v1591, 1.442695
        %v1598 = vpow.pop %v1597
        %v1599 = vmul.f32 %v1592, 1.442695
        %v1600 = vpow.pop %v1599
        %v1601 = vsel %vm1003, %v1594, 0.0
        %1602 = vadd.xlane.f32.xlu0 %v1601
        %v1603 = vpop.xlane.xlu0 %1602
        %v1604 = vsel %vm1003, %v1596, 0.0
        %1605 = vadd.xlane.f32.xlu0 %v1604
        %v1606 = vpop.xlane.xlu0 %1605
        %v1607 = vsel %vm1003, %v1598, 0.0
        %1608 = vadd.xlane.f32.xlu0 %v1607
        %v1609 = vpop.xlane.xlu0 %1608
        %v1610 = vsel %vm1003, %v1600, 0.0
        %1611 = vadd.xlane.f32.xlu0 %v1610
        %v1612 = vpop.xlane.xlu0 %1611
        %v1613 = vrcp.pop %v1603
        %v1614 = vrcp.pop %v1606
        %v1615 = vrcp.pop %v1609
        %v1616 = vrcp.pop %v1612
        %v1617 = vmul.f32 %v1594, %v1613
        %v1618 = vmul.f32 %v1596, %v1614
        %v1619 = vmul.f32 %v1598, %v1615
        %v1620 = vmul.f32 %v1600, %v1616
        %v1621 = vpack.c.bf16 %v1617, %v1617
        %v1622 = vpack.c.bf16 %v1618, %v1618
        %v1623 = vpack.c.bf16 %v1619, %v1619
        %v1624 = vpack.c.bf16 %v1620, %v1620
        %v1627 = vunpack.c.l.b16 %v1621
        %v1628 = vunpack.c.l.b16 %v1622
        %v1629 = vpack.c.b16 %v1628, %v1627
        %1630 = vrot.lane.b32.xlu0 %v1061, 32
        %v1631 = vpop.permute.xlu0 %1630
        %v1634 = vsel %vm1003, %v1629, 0
        %1636 = vmatpush.bf16.msra.mxu0 0
        %1637 = vmatpush.bf16.msra.mxu0 0
        %1638 = vmatpush.bf16.msra.mxu0 0
        %1639 = vmatpush.bf16.msra.mxu0 0
        %1640 = vmatpush.bf16.msra.mxu0 0
        %1641 = vmatpush.bf16.msra.mxu0 0
        %1642 = vmatpush.bf16.msra.mxu0 0
        %1643 = vmatpush.bf16.msra.mxu0 %v1631
        %1644 = vmatmul.bf16.gmra.mxu0 %v1634
        %v1645 = vpop.f32.mrf.mxu0
        %v1646 = vadd.f32 0.0, %v1645
        %v1647 = vpop.f32.mrf.mxu0
        %v1648 = vadd.f32 0.0, %v1647
        %1649 = vdwg.mxu0
        %v1652 = vunpack.c.l.b16 %v1623
        %v1653 = vunpack.c.l.b16 %v1624
        %v1654 = vpack.c.b16 %v1653, %v1652
        %1655 = vrot.lane.b32.xlu0 %v1089, 32
        %v1656 = vpop.permute.xlu0 %1655
        %v1659 = vsel %vm1003, %v1654, 0
        %1661 = vmatpush.bf16.msra.mxu0 0
        %1662 = vmatpush.bf16.msra.mxu0 0
        %1663 = vmatpush.bf16.msra.mxu0 0
        %1664 = vmatpush.bf16.msra.mxu0 0
        %1665 = vmatpush.bf16.msra.mxu0 0
        %1666 = vmatpush.bf16.msra.mxu0 0
        %1667 = vmatpush.bf16.msra.mxu0 0
        %1668 = vmatpush.bf16.msra.mxu0 %v1656
        %1669 = vmatmul.bf16.gmra.mxu0 %v1659
        %v1670 = vpop.f32.mrf.mxu0
        %v1671 = vadd.f32 0.0, %v1670
        %v1672 = vpop.f32.mrf.mxu0
        %v1673 = vadd.f32 0.0, %v1672
        %1674 = vdwg.mxu0
        %v1675 = vpack.c.bf16 %v1648, %v1646
        %v1676 = vpack.c.bf16 %v1673, %v1671
        %v1681 = vunpack.c.l.b16 %v933
        %v1682 = vunpack.c.l.b16 %v934
        %v1683 = vunpack.c.l.b16 %v935
        %v1684 = vunpack.c.l.b16 %v936
        %v1685 = vpack.c.b16 %v1682, %v1681
        %v1686 = vpack.c.b16 %v1684, %v1683
        %v1690 = vsel %vm952, %v1675, 0
        %v1693 = vsel %vm952, %v1676, 0
        %1695 = vmatpush.bf16.msra.mxu0 0
        %1696 = vmatpush.bf16.msra.mxu0 0
        %1697 = vmatpush.bf16.msra.mxu0 0
        %1698 = vmatpush.bf16.msra.mxu0 0
        %1699 = vmatpush.bf16.msra.mxu0 0
        %1700 = vmatpush.bf16.msra.mxu0 0
        %1701 = vmatpush.bf16.msra.mxu0 %v1686
        %1702 = vmatpush.bf16.msra.mxu0 %v1685
        %1703 = vmatmul.bf16.gmra.mxu0 %v1690
        %v1704 = vpop.f32.mrf.mxu0
        %v1705 = vadd.f32 0.0, %v1704
        %v1706 = vpop.f32.mrf.mxu0
        %v1707 = vadd.f32 0.0, %v1706
        %1708 = vmatmul.bf16.gmra.mxu0 %v1693
        %v1709 = vpop.f32.mrf.mxu0
        %v1710 = vadd.f32 0.0, %v1709
        %v1711 = vpop.f32.mrf.mxu0
        %v1712 = vadd.f32 0.0, %v1711
        %1713 = vdwg.mxu0
        %v1714 = vadd.f32 %v1525, %v1705
        %v1715 = vadd.f32 %v1526, %v1707
        %v1716 = vadd.f32 %v1527, %v1710
        %v1717 = vadd.f32 %v1528, %v1712
        %v1718 = vadd.f32 %v575, %v1714
        %v1719 = vadd.f32 %v576, %v1715
        %v1720 = vadd.f32 %v577, %v1716
        %v1721 = vadd.f32 %v578, %v1717
        %v1722 = vld [vmem:[%s7] sm:$0x1]
        %v1723 = vld [vmem:[%s8] sm:$0x1]
        %1724 = vadd.xlane.f32.xlu0 %v1718
        %v1725 = vpop.xlane.xlu0 %1724
        %1726 = vadd.xlane.f32.xlu0 %v1719
        %v1727 = vpop.xlane.xlu0 %1726
        %1728 = vadd.xlane.f32.xlu0 %v1720
        %v1729 = vpop.xlane.xlu0 %1728
        %1730 = vadd.xlane.f32.xlu0 %v1721
        %v1731 = vpop.xlane.xlu0 %1730
        %v1732 = vmul.f32 %v1725, %v595
        %v1733 = vmul.f32 %v1727, %v595
        %v1734 = vmul.f32 %v1729, %v595
        %v1735 = vmul.f32 %v1731, %v595
        %v1736 = vsub.f32 %v1718, %v1732
        %v1737 = vsub.f32 %v1719, %v1733
        %v1738 = vsub.f32 %v1720, %v1734
        %v1739 = vsub.f32 %v1721, %v1735
        %v1740 = vmul.f32 %v1736, %v1736
        %v1741 = vmul.f32 %v1737, %v1737
        %v1742 = vmul.f32 %v1738, %v1738
        %v1743 = vmul.f32 %v1739, %v1739
        %1744 = vadd.xlane.f32.xlu0 %v1740
        %v1745 = vpop.xlane.xlu0 %1744
        %1746 = vadd.xlane.f32.xlu0 %v1741
        %v1747 = vpop.xlane.xlu0 %1746
        %1748 = vadd.xlane.f32.xlu0 %v1742
        %v1749 = vpop.xlane.xlu0 %1748
        %1750 = vadd.xlane.f32.xlu0 %v1743
        %v1751 = vpop.xlane.xlu0 %1750
        %v1752 = vmul.f32 %v1745, %v595
        %v1753 = vmul.f32 %v1747, %v595
        %v1754 = vmul.f32 %v1749, %v595
        %v1755 = vmul.f32 %v1751, %v595
        %v1756 = vadd.f32 %v1752, 1e-05
        %v1757 = vadd.f32 %v1753, 1e-05
        %v1758 = vadd.f32 %v1754, 1e-05
        %v1759 = vadd.f32 %v1755, 1e-05
        %v1760 = vrsqrt.pop %v1756
        %v1761 = vmul.f32 %v1760, %v1756
        %v1762 = vmul.f32 %v1761, %v1760
        %v1763 = vmul.f32 0.5, %v1762
        %v1764 = vsub.f32 1.5, %v1763
        %v1765 = vmul.f32 %v1760, %v1764
        %vm1766 = vweird.f32 %v1756
        %vm1767 = vweird.f32 %v1760
        %vm1768 = vmor %vm1766, %vm1767
        %v1769 = vsel %vm1768, %v1760, %v1765
        %v1770 = vrsqrt.pop %v1757
        %v1771 = vmul.f32 %v1770, %v1757
        %v1772 = vmul.f32 %v1771, %v1770
        %v1773 = vmul.f32 0.5, %v1772
        %v1774 = vsub.f32 1.5, %v1773
        %v1775 = vmul.f32 %v1770, %v1774
        %vm1776 = vweird.f32 %v1757
        %vm1777 = vweird.f32 %v1770
        %vm1778 = vmor %vm1776, %vm1777
        %v1779 = vsel %vm1778, %v1770, %v1775
        %v1780 = vrsqrt.pop %v1758
        %v1781 = vmul.f32 %v1780, %v1758
        %v1782 = vmul.f32 %v1781, %v1780
        %v1783 = vmul.f32 0.5, %v1782
        %v1784 = vsub.f32 1.5, %v1783
        %v1785 = vmul.f32 %v1780, %v1784
        %vm1786 = vweird.f32 %v1758
        %vm1787 = vweird.f32 %v1780
        %vm1788 = vmor %vm1786, %vm1787
        %v1789 = vsel %vm1788, %v1780, %v1785
        %v1790 = vrsqrt.pop %v1759
        %v1791 = vmul.f32 %v1790, %v1759
        %v1792 = vmul.f32 %v1791, %v1790
        %v1793 = vmul.f32 0.5, %v1792
        %v1794 = vsub.f32 1.5, %v1793
        %v1795 = vmul.f32 %v1790, %v1794
        %vm1796 = vweird.f32 %v1759
        %vm1797 = vweird.f32 %v1790
        %vm1798 = vmor %vm1796, %vm1797
        %v1799 = vsel %vm1798, %v1790, %v1795
        %v1800 = vmul.f32 %v1736, %v1769
        %v1801 = vmul.f32 %v1737, %v1779
        %v1802 = vmul.f32 %v1738, %v1789
        %v1803 = vmul.f32 %v1739, %v1799
        %v1805 = vperm.slane %v1722, 0
        %v1807 = vmul.f32 %v1800, %v1805
        %v1808 = vmul.f32 %v1801, %v1805
        %v1809 = vmul.f32 %v1802, %v1805
        %v1810 = vmul.f32 %v1803, %v1805
        %v1812 = vperm.slane %v1723, 0
        %v1814 = vadd.f32 %v1807, %v1812
        %v1815 = vadd.f32 %v1808, %v1812
        %v1816 = vadd.f32 %v1809, %v1812
        %v1817 = vadd.f32 %v1810, %v1812
        %v1818 = vpack.c.bf16 %v1815, %v1814
        %v1819 = vpack.c.bf16 %v1817, %v1816
        %v1820 = vld [vmem:[#allocation13] sm:$0xff]
        %v1821 = vld [vmem:[#allocation13 + $0x8] sm:$0xff]
        %v1822 = vld [vmem:[#allocation13 + $0x10] sm:$0xff]
        %v1823 = vld [vmem:[#allocation13 + $0x18] sm:$0xff]
        %v1824 = vld [vmem:[#allocation13 + $0x20] sm:$0xff]
        %v1825 = vld [vmem:[#allocation13 + $0x28] sm:$0xff]
        %v1826 = vld [vmem:[#allocation13 + $0x30] sm:$0xff]
        %v1827 = vld [vmem:[#allocation13 + $0x38] sm:$0xff]
        %v1828 = vld [vmem:[#allocation13 + $0x40] sm:$0xff]
        %v1829 = vld [vmem:[#allocation13 + $0x48] sm:$0xff]
        %v1830 = vld [vmem:[#allocation13 + $0x50] sm:$0xff]
        %v1831 = vld [vmem:[#allocation13 + $0x58] sm:$0xff]
        %v1832 = vld [vmem:[#allocation13 + $0x60] sm:$0xff]
        %v1833 = vld [vmem:[#allocation13 + $0x68] sm:$0xff]
        %v1834 = vld [vmem:[#allocation13 + $0x70] sm:$0xff]
        %v1835 = vld [vmem:[#allocation13 + $0x78] sm:$0xff]
        %v1836 = vld [vmem:[%s10] sm:$0x3]
        %v1838 = vperm.slane %v1836, 0
        %v1839 = vperm.slane %v1836, 1
        %v1858 = vunpack.c.l.b16 %v1820
        %v1859 = vunpack.c.h.b16 %v1820
        %v1860 = vunpack.c.l.b16 %v1821
        %v1861 = vunpack.c.h.b16 %v1821
        %v1862 = vunpack.c.l.b16 %v1822
        %v1863 = vunpack.c.h.b16 %v1822
        %v1864 = vunpack.c.l.b16 %v1823
        %v1865 = vunpack.c.h.b16 %v1823
        %v1866 = vunpack.c.l.b16 %v1824
        %v1867 = vunpack.c.h.b16 %v1824
        %v1868 = vunpack.c.l.b16 %v1825
        %v1869 = vunpack.c.h.b16 %v1825
        %v1870 = vunpack.c.l.b16 %v1826
        %v1871 = vunpack.c.h.b16 %v1826
        %v1872 = vunpack.c.l.b16 %v1827
        %v1873 = vunpack.c.h.b16 %v1827
        %v1874 = vunpack.c.l.b16 %v1828
        %v1875 = vunpack.c.h.b16 %v1828
        %v1876 = vunpack.c.l.b16 %v1829
        %v1877 = vunpack.c.h.b16 %v1829
        %v1878 = vunpack.c.l.b16 %v1830
        %v1879 = vunpack.c.h.b16 %v1830
        %v1880 = vunpack.c.l.b16 %v1831
        %v1881 = vunpack.c.h.b16 %v1831
        %v1882 = vunpack.c.l.b16 %v1832
        %v1883 = vunpack.c.h.b16 %v1832
        %v1884 = vunpack.c.l.b16 %v1833
        %v1885 = vunpack.c.h.b16 %v1833
        %v1886 = vunpack.c.l.b16 %v1834
        %v1887 = vunpack.c.h.b16 %v1834
        %v1888 = vunpack.c.l.b16 %v1835
        %v1889 = vunpack.c.h.b16 %v1835
        %v1890 = vpack.c.b16 %v1860, %v1858
        %v1891 = vpack.c.b16 %v1861, %v1859
        %v1892 = vpack.c.b16 %v1864, %v1862
        %v1893 = vpack.c.b16 %v1865, %v1863
        %v1894 = vpack.c.b16 %v1868, %v1866
        %v1895 = vpack.c.b16 %v1869, %v1867
        %v1896 = vpack.c.b16 %v1872, %v1870
        %v1897 = vpack.c.b16 %v1873, %v1871
        %v1898 = vpack.c.b16 %v1876, %v1874
        %v1899 = vpack.c.b16 %v1877, %v1875
        %v1900 = vpack.c.b16 %v1880, %v1878
        %v1901 = vpack.c.b16 %v1881, %v1879
        %v1902 = vpack.c.b16 %v1884, %v1882
        %v1903 = vpack.c.b16 %v1885, %v1883
        %v1904 = vpack.c.b16 %v1888, %v1886
        %v1905 = vpack.c.b16 %v1889, %v1887
        %1922 = vmatpush.bf16.msra.mxu0 %v1904
        %1923 = vmatpush.bf16.msra.mxu0 %v1902
        %1924 = vmatpush.bf16.msra.mxu0 %v1900
        %1925 = vmatpush.bf16.msra.mxu0 %v1898
        %1926 = vmatpush.bf16.msra.mxu0 %v1896
        %1927 = vmatpush.bf16.msra.mxu0 %v1894
        %1928 = vmatpush.bf16.msra.mxu0 %v1892
        %1929 = vmatpush.bf16.msra.mxu0 %v1890
        %1930 = vmatmul.bf16.gmra.mxu0 %v1818
        %v1931 = vpop.f32.mrf.mxu0
        %v1932 = vadd.f32 %v1838, %v1931
        %v1933 = vpop.f32.mrf.mxu0
        %v1934 = vadd.f32 %v1838, %v1933
        %1935 = vmatmul.bf16.gmra.mxu0 %v1819
        %v1936 = vpop.f32.mrf.mxu0
        %v1937 = vadd.f32 %v1838, %v1936
        %v1938 = vpop.f32.mrf.mxu0
        %v1939 = vadd.f32 %v1838, %v1938
        %1940 = vdwg.mxu0
        %1941 = vmatpush.bf16.msra.mxu0 %v1905
        %1942 = vmatpush.bf16.msra.mxu0 %v1903
        %1943 = vmatpush.bf16.msra.mxu0 %v1901
        %1944 = vmatpush.bf16.msra.mxu0 %v1899
        %1945 = vmatpush.bf16.msra.mxu0 %v1897
        %1946 = vmatpush.bf16.msra.mxu0 %v1895
        %1947 = vmatpush.bf16.msra.mxu0 %v1893
        %1948 = vmatpush.bf16.msra.mxu0 %v1891
        %1949 = vmatmul.bf16.gmra.mxu0 %v1818
        %v1950 = vpop.f32.mrf.mxu0
        %v1951 = vadd.f32 %v1839, %v1950
        %v1952 = vpop.f32.mrf.mxu0
        %v1953 = vadd.f32 %v1839, %v1952
        %1954 = vmatmul.bf16.gmra.mxu0 %v1819
        %v1955 = vpop.f32.mrf.mxu0
        %v1956 = vadd.f32 %v1839, %v1955
        %v1957 = vpop.f32.mrf.mxu0
        %v1958 = vadd.f32 %v1839, %v1957
        %1959 = vdwg.mxu0
        %v1960 = vmul.f32 %v1932, 0.5
        %v1961 = vmul.f32 %v1951, 0.5
        %v1962 = vmul.f32 %v1934, 0.5
        %v1963 = vmul.f32 %v1953, 0.5
        %v1964 = vmul.f32 %v1937, 0.5
        %v1965 = vmul.f32 %v1956, 0.5
        %v1966 = vmul.f32 %v1939, 0.5
        %v1967 = vmul.f32 %v1958, 0.5
        %v1968 = vmul.f32 %v1932, 0.70710677
        %v1969 = vmul.f32 %v1951, 0.70710677
        %v1970 = vmul.f32 %v1934, 0.70710677
        %v1971 = vmul.f32 %v1953, 0.70710677
        %v1972 = vmul.f32 %v1937, 0.70710677
        %v1973 = vmul.f32 %v1956, 0.70710677
        %v1974 = vmul.f32 %v1939, 0.70710677
        %v1975 = vmul.f32 %v1958, 0.70710677
        %v1976 = vmul.f32 %v1968, %v1968
        %v1977 = vmin.f32 16.0, %v1976
        %v1978 = vmul.f32 %v1977, 2.1237322e-06
        %v1979 = vadd.f32 %v1978, 0.00028619796
        %v1980 = vmul.f32 %v1977, %v1979
        %v1981 = vadd.f32 %v1980, 0.0036580483
        %v1982 = vmul.f32 %v1977, %v1981
        %v1983 = vadd.f32 %v1982, 0.05243302
        %v1984 = vmul.f32 %v1977, %v1983
        %v1985 = vadd.f32 %v1984, 0.18741608
        %v1986 = vmul.f32 %v1977, %v1985
        %v1987 = vadd.f32 %v1986, 1.1283791
        %v1988 = vmul.f32 %v1968, %v1987
        %v1989 = vmul.f32 %v1977, 3.8918573e-05
        %v1990 = vadd.f32 %v1989, 0.001143296
        %v1991 = vmul.f32 %v1977, %v1990
        %v1992 = vadd.f32 %v1991, 0.014752088
        %v1993 = vmul.f32 %v1977, %v1992
        %v1994 = vadd.f32 %v1993, 0.112945676
        %v1995 = vmul.f32 %v1977, %v1994
        %v1996 = vadd.f32 %v1995, 0.4994258
        %v1997 = vmul.f32 %v1977, %v1996
        %v1998 = vadd.f32 %v1997, 1.0
        %v1999 = vrcp.pop %v1998
        %v2000 = vmul.f32 %v1998, %v1999
        %v2001 = vsub.f32 1.0, %v2000
        %v2002 = vmul.f32 %v1999, %v2001
        %v2003 = vadd.f32 %v1999, %v2002
        %vm2004 = vweird.f32 %v1998
        %vm2005 = vweird.f32 %v1999
        %vm2006 = vmor %vm2004, %vm2005
        %v2007 = vsel %vm2006, %v1999, %v2003
        %v2008 = vand.u32 2147483647, %v1998
        %vm2009 = vcmp.eq.f32.partialorder %v2008, 8.507059e+37
        %v2010 = vand.u32 %v1998, 2147483648
        %v2011 = vor.u32 1.1754944e-38, %v2010
        %v2012 = vsel %vm2009, %v2011, %v2007
        %v2013 = vmul.f32 %v1988, %v2012
        %v2014 = vmin.f32 %v2013, 1.0
        %v2015 = vmax.f32 %v2014, -1.0
        %v2016 = vmul.f32 %v1969, %v1969
        %v2017 = vmin.f32 16.0, %v2016
        %v2018 = vmul.f32 %v2017, 2.1237322e-06
        %v2019 = vadd.f32 %v2018, 0.00028619796
        %v2020 = vmul.f32 %v2017, %v2019
        %v2021 = vadd.f32 %v2020, 0.0036580483
        %v2022 = vmul.f32 %v2017, %v2021
        %v2023 = vadd.f32 %v2022, 0.05243302
        %v2024 = vmul.f32 %v2017, %v2023
        %v2025 = vadd.f32 %v2024, 0.18741608
        %v2026 = vmul.f32 %v2017, %v2025
        %v2027 = vadd.f32 %v2026, 1.1283791
        %v2028 = vmul.f32 %v1969, %v2027
        %v2029 = vmul.f32 %v2017, 3.8918573e-05
        %v2030 = vadd.f32 %v2029, 0.001143296
        %v2031 = vmul.f32 %v2017, %v2030
        %v2032 = vadd.f32 %v2031, 0.014752088
        %v2033 = vmul.f32 %v2017, %v2032
        %v2034 = vadd.f32 %v2033, 0.112945676
        %v2035 = vmul.f32 %v2017, %v2034
        %v2036 = vadd.f32 %v2035, 0.4994258
        %v2037 = vmul.f32 %v2017, %v2036
        %v2038 = vadd.f32 %v2037, 1.0
        %v2039 = vrcp.pop %v2038
        %v2040 = vmul.f32 %v2038, %v2039
        %v2041 = vsub.f32 1.0, %v2040
        %v2042 = vmul.f32 %v2039, %v2041
        %v2043 = vadd.f32 %v2039, %v2042
        %vm2044 = vweird.f32 %v2038
        %vm2045 = vweird.f32 %v2039
        %vm2046 = vmor %vm2044, %vm2045
        %v2047 = vsel %vm2046, %v2039, %v2043
        %v2048 = vand.u32 2147483647, %v2038
        %vm2049 = vcmp.eq.f32.partialorder %v2048, 8.507059e+37
        %v2050 = vand.u32 %v2038, 2147483648
        %v2051 = vor.u32 1.1754944e-38, %v2050
        %v2052 = vsel %vm2049, %v2051, %v2047
        %v2053 = vmul.f32 %v2028, %v2052
        %v2054 = vmin.f32 %v2053, 1.0
        %v2055 = vmax.f32 %v2054, -1.0
        %v2056 = vmul.f32 %v1970, %v1970
        %v2057 = vmin.f32 16.0, %v2056
        %v2058 = vmul.f32 %v2057, 2.1237322e-06
        %v2059 = vadd.f32 %v2058, 0.00028619796
        %v2060 = vmul.f32 %v2057, %v2059
        %v2061 = vadd.f32 %v2060, 0.0036580483
        %v2062 = vmul.f32 %v2057, %v2061
        %v2063 = vadd.f32 %v2062, 0.05243302
        %v2064 = vmul.f32 %v2057, %v2063
        %v2065 = vadd.f32 %v2064, 0.18741608
        %v2066 = vmul.f32 %v2057, %v2065
        %v2067 = vadd.f32 %v2066, 1.1283791
        %v2068 = vmul.f32 %v1970, %v2067
        %v2069 = vmul.f32 %v2057, 3.8918573e-05
        %v2070 = vadd.f32 %v2069, 0.001143296
        %v2071 = vmul.f32 %v2057, %v2070
        %v2072 = vadd.f32 %v2071, 0.014752088
        %v2073 = vmul.f32 %v2057, %v2072
        %v2074 = vadd.f32 %v2073, 0.112945676
        %v2075 = vmul.f32 %v2057, %v2074
        %v2076 = vadd.f32 %v2075, 0.4994258
        %v2077 = vmul.f32 %v2057, %v2076
        %v2078 = vadd.f32 %v2077, 1.0
        %v2079 = vrcp.pop %v2078
        %v2080 = vmul.f32 %v2078, %v2079
        %v2081 = vsub.f32 1.0, %v2080
        %v2082 = vmul.f32 %v2079, %v2081
        %v2083 = vadd.f32 %v2079, %v2082
        %vm2084 = vweird.f32 %v2078
        %vm2085 = vweird.f32 %v2079
        %vm2086 = vmor %vm2084, %vm2085
        %v2087 = vsel %vm2086, %v2079, %v2083
        %v2088 = vand.u32 2147483647, %v2078
        %vm2089 = vcmp.eq.f32.partialorder %v2088, 8.507059e+37
        %v2090 = vand.u32 %v2078, 2147483648
        %v2091 = vor.u32 1.1754944e-38, %v2090
        %v2092 = vsel %vm2089, %v2091, %v2087
        %v2093 = vmul.f32 %v2068, %v2092
        %v2094 = vmin.f32 %v2093, 1.0
        %v2095 = vmax.f32 %v2094, -1.0
        %v2096 = vmul.f32 %v1971, %v1971
        %v2097 = vmin.f32 16.0, %v2096
        %v2098 = vmul.f32 %v2097, 2.1237322e-06
        %v2099 = vadd.f32 %v2098, 0.00028619796
        %v2100 = vmul.f32 %v2097, %v2099
        %v2101 = vadd.f32 %v2100, 0.0036580483
        %v2102 = vmul.f32 %v2097, %v2101
        %v2103 = vadd.f32 %v2102, 0.05243302
        %v2104 = vmul.f32 %v2097, %v2103
        %v2105 = vadd.f32 %v2104, 0.18741608
        %v2106 = vmul.f32 %v2097, %v2105
        %v2107 = vadd.f32 %v2106, 1.1283791
        %v2108 = vmul.f32 %v1971, %v2107
        %v2109 = vmul.f32 %v2097, 3.8918573e-05
        %v2110 = vadd.f32 %v2109, 0.001143296
        %v2111 = vmul.f32 %v2097, %v2110
        %v2112 = vadd.f32 %v2111, 0.014752088
        %v2113 = vmul.f32 %v2097, %v2112
        %v2114 = vadd.f32 %v2113, 0.112945676
        %v2115 = vmul.f32 %v2097, %v2114
        %v2116 = vadd.f32 %v2115, 0.4994258
        %v2117 = vmul.f32 %v2097, %v2116
        %v2118 = vadd.f32 %v2117, 1.0
        %v2119 = vrcp.pop %v2118
        %v2120 = vmul.f32 %v2118, %v2119
        %v2121 = vsub.f32 1.0, %v2120
        %v2122 = vmul.f32 %v2119, %v2121
        %v2123 = vadd.f32 %v2119, %v2122
        %vm2124 = vweird.f32 %v2118
        %vm2125 = vweird.f32 %v2119
        %vm2126 = vmor %vm2124, %vm2125
        %v2127 = vsel %vm2126, %v2119, %v2123
        %v2128 = vand.u32 2147483647, %v2118
        %vm2129 = vcmp.eq.f32.partialorder %v2128, 8.507059e+37
        %v2130 = vand.u32 %v2118, 2147483648
        %v2131 = vor.u32 1.1754944e-38, %v2130
        %v2132 = vsel %vm2129, %v2131, %v2127
        %v2133 = vmul.f32 %v2108, %v2132
        %v2134 = vmin.f32 %v2133, 1.0
        %v2135 = vmax.f32 %v2134, -1.0
        %v2136 = vmul.f32 %v1972, %v1972
        %v2137 = vmin.f32 16.0, %v2136
        %v2138 = vmul.f32 %v2137, 2.1237322e-06
        %v2139 = vadd.f32 %v2138, 0.00028619796
        %v2140 = vmul.f32 %v2137, %v2139
        %v2141 = vadd.f32 %v2140, 0.0036580483
        %v2142 = vmul.f32 %v2137, %v2141
        %v2143 = vadd.f32 %v2142, 0.05243302
        %v2144 = vmul.f32 %v2137, %v2143
        %v2145 = vadd.f32 %v2144, 0.18741608
        %v2146 = vmul.f32 %v2137, %v2145
        %v2147 = vadd.f32 %v2146, 1.1283791
        %v2148 = vmul.f32 %v1972, %v2147
        %v2149 = vmul.f32 %v2137, 3.8918573e-05
        %v2150 = vadd.f32 %v2149, 0.001143296
        %v2151 = vmul.f32 %v2137, %v2150
        %v2152 = vadd.f32 %v2151, 0.014752088
        %v2153 = vmul.f32 %v2137, %v2152
        %v2154 = vadd.f32 %v2153, 0.112945676
        %v2155 = vmul.f32 %v2137, %v2154
        %v2156 = vadd.f32 %v2155, 0.4994258
        %v2157 = vmul.f32 %v2137, %v2156
        %v2158 = vadd.f32 %v2157, 1.0
        %v2159 = vrcp.pop %v2158
        %v2160 = vmul.f32 %v2158, %v2159
        %v2161 = vsub.f32 1.0, %v2160
        %v2162 = vmul.f32 %v2159, %v2161
        %v2163 = vadd.f32 %v2159, %v2162
        %vm2164 = vweird.f32 %v2158
        %vm2165 = vweird.f32 %v2159
        %vm2166 = vmor %vm2164, %vm2165
        %v2167 = vsel %vm2166, %v2159, %v2163
        %v2168 = vand.u32 2147483647, %v2158
        %vm2169 = vcmp.eq.f32.partialorder %v2168, 8.507059e+37
        %v2170 = vand.u32 %v2158, 2147483648
        %v2171 = vor.u32 1.1754944e-38, %v2170
        %v2172 = vsel %vm2169, %v2171, %v2167
        %v2173 = vmul.f32 %v2148, %v2172
        %v2174 = vmin.f32 %v2173, 1.0
        %v2175 = vmax.f32 %v2174, -1.0
        %v2176 = vmul.f32 %v1973, %v1973
        %v2177 = vmin.f32 16.0, %v2176
        %v2178 = vmul.f32 %v2177, 2.1237322e-06
        %v2179 = vadd.f32 %v2178, 0.00028619796
        %v2180 = vmul.f32 %v2177, %v2179
        %v2181 = vadd.f32 %v2180, 0.0036580483
        %v2182 = vmul.f32 %v2177, %v2181
        %v2183 = vadd.f32 %v2182, 0.05243302
        %v2184 = vmul.f32 %v2177, %v2183
        %v2185 = vadd.f32 %v2184, 0.18741608
        %v2186 = vmul.f32 %v2177, %v2185
        %v2187 = vadd.f32 %v2186, 1.1283791
        %v2188 = vmul.f32 %v1973, %v2187
        %v2189 = vmul.f32 %v2177, 3.8918573e-05
        %v2190 = vadd.f32 %v2189, 0.001143296
        %v2191 = vmul.f32 %v2177, %v2190
        %v2192 = vadd.f32 %v2191, 0.014752088
        %v2193 = vmul.f32 %v2177, %v2192
        %v2194 = vadd.f32 %v2193, 0.112945676
        %v2195 = vmul.f32 %v2177, %v2194
        %v2196 = vadd.f32 %v2195, 0.4994258
        %v2197 = vmul.f32 %v2177, %v2196
        %v2198 = vadd.f32 %v2197, 1.0
        %v2199 = vrcp.pop %v2198
        %v2200 = vmul.f32 %v2198, %v2199
        %v2201 = vsub.f32 1.0, %v2200
        %v2202 = vmul.f32 %v2199, %v2201
        %v2203 = vadd.f32 %v2199, %v2202
        %vm2204 = vweird.f32 %v2198
        %vm2205 = vweird.f32 %v2199
        %vm2206 = vmor %vm2204, %vm2205
        %v2207 = vsel %vm2206, %v2199, %v2203
        %v2208 = vand.u32 2147483647, %v2198
        %vm2209 = vcmp.eq.f32.partialorder %v2208, 8.507059e+37
        %v2210 = vand.u32 %v2198, 2147483648
        %v2211 = vor.u32 1.1754944e-38, %v2210
        %v2212 = vsel %vm2209, %v2211, %v2207
        %v2213 = vmul.f32 %v2188, %v2212
        %v2214 = vmin.f32 %v2213, 1.0
        %v2215 = vmax.f32 %v2214, -1.0
        %v2216 = vmul.f32 %v1974, %v1974
        %v2217 = vmin.f32 16.0, %v2216
        %v2218 = vmul.f32 %v2217, 2.1237322e-06
        %v2219 = vadd.f32 %v2218, 0.00028619796
        %v2220 = vmul.f32 %v2217, %v2219
        %v2221 = vadd.f32 %v2220, 0.0036580483
        %v2222 = vmul.f32 %v2217, %v2221
        %v2223 = vadd.f32 %v2222, 0.05243302
        %v2224 = vmul.f32 %v2217, %v2223
        %v2225 = vadd.f32 %v2224, 0.18741608
        %v2226 = vmul.f32 %v2217, %v2225
        %v2227 = vadd.f32 %v2226, 1.1283791
        %v2228 = vmul.f32 %v1974, %v2227
        %v2229 = vmul.f32 %v2217, 3.8918573e-05
        %v2230 = vadd.f32 %v2229, 0.001143296
        %v2231 = vmul.f32 %v2217, %v2230
        %v2232 = vadd.f32 %v2231, 0.014752088
        %v2233 = vmul.f32 %v2217, %v2232
        %v2234 = vadd.f32 %v2233, 0.112945676
        %v2235 = vmul.f32 %v2217, %v2234
        %v2236 = vadd.f32 %v2235, 0.4994258
        %v2237 = vmul.f32 %v2217, %v2236
        %v2238 = vadd.f32 %v2237, 1.0
        %v2239 = vrcp.pop %v2238
        %v2240 = vmul.f32 %v2238, %v2239
        %v2241 = vsub.f32 1.0, %v2240
        %v2242 = vmul.f32 %v2239, %v2241
        %v2243 = vadd.f32 %v2239, %v2242
        %vm2244 = vweird.f32 %v2238
        %vm2245 = vweird.f32 %v2239
        %vm2246 = vmor %vm2244, %vm2245
        %v2247 = vsel %vm2246, %v2239, %v2243
        %v2248 = vand.u32 2147483647, %v2238
        %vm2249 = vcmp.eq.f32.partialorder %v2248, 8.507059e+37
        %v2250 = vand.u32 %v2238, 2147483648
        %v2251 = vor.u32 1.1754944e-38, %v2250
        %v2252 = vsel %vm2249, %v2251, %v2247
        %v2253 = vmul.f32 %v2228, %v2252
        %v2254 = vmin.f32 %v2253, 1.0
        %v2255 = vmax.f32 %v2254, -1.0
        %v2256 = vmul.f32 %v1975, %v1975
        %v2257 = vmin.f32 16.0, %v2256
        %v2258 = vmul.f32 %v2257, 2.1237322e-06
        %v2259 = vadd.f32 %v2258, 0.00028619796
        %v2260 = vmul.f32 %v2257, %v2259
        %v2261 = vadd.f32 %v2260, 0.0036580483
        %v2262 = vmul.f32 %v2257, %v2261
        %v2263 = vadd.f32 %v2262, 0.05243302
        %v2264 = vmul.f32 %v2257, %v2263
        %v2265 = vadd.f32 %v2264, 0.18741608
        %v2266 = vmul.f32 %v2257, %v2265
        %v2267 = vadd.f32 %v2266, 1.1283791
        %v2268 = vmul.f32 %v1975, %v2267
        %v2269 = vmul.f32 %v2257, 3.8918573e-05
        %v2270 = vadd.f32 %v2269, 0.001143296
        %v2271 = vmul.f32 %v2257, %v2270
        %v2272 = vadd.f32 %v2271, 0.014752088
        %v2273 = vmul.f32 %v2257, %v2272
        %v2274 = vadd.f32 %v2273, 0.112945676
        %v2275 = vmul.f32 %v2257, %v2274
        %v2276 = vadd.f32 %v2275, 0.4994258
        %v2277 = vmul.f32 %v2257, %v2276
        %v2278 = vadd.f32 %v2277, 1.0
        %v2279 = vrcp.pop %v2278
        %v2280 = vmul.f32 %v2278, %v2279
        %v2281 = vsub.f32 1.0, %v2280
        %v2282 = vmul.f32 %v2279, %v2281
        %v2283 = vadd.f32 %v2279, %v2282
        %vm2284 = vweird.f32 %v2278
        %vm2285 = vweird.f32 %v2279
        %vm2286 = vmor %vm2284, %vm2285
        %v2287 = vsel %vm2286, %v2279, %v2283
        %v2288 = vand.u32 2147483647, %v2278
        %vm2289 = vcmp.eq.f32.partialorder %v2288, 8.507059e+37
        %v2290 = vand.u32 %v2278, 2147483648
        %v2291 = vor.u32 1.1754944e-38, %v2290
        %v2292 = vsel %vm2289, %v2291, %v2287
        %v2293 = vmul.f32 %v2268, %v2292
        %v2294 = vmin.f32 %v2293, 1.0
        %v2295 = vmax.f32 %v2294, -1.0
        %v2296 = vadd.f32 %v2015, 1.0
        %v2297 = vadd.f32 %v2055, 1.0
        %v2298 = vadd.f32 %v2095, 1.0
        %v2299 = vadd.f32 %v2135, 1.0
        %v2300 = vadd.f32 %v2175, 1.0
        %v2301 = vadd.f32 %v2215, 1.0
        %v2302 = vadd.f32 %v2255, 1.0
        %v2303 = vadd.f32 %v2295, 1.0
        %v2304 = vmul.f32 %v1960, %v2296
        %v2305 = vmul.f32 %v1961, %v2297
        %v2306 = vmul.f32 %v1962, %v2298
        %v2307 = vmul.f32 %v1963, %v2299
        %v2308 = vmul.f32 %v1964, %v2300
        %v2309 = vmul.f32 %v1965, %v2301
        %v2310 = vmul.f32 %v1966, %v2302
        %v2311 = vmul.f32 %v1967, %v2303
        %v2312 = vpack.c.bf16 %v2306, %v2304
        %v2313 = vpack.c.bf16 %v2307, %v2305
        %v2314 = vpack.c.bf16 %v2310, %v2308
        %v2315 = vpack.c.bf16 %v2311, %v2309
        %v2316 = vld [vmem:[#allocation14] sm:$0xf]
        %v2317 = vld [vmem:[#allocation14 + $0x4] sm:$0xf]
        %v2318 = vld [vmem:[#allocation14 + $0x8] sm:$0xf]
        %v2319 = vld [vmem:[#allocation14 + $0xc] sm:$0xf]
        %v2320 = vld [vmem:[#allocation14 + $0x10] sm:$0xf]
        %v2321 = vld [vmem:[#allocation14 + $0x14] sm:$0xf]
        %v2322 = vld [vmem:[#allocation14 + $0x18] sm:$0xf]
        %v2323 = vld [vmem:[#allocation14 + $0x1c] sm:$0xf]
        %v2324 = vld [vmem:[#allocation14 + $0x20] sm:$0xf]
        %v2325 = vld [vmem:[#allocation14 + $0x24] sm:$0xf]
        %v2326 = vld [vmem:[#allocation14 + $0x28] sm:$0xf]
        %v2327 = vld [vmem:[#allocation14 + $0x2c] sm:$0xf]
        %v2328 = vld [vmem:[#allocation14 + $0x30] sm:$0xf]
        %v2329 = vld [vmem:[#allocation14 + $0x34] sm:$0xf]
        %v2330 = vld [vmem:[#allocation14 + $0x38] sm:$0xf]
        %v2331 = vld [vmem:[#allocation14 + $0x3c] sm:$0xf]
        %v2332 = vld [vmem:[#allocation14 + $0x40] sm:$0xf]
        %v2333 = vld [vmem:[#allocation14 + $0x44] sm:$0xf]
        %v2334 = vld [vmem:[#allocation14 + $0x48] sm:$0xf]
        %v2335 = vld [vmem:[#allocation14 + $0x4c] sm:$0xf]
        %v2336 = vld [vmem:[#allocation14 + $0x50] sm:$0xf]
        %v2337 = vld [vmem:[#allocation14 + $0x54] sm:$0xf]
        %v2338 = vld [vmem:[#allocation14 + $0x58] sm:$0xf]
        %v2339 = vld [vmem:[#allocation14 + $0x5c] sm:$0xf]
        %v2340 = vld [vmem:[#allocation14 + $0x60] sm:$0xf]
        %v2341 = vld [vmem:[#allocation14 + $0x64] sm:$0xf]
        %v2342 = vld [vmem:[#allocation14 + $0x68] sm:$0xf]
        %v2343 = vld [vmem:[#allocation14 + $0x6c] sm:$0xf]
        %v2344 = vld [vmem:[#allocation14 + $0x70] sm:$0xf]
        %v2345 = vld [vmem:[#allocation14 + $0x74] sm:$0xf]
        %v2346 = vld [vmem:[#allocation14 + $0x78] sm:$0xf]
        %v2347 = vld [vmem:[#allocation14 + $0x7c] sm:$0xf]
        %v2348 = vld [vmem:[%s12] sm:$0x1]
        %v2350 = vperm.slane %v2348, 0
        %v2384 = vunpack.c.l.b16 %v2316
        %v2385 = vunpack.c.l.b16 %v2317
        %v2386 = vunpack.c.l.b16 %v2318
        %v2387 = vunpack.c.l.b16 %v2319
        %v2388 = vunpack.c.l.b16 %v2320
        %v2389 = vunpack.c.l.b16 %v2321
        %v2390 = vunpack.c.l.b16 %v2322
        %v2391 = vunpack.c.l.b16 %v2323
        %v2392 = vunpack.c.l.b16 %v2324
        %v2393 = vunpack.c.l.b16 %v2325
        %v2394 = vunpack.c.l.b16 %v2326
        %v2395 = vunpack.c.l.b16 %v2327
        %v2396 = vunpack.c.l.b16 %v2328
        %v2397 = vunpack.c.l.b16 %v2329
        %v2398 = vunpack.c.l.b16 %v2330
        %v2399 = vunpack.c.l.b16 %v2331
        %v2400 = vunpack.c.l.b16 %v2332
        %v2401 = vunpack.c.l.b16 %v2333
        %v2402 = vunpack.c.l.b16 %v2334
        %v2403 = vunpack.c.l.b16 %v2335
        %v2404 = vunpack.c.l.b16 %v2336
        %v2405 = vunpack.c.l.b16 %v2337
        %v2406 = vunpack.c.l.b16 %v2338
        %v2407 = vunpack.c.l.b16 %v2339
        %v2408 = vunpack.c.l.b16 %v2340
        %v2409 = vunpack.c.l.b16 %v2341
        %v2410 = vunpack.c.l.b16 %v2342
        %v2411 = vunpack.c.l.b16 %v2343
        %v2412 = vunpack.c.l.b16 %v2344
        %v2413 = vunpack.c.l.b16 %v2345
        %v2414 = vunpack.c.l.b16 %v2346
        %v2415 = vunpack.c.l.b16 %v2347
        %v2416 = vpack.c.b16 %v2385, %v2384
        %v2417 = vpack.c.b16 %v2387, %v2386
        %v2418 = vpack.c.b16 %v2389, %v2388
        %v2419 = vpack.c.b16 %v2391, %v2390
        %v2420 = vpack.c.b16 %v2393, %v2392
        %v2421 = vpack.c.b16 %v2395, %v2394
        %v2422 = vpack.c.b16 %v2397, %v2396
        %v2423 = vpack.c.b16 %v2399, %v2398
        %v2424 = vpack.c.b16 %v2401, %v2400
        %v2425 = vpack.c.b16 %v2403, %v2402
        %v2426 = vpack.c.b16 %v2405, %v2404
        %v2427 = vpack.c.b16 %v2407, %v2406
        %v2428 = vpack.c.b16 %v2409, %v2408
        %v2429 = vpack.c.b16 %v2411, %v2410
        %v2430 = vpack.c.b16 %v2413, %v2412
        %v2431 = vpack.c.b16 %v2415, %v2414
        %2448 = vmatpush.bf16.msra.mxu0 %v2423
        %2449 = vmatpush.bf16.msra.mxu0 %v2422
        %2450 = vmatpush.bf16.msra.mxu0 %v2421
        %2451 = vmatpush.bf16.msra.mxu0 %v2420
        %2452 = vmatpush.bf16.msra.mxu0 %v2419
        %2453 = vmatpush.bf16.msra.mxu0 %v2418
        %2454 = vmatpush.bf16.msra.mxu0 %v2417
        %2455 = vmatpush.bf16.msra.mxu0 %v2416
        %2456 = vmatmul.bf16.gmra.mxu0 %v2312
        %v2457 = vpop.f32.mrf.mxu0
        %v2458 = vadd.f32 %v2350, %v2457
        %v2459 = vpop.f32.mrf.mxu0
        %v2460 = vadd.f32 %v2350, %v2459
        %2461 = vmatmul.bf16.gmra.mxu0 %v2314
        %v2462 = vpop.f32.mrf.mxu0
        %v2463 = vadd.f32 %v2350, %v2462
        %v2464 = vpop.f32.mrf.mxu0
        %v2465 = vadd.f32 %v2350, %v2464
        %2466 = vdwg.mxu0
        %2467 = vmatpush.bf16.msra.mxu0 %v2431
        %2468 = vmatpush.bf16.msra.mxu0 %v2430
        %2469 = vmatpush.bf16.msra.mxu0 %v2429
        %2470 = vmatpush.bf16.msra.mxu0 %v2428
        %2471 = vmatpush.bf16.msra.mxu0 %v2427
        %2472 = vmatpush.bf16.msra.mxu0 %v2426
        %2473 = vmatpush.bf16.msra.mxu0 %v2425
        %2474 = vmatpush.bf16.msra.mxu0 %v2424
        %2475 = vmatmul.bf16.gmra.mxu0 %v2313
        %v2476 = vpop.f32.mrf.mxu0
        %v2477 = vadd.f32 %v2458, %v2476
        %v2478 = vpop.f32.mrf.mxu0
        %v2479 = vadd.f32 %v2460, %v2478
        %2480 = vmatmul.bf16.gmra.mxu0 %v2315
        %v2481 = vpop.f32.mrf.mxu0
        %v2482 = vadd.f32 %v2463, %v2481
        %v2483 = vpop.f32.mrf.mxu0
        %v2484 = vadd.f32 %v2465, %v2483
        %2485 = vdwg.mxu0
        %v2486 = vadd.f32 %v1718, %v2477
        %v2487 = vadd.f32 %v1719, %v2479
        %v2488 = vadd.f32 %v1720, %v2482
        %v2489 = vadd.f32 %v1721, %v2484
        %2490 = vst [vmem:[%s571] sm:$0xff] %v2486
        %2491 = vst [vmem:[%s571 + $0x8] sm:$0xff] %v2487
        %2492 = vst [vmem:[%s571 + $0x10] sm:$0xff] %v2488
        %2493 = vst [vmem:[%s571 + $0x18] sm:$0xff] %v2489
        %s2494 = sand.u32 %s320, 1
        %s2495 = scalar_lea.sflag [#allocation4], %s2494
        %s2496 = sand.u32 %s320, 1
        %s2497 = smul.addr %s2496, 32
        %s2498 = scalar_lea.vmem [#allocation16], %s2497
        // Predicated region
        $region105: #{tpu_custom_call.1} parent=71 // pred_check
          %p2499 = pneg %p330
        $region106: #{tpu_custom_call.1} parent=71 // pred_check_branch
          %2501 = sbr.rel (%p2499) target = $region108
        $region107: #{tpu_custom_call.1} parent=71 // pred_region
          %s2502 = smul.u32 2, %s34
          %2504 = vsyncadd %s2495, 0
          %s2505 = smul.addr %s2502, 2
          %s2506 = smul.addr %s2505, 8
          %s2507 = scalar_lea.hbm %s13, %s2506
          %s2508 = sshll.u32 %s2498, 4
          %s2509 = int_to_ptr.vmem [resolvable:$true] %s2508
          %s2510 = sshll.u32 %s2507, 4
          %s2511 = int_to_ptr.hbm [resolvable:$true] %s2510
          %2516 = dma.vmem_to_hbm [thread:$0]  %s2509, 512, %s2511, %s2495, 128, 128, 8
        $region108: #{tpu_custom_call.1} parent=71 // pred_fallthru
          _
      $region72: #{tpu_custom_call.1} parent=5 // pred_fallthru
        _
      %p2517 = scmp.le.s32.totalorder 2, %s29
      // Predicated region
      $region109: #{tpu_custom_call.1} parent=5 // pred_check
        %p2518 = pneg %p2517
      $region110: #{tpu_custom_call.1} parent=5 // pred_check_branch
        %2520 = sbr.rel (%p2518) target = $region112
      $region111: #{tpu_custom_call.1} parent=5 // pred_region
        %s2521 = ssub.s32 %s29, 2
        // Predicated region
        $region113: #{tpu_custom_call.1} parent=111 // pred_check
          %p2522 = pneg %p336
        $region114: #{tpu_custom_call.1} parent=111 // pred_check_branch
          %2524 = sbr.rel (%p2522) target = $region116
        $region115: #{tpu_custom_call.1} parent=111 // pred_region
          %s2525 = sand.u32 %s321, 1
          %s2526 = scalar_lea.sflag [#allocation4], %s2525
          %s2527 = sand.u32 %s321, 1
          %s2528 = smul.addr %s2527, 32
          %s2529 = scalar_lea.vmem [#allocation16], %s2528
          %2531 = dma.done %s2526, 512
        $region116: #{tpu_custom_call.1} parent=111 // pred_fallthru
          _
      $region112: #{tpu_custom_call.1} parent=5 // pred_fallthru
        _
    $region6: #{tpu_custom_call.1} parent=1 // loop_footer
      %s33 = sadd.s32 1, %s29
    $region7: #{tpu_custom_call.1} parent=1 // loop_footer_branch
      %28 = sbr.rel target = $region3
    $region8: #{tpu_custom_call.1} parent=1 // loop_exit
      _
    %2532 = vsyncpa [#allocation3], 1
    %s2533 = scalar_lea.sflag [#allocation3], 1
    %2534 = vsyncpa %s2533, 1
    %2535 = vsyncpa [#allocation6], 1
    %2536 = vsyncpa [#allocation9], 1
    %2537 = vsyncpa [#allocation12], 1
    %2538 = vsyncpa [#allocation15], 1
    %2539 = vsyncpa [#allocation4], 1
    %s2540 = scalar_lea.sflag [#allocation4], 1
    %2541 = vsyncpa %s2540, 1

</llo_original>
